<compile_context>
chip_gen: v7x
topology: tpu7x:2x2x1
jax: 0.10.0
libtpu: 0.0.40
codegen_flags: <defaults>
</compile_context>

<pallas_src>
import jax
import jax.numpy as jnp
from jax import lax
from jax.experimental import pallas as pl
from jax.experimental.pallas import tpu as pltpu


# ----------------------------------------------------------------------------
# Single fused kernel: gather+input-proj, 2 merged LSTM chains, head.
# ----------------------------------------------------------------------------
def make_kernel(B, D, S, S_sent, S_parg):
    B2 = 2 * B                      # merged batch: rows 0:B sent, B:2B parg

    def kernel(tok_f_ref, tok_r_ref, emb_ref,
               wih_f_ref, whh_f_ref, b_f_ref,
               wih_r_ref, whh_r_ref, b_r_ref,
               wt_ref, bt_ref, wf_ref, bf_ref,
               out_ref):
        f32 = jnp.float32
        n_pad = emb_ref.shape[0]

        # ---- hoisted ref loads (JAX does not CSE ref loads) ----------------
        emb = emb_ref[...]                                   # (n_pad, D)
        wih_f = wih_f_ref[...]; whh_f = whh_f_ref[...]; b_f = b_f_ref[...]
        wih_r = wih_r_ref[...]; whh_r = whh_r_ref[...]; b_r = b_r_ref[...]
        tok_f = tok_f_ref[...]                               # (S*B2, 1) int32
        tok_r = tok_r_ref[...]

        # ---- fused embedding gather + input projection (one per direction) -
        # Row 0 of the padded table is zero, so padding_idx=0 semantics hold:
        # a pad token contributes only the (folded-in) bias, exactly like the
        # reference LSTM with a zero embedding.
        word_ids = lax.broadcasted_iota(jnp.int32, (S * B2, n_pad), 1)
        onehot_f = (tok_f == word_ids).astype(f32)           # (S*B2, n_pad)
        onehot_r = (tok_r == word_ids).astype(f32)

        proj_tab_f = jnp.dot(emb, wih_f, preferred_element_type=f32)  # (n_pad,4D)
        proj_tab_r = jnp.dot(emb, wih_r, preferred_element_type=f32)
        proj_f = jnp.dot(onehot_f, proj_tab_f, preferred_element_type=f32) + b_f
        proj_r = jnp.dot(onehot_r, proj_tab_r, preferred_element_type=f32) + b_r

        row = lax.broadcasted_iota(jnp.int32, (B2, D), 0)
        is_sent = row < B                                    # (B2, D) bool

        def run_chain(proj, whh):
            """One merged recurrence over B2 rows for S steps.

            Gate layout of `proj` / `whh` columns is [i, f, o, g]; the sent
            rows' final hidden is taken at step S_sent, the parg rows' at
            step S_parg (padded extra steps never leak into the result).
            """
            h = jnp.zeros((B2, D), f32)
            c = jnp.zeros((B2, D), f32)
            h_sent = h
            h_parg = h
            for t in range(S):                               # static unroll
                gates = (proj[t * B2:(t + 1) * B2, :]
                         + jnp.dot(h, whh, preferred_element_type=f32))
                ifo = jax.nn.sigmoid(gates[:, :3 * D])       # one EUP push
                g_g = jnp.tanh(gates[:, 3 * D:])             # one EUP push
                i_g = ifo[:, 0:D]
                f_g = ifo[:, D:2 * D]
                o_g = ifo[:, 2 * D:3 * D]
                c = f_g * c + i_g * g_g
                h = o_g * jnp.tanh(c)                        # one EUP push
                if t == S_sent - 1:
                    h_sent = h
                if t == S_parg - 1:
                    h_parg = h
            return jnp.where(is_sent, h_sent, h_parg)        # (B2, D)

        h_fwd = run_chain(proj_f, whh_f)
        h_bwd = run_chain(proj_r, whh_r)

        # ---- encodings: rows 0:B = sent_enc, rows B:2B = parg_enc ----------
        enc = jnp.concatenate([h_fwd, h_bwd], axis=-1)       # (B2, 2D)

        # L2-normalize the parg rows only.  NOTE: like the PyTorch reference,
        # no epsilon is added (an exactly-zero encoding would NaN).
        sq = jnp.sum(enc * enc, axis=-1, keepdims=True)      # (B2, 1)
        rnorm = lax.rsqrt(sq)
        row1 = lax.broadcasted_iota(jnp.int32, (B2, 1), 0)
        scale = jnp.where(row1 < B, jnp.ones_like(rnorm), rnorm)
        enc = enc * scale

        # ---- head: T = ReLU([sent_enc ; parg_norm] @ Wt + bt); fc; logsm ---
        x_head = jnp.concatenate([enc[0:B, :], enc[B:B2, :]], axis=-1)  # (B,4D)
        pre = jnp.dot(x_head, wt_ref[...], preferred_element_type=f32) + bt_ref[...]
        emb_t = jnp.maximum(pre, 0.0)                        # dropout = id

        logits = jnp.dot(emb_t, wf_ref[...], preferred_element_type=f32) + bf_ref[...]
        m = jnp.max(logits, axis=-1, keepdims=True)
        z = logits - m
        lse = jnp.log(jnp.sum(jnp.exp(z), axis=-1, keepdims=True))
        out_ref[...] = (z - lse).astype(out_ref.dtype)

    return kernel


def fused_forward(sents, pargs, params):
    """sents (B, S_sent) int32, pargs (B, S_parg) int32 -> log-probs (B, O)."""
    B, S_s = sents.shape
    Bp, S_p = pargs.shape
    assert B == Bp
    D = params["emb"].shape[1]
    O = params["wf"].shape[-1]
    S = max(S_s, S_p)

    # Layout plumbing only (tiny int arrays): arrange the merged per-step
    # token columns so that rows t*2B:(t+1)*2B of the in-kernel projection
    # are step t, with sent rows first then parg rows.
    def pad_seq(x):
        return jnp.pad(x, ((0, 0), (0, S - x.shape[1])))

    tok_f = jnp.concatenate([pad_seq(sents), pad_seq(pargs)],
                            axis=0).T.reshape(S * 2 * B, 1).astype(jnp.int32)
    tok_r = jnp.concatenate([pad_seq(sents[:, ::-1]), pad_seq(pargs[:, ::-1])],
                            axis=0).T.reshape(S * 2 * B, 1).astype(jnp.int32)

    vmem = pl.BlockSpec(memory_space=pltpu.MemorySpace.VMEM)
    return pl.pallas_call(
        make_kernel(B, D, S, S_s, S_p),
        out_shape=jax.ShapeDtypeStruct((B, O), jnp.float32),
        in_specs=[vmem] * 13,
        out_specs=vmem,
    )(
        tok_f, tok_r, params["emb"],
        params["wih_f"], params["whh_f"], params["b_f"],
        params["wih_r"], params["whh_r"], params["b_r"],
        params["wt"], params["bt"], params["wf"], params["bf"],
    )


# ----------------------------------------------------------------------------
# Parameter construction: PyTorch-style (4D, D) [i,f,g,o] LSTM weights are
# converted to fused lane-dense x@W layout (D, 4D) with gate order [i,f,o,g].
# ----------------------------------------------------------------------------
def init_params(key, n_words, word_dim, output_dim):
    D, E, O = word_dim, 2 * word_dim, output_dim
    n_pad = max(128, ((n_words + 127) // 128) * 128)   # lane-dense word dim
    ks = jax.random.split(key, 8)
    s = 0.1

    emb = jax.random.normal(ks[0], (n_words, D), jnp.float32) * s
    emb = emb.at[0].set(0.0)                           # nn.Embedding(padding_idx=0)
    emb_pad = jnp.zeros((n_pad, D), jnp.float32).at[:n_words].set(emb)

    order = (0, 1, 3, 2)                               # torch [i,f,g,o] -> [i,f,o,g]

    def lstm_dir(k):
        k1, k2, k3, k4 = jax.random.split(k, 4)
        w_ih = jax.random.normal(k1, (4 * D, D), jnp.float32) * s   # torch layout
        w_hh = jax.random.normal(k2, (4 * D, D), jnp.float32) * s
        b_ih = jax.random.normal(k3, (4 * D,), jnp.float32) * s
        b_hh = jax.random.normal(k4, (4 * D,), jnp.float32) * s
        wih = jnp.concatenate([w_ih[g * D:(g + 1) * D, :].T for g in order], axis=1)
        whh = jnp.concatenate([w_hh[g * D:(g + 1) * D, :].T for g in order], axis=1)
        b = jnp.concatenate([(b_ih + b_hh)[g * D:(g + 1) * D] for g in order])
        return wih, whh, b.reshape(1, 4 * D)

    wih_f, whh_f, b_f = lstm_dir(ks[1])
    wih_r, whh_r, b_r = lstm_dir(ks[2])

    # T: Linear(2E -> E) in x@W layout (input = [sent_enc ; parg_norm]).
    w_t = jax.random.normal(ks[3], (2 * E, E), jnp.float32) * s
    b_t = jnp.zeros((1, E), jnp.float32)
    # fc: Linear(E -> O)
    w_f = jax.random.normal(ks[4], (E, O), jnp.float32) * s
    b_fc = jnp.zeros((1, O), jnp.float32)

    return dict(emb=emb_pad,
                wih_f=wih_f, whh_f=whh_f, b_f=b_f,
                wih_r=wih_r, whh_r=whh_r, b_r=b_r,
                wt=w_t, bt=b_t, wf=w_f, bf=b_fc)


# ----------------------------------------------------------------------------
# Pure-JAX reference (same math, jnp.take gather, explicit concat) for checks.
# ----------------------------------------------------------------------------
def reference_forward(sent_tok, parg_tok, p):
    D = p["emb"].shape[1]

    def lstm_final(x, wih, whh, b):
        Bn = x.shape[0]
        h = jnp.zeros((Bn, D), jnp.float32)
        c = jnp.zeros((Bn, D), jnp.float32)
        for t in range(x.shape[1]):
            g = x[:, t, :] @ wih + h @ whh + b            # gate order [i,f,o,g]
            i_g = jax.nn.sigmoid(g[:, 0:D])
            f_g = jax.nn.sigmoid(g[:, D:2 * D])
            o_g = jax.nn.sigmoid(g[:, 2 * D:3 * D])
            g_g = jnp.tanh(g[:, 3 * D:4 * D])
            c = f_g * c + i_g * g_g
            h = o_g * jnp.tanh(c)
        return h

    def encode(tok):
        x = jnp.take(p["emb"], tok, axis=0)               # (B, S, D)
        h_f = lstm_final(x, p["wih_f"], p["whh_f"], p["b_f"])
        h_b = lstm_final(x[:, ::-1, :], p["wih_r"], p["whh_r"], p["b_r"])
        return jnp.concatenate([h_f, h_b], axis=-1)

    sent_enc = encode(sent_tok)
    parg_enc = encode(parg_tok)
    parg_enc = parg_enc / jnp.linalg.norm(parg_enc, axis=1, keepdims=True)
    emb_t = jnp.maximum(
        jnp.concatenate([sent_enc, parg_enc], axis=-1) @ p["wt"] + p["bt"], 0.0)
    logits = emb_t @ p["wf"] + p["bf"]
    return jax.nn.log_softmax(logits, axis=-1)


if __name__ == "__main__":
    n_words, word_dim, output_dim = 100, 32, 8
    B, S_sent, S_parg = 4, 8, 6

    key = jax.random.PRNGKey(0)
    k_params, k_sents, k_pargs = jax.random.split(key, 3)
    params = init_params(k_params, n_words, word_dim, output_dim)

    sents = jax.random.randint(k_sents, (B, S_sent), 1, n_words, dtype=jnp.int32)
    pargs = jax.random.randint(k_pargs, (B, S_parg), 1, n_words, dtype=jnp.int32)

    out = jax.jit(fused_forward)(sents, pargs, params)
    out = jax.block_until_ready(out)

    ref = jax.jit(reference_forward)(sents, pargs, params)
    ref = jax.block_until_ready(ref)

    assert out.shape == (B, output_dim)
    assert bool(jnp.all(jnp.isfinite(out)))
    # log_softmax rows should sum to ~1 in prob space
    assert bool(jnp.allclose(jnp.sum(jnp.exp(out), axis=-1), 1.0, atol=1e-4))
    # match the pure-JAX reference (loose tolerance: in-kernel MXU dots vs
    # XLA dots use slightly different f32 matmul paths)
    assert bool(jnp.allclose(out, ref, atol=2e-2, rtol=2e-2))
    print("KERNEL_OK")
</pallas_src>

<mosaic_0001>
module attributes {stable_mosaic.version = 11 : i64} {
  func.func @kernel(%arg0: memref<64x1xi32, #tpu.memory_space<vmem>>, %arg1: memref<64x1xi32, #tpu.memory_space<vmem>>, %arg2: memref<128x32xf32, #tpu.memory_space<vmem>>, %arg3: memref<32x128xf32, #tpu.memory_space<vmem>>, %arg4: memref<32x128xf32, #tpu.memory_space<vmem>>, %arg5: memref<1x128xf32, #tpu.memory_space<vmem>>, %arg6: memref<32x128xf32, #tpu.memory_space<vmem>>, %arg7: memref<32x128xf32, #tpu.memory_space<vmem>>, %arg8: memref<1x128xf32, #tpu.memory_space<vmem>>, %arg9: memref<128x64xf32, #tpu.memory_space<vmem>>, %arg10: memref<1x64xf32, #tpu.memory_space<vmem>>, %arg11: memref<64x8xf32, #tpu.memory_space<vmem>>, %arg12: memref<1x8xf32, #tpu.memory_space<vmem>>, %arg13: memref<4x8xf32, #tpu.memory_space<vmem>>) attributes {dimension_semantics = [], scalar_prefetch = 0 : i64, scratch_operands = 0 : i64, tpu.core_type = #tpu.core_type<tc>} {
    %c0 = arith.constant 0 : index
    %c0_0 = arith.constant 0 : index
    %0 = vector.load %arg2[%c0, %c0_0] : memref<128x32xf32, #tpu.memory_space<vmem>>, vector<128x32xf32>
    %c0_1 = arith.constant 0 : index
    %c0_2 = arith.constant 0 : index
    %1 = vector.load %arg3[%c0_1, %c0_2] : memref<32x128xf32, #tpu.memory_space<vmem>>, vector<32x128xf32>
    %c0_3 = arith.constant 0 : index
    %c0_4 = arith.constant 0 : index
    %2 = vector.load %arg4[%c0_3, %c0_4] : memref<32x128xf32, #tpu.memory_space<vmem>>, vector<32x128xf32>
    %c0_5 = arith.constant 0 : index
    %c0_6 = arith.constant 0 : index
    %3 = vector.load %arg5[%c0_5, %c0_6] : memref<1x128xf32, #tpu.memory_space<vmem>>, vector<1x128xf32>
    %c0_7 = arith.constant 0 : index
    %c0_8 = arith.constant 0 : index
    %4 = vector.load %arg6[%c0_7, %c0_8] : memref<32x128xf32, #tpu.memory_space<vmem>>, vector<32x128xf32>
    %c0_9 = arith.constant 0 : index
    %c0_10 = arith.constant 0 : index
    %5 = vector.load %arg7[%c0_9, %c0_10] : memref<32x128xf32, #tpu.memory_space<vmem>>, vector<32x128xf32>
    %c0_11 = arith.constant 0 : index
    %c0_12 = arith.constant 0 : index
    %6 = vector.load %arg8[%c0_11, %c0_12] : memref<1x128xf32, #tpu.memory_space<vmem>>, vector<1x128xf32>
    %c0_13 = arith.constant 0 : index
    %c0_14 = arith.constant 0 : index
    %7 = vector.load %arg0[%c0_13, %c0_14] : memref<64x1xi32, #tpu.memory_space<vmem>>, vector<64x1xi32>
    %c0_15 = arith.constant 0 : index
    %c0_16 = arith.constant 0 : index
    %8 = vector.load %arg1[%c0_15, %c0_16] : memref<64x1xi32, #tpu.memory_space<vmem>>, vector<64x1xi32>
    %9 = tpu.iota {dimensions = array<i32: 1>} : vector<64x128xi32>
    %10 = vector.broadcast %7 : vector<64x1xi32> to vector<64x128xi32>
    %11 = arith.cmpi eq, %10, %9 : vector<64x128xi32>
    %12 = arith.extui %11 : vector<64x128xi1> to vector<64x128xi32>
    %13 = arith.sitofp %12 : vector<64x128xi32> to vector<64x128xf32>
    %14 = vector.broadcast %8 : vector<64x1xi32> to vector<64x128xi32>
    %15 = arith.cmpi eq, %14, %9 : vector<64x128xi32>
    %16 = arith.extui %15 : vector<64x128xi1> to vector<64x128xi32>
    %17 = arith.sitofp %16 : vector<64x128xi32> to vector<64x128xf32>
    %cst = arith.constant dense<0.000000e+00> : vector<128x128xf32>
    %18 = tpu.matmul %0, %1, %cst {dimension_numbers = #tpu.dot_dimension_numbers<[1], [0], [0], [1], [0, 0, 1, 1], [], []>} : vector<128x32xf32>, vector<32x128xf32>, vector<128x128xf32> -> vector<128x128xf32>
    %cst_17 = arith.constant dense<0.000000e+00> : vector<128x128xf32>
    %19 = tpu.matmul %0, %4, %cst_17 {dimension_numbers = #tpu.dot_dimension_numbers<[1], [0], [0], [1], [0, 0, 1, 1], [], []>} : vector<128x32xf32>, vector<32x128xf32>, vector<128x128xf32> -> vector<128x128xf32>
    %cst_18 = arith.constant dense<0.000000e+00> : vector<64x128xf32>
    %20 = tpu.matmul %13, %18, %cst_18 {dimension_numbers = #tpu.dot_dimension_numbers<[1], [0], [0], [1], [0, 0, 1, 1], [], []>} : vector<64x128xf32>, vector<128x128xf32>, vector<64x128xf32> -> vector<64x128xf32>
    %21 = vector.broadcast %3 : vector<1x128xf32> to vector<64x128xf32>
    %22 = arith.addf %20, %21 : vector<64x128xf32>
    %cst_19 = arith.constant dense<0.000000e+00> : vector<64x128xf32>
    %23 = tpu.matmul %17, %19, %cst_19 {dimension_numbers = #tpu.dot_dimension_numbers<[1], [0], [0], [1], [0, 0, 1, 1], [], []>} : vector<64x128xf32>, vector<128x128xf32>, vector<64x128xf32> -> vector<64x128xf32>
    %24 = vector.broadcast %6 : vector<1x128xf32> to vector<64x128xf32>
    %25 = arith.addf %23, %24 : vector<64x128xf32>
    %26 = tpu.iota {dimensions = array<i32: 0>} : vector<8x32xi32>
    %c4_i32 = arith.constant 4 : i32
    %27 = vector.broadcast %c4_i32 : i32 to vector<8x32xi32>
    %28 = arith.cmpi slt, %26, %27 : vector<8x32xi32>
    %cst_20 = arith.constant 0.000000e+00 : f32
    %29 = vector.broadcast %cst_20 : f32 to vector<8x32xf32>
    %cst_21 = arith.constant 0.000000e+00 : f32
    %30 = vector.broadcast %cst_21 : f32 to vector<8x32xf32>
    %31 = vector.extract_strided_slice %22 {offsets = [0, 0], sizes = [8, 128], strides = [1, 1]} : vector<64x128xf32> to vector<8x128xf32>
    %cst_22 = arith.constant dense<0.000000e+00> : vector<8x128xf32>
    %32 = tpu.matmul %29, %2, %cst_22 {dimension_numbers = #tpu.dot_dimension_numbers<[1], [0], [0], [1], [0, 0, 1, 1], [], []>} : vector<8x32xf32>, vector<32x128xf32>, vector<8x128xf32> -> vector<8x128xf32>
    %33 = arith.addf %31, %32 : vector<8x128xf32>
    %34 = vector.extract_strided_slice %33 {offsets = [0, 0], sizes = [8, 96], strides = [1, 1]} : vector<8x128xf32> to vector<8x96xf32>
    %35 = arith.negf %34 : vector<8x96xf32>
    %36 = math.exp %35 : vector<8x96xf32>
    %cst_23 = arith.constant 1.000000e+00 : f32
    %37 = vector.broadcast %cst_23 : f32 to vector<8x96xf32>
    %38 = arith.addf %37, %36 : vector<8x96xf32>
    %39 = arith.divf %37, %38 : vector<8x96xf32>
    %40 = vector.extract_strided_slice %33 {offsets = [0, 96], sizes = [8, 32], strides = [1, 1]} : vector<8x128xf32> to vector<8x32xf32>
    %41 = math.tanh %40 : vector<8x32xf32>
    %42 = vector.extract_strided_slice %39 {offsets = [0, 0], sizes = [8, 32], strides = [1, 1]} : vector<8x96xf32> to vector<8x32xf32>
    %43 = vector.extract_strided_slice %39 {offsets = [0, 32], sizes = [8, 32], strides = [1, 1]} : vector<8x96xf32> to vector<8x32xf32>
    %44 = vector.extract_strided_slice %39 {offsets = [0, 64], sizes = [8, 32], strides = [1, 1]} : vector<8x96xf32> to vector<8x32xf32>
    %45 = arith.mulf %43, %30 : vector<8x32xf32>
    %46 = arith.mulf %42, %41 : vector<8x32xf32>
    %47 = arith.addf %45, %46 : vector<8x32xf32>
    %48 = math.tanh %47 : vector<8x32xf32>
    %49 = arith.mulf %44, %48 : vector<8x32xf32>
    %50 = vector.extract_strided_slice %22 {offsets = [8, 0], sizes = [8, 128], strides = [1, 1]} : vector<64x128xf32> to vector<8x128xf32>
    %cst_24 = arith.constant dense<0.000000e+00> : vector<8x128xf32>
    %51 = tpu.matmul %49, %2, %cst_24 {dimension_numbers = #tpu.dot_dimension_numbers<[1], [0], [0], [1], [0, 0, 1, 1], [], []>} : vector<8x32xf32>, vector<32x128xf32>, vector<8x128xf32> -> vector<8x128xf32>
    %52 = arith.addf %50, %51 : vector<8x128xf32>
    %53 = vector.extract_strided_slice %52 {offsets = [0, 0], sizes = [8, 96], strides = [1, 1]} : vector<8x128xf32> to vector<8x96xf32>
    %54 = arith.negf %53 : vector<8x96xf32>
    %55 = math.exp %54 : vector<8x96xf32>
    %cst_25 = arith.constant 1.000000e+00 : f32
    %56 = vector.broadcast %cst_25 : f32 to vector<8x96xf32>
    %57 = arith.addf %56, %55 : vector<8x96xf32>
    %58 = arith.divf %56, %57 : vector<8x96xf32>
    %59 = vector.extract_strided_slice %52 {offsets = [0, 96], sizes = [8, 32], strides = [1, 1]} : vector<8x128xf32> to vector<8x32xf32>
    %60 = math.tanh %59 : vector<8x32xf32>
    %61 = vector.extract_strided_slice %58 {offsets = [0, 0], sizes = [8, 32], strides = [1, 1]} : vector<8x96xf32> to vector<8x32xf32>
    %62 = vector.extract_strided_slice %58 {offsets = [0, 32], sizes = [8, 32], strides = [1, 1]} : vector<8x96xf32> to vector<8x32xf32>
    %63 = vector.extract_strided_slice %58 {offsets = [0, 64], sizes = [8, 32], strides = [1, 1]} : vector<8x96xf32> to vector<8x32xf32>
    %64 = arith.mulf %62, %47 : vector<8x32xf32>
    %65 = arith.mulf %61, %60 : vector<8x32xf32>
    %66 = arith.addf %64, %65 : vector<8x32xf32>
    %67 = math.tanh %66 : vector<8x32xf32>
    %68 = arith.mulf %63, %67 : vector<8x32xf32>
    %69 = vector.extract_strided_slice %22 {offsets = [16, 0], sizes = [8, 128], strides = [1, 1]} : vector<64x128xf32> to vector<8x128xf32>
    %cst_26 = arith.constant dense<0.000000e+00> : vector<8x128xf32>
    %70 = tpu.matmul %68, %2, %cst_26 {dimension_numbers = #tpu.dot_dimension_numbers<[1], [0], [0], [1], [0, 0, 1, 1], [], []>} : vector<8x32xf32>, vector<32x128xf32>, vector<8x128xf32> -> vector<8x128xf32>
    %71 = arith.addf %69, %70 : vector<8x128xf32>
    %72 = vector.extract_strided_slice %71 {offsets = [0, 0], sizes = [8, 96], strides = [1, 1]} : vector<8x128xf32> to vector<8x96xf32>
    %73 = arith.negf %72 : vector<8x96xf32>
    %74 = math.exp %73 : vector<8x96xf32>
    %cst_27 = arith.constant 1.000000e+00 : f32
    %75 = vector.broadcast %cst_27 : f32 to vector<8x96xf32>
    %76 = arith.addf %75, %74 : vector<8x96xf32>
    %77 = arith.divf %75, %76 : vector<8x96xf32>
    %78 = vector.extract_strided_slice %71 {offsets = [0, 96], sizes = [8, 32], strides = [1, 1]} : vector<8x128xf32> to vector<8x32xf32>
    %79 = math.tanh %78 : vector<8x32xf32>
    %80 = vector.extract_strided_slice %77 {offsets = [0, 0], sizes = [8, 32], strides = [1, 1]} : vector<8x96xf32> to vector<8x32xf32>
    %81 = vector.extract_strided_slice %77 {offsets = [0, 32], sizes = [8, 32], strides = [1, 1]} : vector<8x96xf32> to vector<8x32xf32>
    %82 = vector.extract_strided_slice %77 {offsets = [0, 64], sizes = [8, 32], strides = [1, 1]} : vector<8x96xf32> to vector<8x32xf32>
    %83 = arith.mulf %81, %66 : vector<8x32xf32>
    %84 = arith.mulf %80, %79 : vector<8x32xf32>
    %85 = arith.addf %83, %84 : vector<8x32xf32>
    %86 = math.tanh %85 : vector<8x32xf32>
    %87 = arith.mulf %82, %86 : vector<8x32xf32>
    %88 = vector.extract_strided_slice %22 {offsets = [24, 0], sizes = [8, 128], strides = [1, 1]} : vector<64x128xf32> to vector<8x128xf32>
    %cst_28 = arith.constant dense<0.000000e+00> : vector<8x128xf32>
    %89 = tpu.matmul %87, %2, %cst_28 {dimension_numbers = #tpu.dot_dimension_numbers<[1], [0], [0], [1], [0, 0, 1, 1], [], []>} : vector<8x32xf32>, vector<32x128xf32>, vector<8x128xf32> -> vector<8x128xf32>
    %90 = arith.addf %88, %89 : vector<8x128xf32>
    %91 = vector.extract_strided_slice %90 {offsets = [0, 0], sizes = [8, 96], strides = [1, 1]} : vector<8x128xf32> to vector<8x96xf32>
    %92 = arith.negf %91 : vector<8x96xf32>
    %93 = math.exp %92 : vector<8x96xf32>
    %cst_29 = arith.constant 1.000000e+00 : f32
    %94 = vector.broadcast %cst_29 : f32 to vector<8x96xf32>
    %95 = arith.addf %94, %93 : vector<8x96xf32>
    %96 = arith.divf %94, %95 : vector<8x96xf32>
    %97 = vector.extract_strided_slice %90 {offsets = [0, 96], sizes = [8, 32], strides = [1, 1]} : vector<8x128xf32> to vector<8x32xf32>
    %98 = math.tanh %97 : vector<8x32xf32>
    %99 = vector.extract_strided_slice %96 {offsets = [0, 0], sizes = [8, 32], strides = [1, 1]} : vector<8x96xf32> to vector<8x32xf32>
    %100 = vector.extract_strided_slice %96 {offsets = [0, 32], sizes = [8, 32], strides = [1, 1]} : vector<8x96xf32> to vector<8x32xf32>
    %101 = vector.extract_strided_slice %96 {offsets = [0, 64], sizes = [8, 32], strides = [1, 1]} : vector<8x96xf32> to vector<8x32xf32>
    %102 = arith.mulf %100, %85 : vector<8x32xf32>
    %103 = arith.mulf %99, %98 : vector<8x32xf32>
    %104 = arith.addf %102, %103 : vector<8x32xf32>
    %105 = math.tanh %104 : vector<8x32xf32>
    %106 = arith.mulf %101, %105 : vector<8x32xf32>
    %107 = vector.extract_strided_slice %22 {offsets = [32, 0], sizes = [8, 128], strides = [1, 1]} : vector<64x128xf32> to vector<8x128xf32>
    %cst_30 = arith.constant dense<0.000000e+00> : vector<8x128xf32>
    %108 = tpu.matmul %106, %2, %cst_30 {dimension_numbers = #tpu.dot_dimension_numbers<[1], [0], [0], [1], [0, 0, 1, 1], [], []>} : vector<8x32xf32>, vector<32x128xf32>, vector<8x128xf32> -> vector<8x128xf32>
    %109 = arith.addf %107, %108 : vector<8x128xf32>
    %110 = vector.extract_strided_slice %109 {offsets = [0, 0], sizes = [8, 96], strides = [1, 1]} : vector<8x128xf32> to vector<8x96xf32>
    %111 = arith.negf %110 : vector<8x96xf32>
    %112 = math.exp %111 : vector<8x96xf32>
    %cst_31 = arith.constant 1.000000e+00 : f32
    %113 = vector.broadcast %cst_31 : f32 to vector<8x96xf32>
    %114 = arith.addf %113, %112 : vector<8x96xf32>
    %115 = arith.divf %113, %114 : vector<8x96xf32>
    %116 = vector.extract_strided_slice %109 {offsets = [0, 96], sizes = [8, 32], strides = [1, 1]} : vector<8x128xf32> to vector<8x32xf32>
    %117 = math.tanh %116 : vector<8x32xf32>
    %118 = vector.extract_strided_slice %115 {offsets = [0, 0], sizes = [8, 32], strides = [1, 1]} : vector<8x96xf32> to vector<8x32xf32>
    %119 = vector.extract_strided_slice %115 {offsets = [0, 32], sizes = [8, 32], strides = [1, 1]} : vector<8x96xf32> to vector<8x32xf32>
    %120 = vector.extract_strided_slice %115 {offsets = [0, 64], sizes = [8, 32], strides = [1, 1]} : vector<8x96xf32> to vector<8x32xf32>
    %121 = arith.mulf %119, %104 : vector<8x32xf32>
    %122 = arith.mulf %118, %117 : vector<8x32xf32>
    %123 = arith.addf %121, %122 : vector<8x32xf32>
    %124 = math.tanh %123 : vector<8x32xf32>
    %125 = arith.mulf %120, %124 : vector<8x32xf32>
    %126 = vector.extract_strided_slice %22 {offsets = [40, 0], sizes = [8, 128], strides = [1, 1]} : vector<64x128xf32> to vector<8x128xf32>
    %cst_32 = arith.constant dense<0.000000e+00> : vector<8x128xf32>
    %127 = tpu.matmul %125, %2, %cst_32 {dimension_numbers = #tpu.dot_dimension_numbers<[1], [0], [0], [1], [0, 0, 1, 1], [], []>} : vector<8x32xf32>, vector<32x128xf32>, vector<8x128xf32> -> vector<8x128xf32>
    %128 = arith.addf %126, %127 : vector<8x128xf32>
    %129 = vector.extract_strided_slice %128 {offsets = [0, 0], sizes = [8, 96], strides = [1, 1]} : vector<8x128xf32> to vector<8x96xf32>
    %130 = arith.negf %129 : vector<8x96xf32>
    %131 = math.exp %130 : vector<8x96xf32>
    %cst_33 = arith.constant 1.000000e+00 : f32
    %132 = vector.broadcast %cst_33 : f32 to vector<8x96xf32>
    %133 = arith.addf %132, %131 : vector<8x96xf32>
    %134 = arith.divf %132, %133 : vector<8x96xf32>
    %135 = vector.extract_strided_slice %128 {offsets = [0, 96], sizes = [8, 32], strides = [1, 1]} : vector<8x128xf32> to vector<8x32xf32>
    %136 = math.tanh %135 : vector<8x32xf32>
    %137 = vector.extract_strided_slice %134 {offsets = [0, 0], sizes = [8, 32], strides = [1, 1]} : vector<8x96xf32> to vector<8x32xf32>
    %138 = vector.extract_strided_slice %134 {offsets = [0, 32], sizes = [8, 32], strides = [1, 1]} : vector<8x96xf32> to vector<8x32xf32>
    %139 = vector.extract_strided_slice %134 {offsets = [0, 64], sizes = [8, 32], strides = [1, 1]} : vector<8x96xf32> to vector<8x32xf32>
    %140 = arith.mulf %138, %123 : vector<8x32xf32>
    %141 = arith.mulf %137, %136 : vector<8x32xf32>
    %142 = arith.addf %140, %141 : vector<8x32xf32>
    %143 = math.tanh %142 : vector<8x32xf32>
    %144 = arith.mulf %139, %143 : vector<8x32xf32>
    %145 = vector.extract_strided_slice %22 {offsets = [48, 0], sizes = [8, 128], strides = [1, 1]} : vector<64x128xf32> to vector<8x128xf32>
    %cst_34 = arith.constant dense<0.000000e+00> : vector<8x128xf32>
    %146 = tpu.matmul %144, %2, %cst_34 {dimension_numbers = #tpu.dot_dimension_numbers<[1], [0], [0], [1], [0, 0, 1, 1], [], []>} : vector<8x32xf32>, vector<32x128xf32>, vector<8x128xf32> -> vector<8x128xf32>
    %147 = arith.addf %145, %146 : vector<8x128xf32>
    %148 = vector.extract_strided_slice %147 {offsets = [0, 0], sizes = [8, 96], strides = [1, 1]} : vector<8x128xf32> to vector<8x96xf32>
    %149 = arith.negf %148 : vector<8x96xf32>
    %150 = math.exp %149 : vector<8x96xf32>
    %cst_35 = arith.constant 1.000000e+00 : f32
    %151 = vector.broadcast %cst_35 : f32 to vector<8x96xf32>
    %152 = arith.addf %151, %150 : vector<8x96xf32>
    %153 = arith.divf %151, %152 : vector<8x96xf32>
    %154 = vector.extract_strided_slice %147 {offsets = [0, 96], sizes = [8, 32], strides = [1, 1]} : vector<8x128xf32> to vector<8x32xf32>
    %155 = math.tanh %154 : vector<8x32xf32>
    %156 = vector.extract_strided_slice %153 {offsets = [0, 0], sizes = [8, 32], strides = [1, 1]} : vector<8x96xf32> to vector<8x32xf32>
    %157 = vector.extract_strided_slice %153 {offsets = [0, 32], sizes = [8, 32], strides = [1, 1]} : vector<8x96xf32> to vector<8x32xf32>
    %158 = vector.extract_strided_slice %153 {offsets = [0, 64], sizes = [8, 32], strides = [1, 1]} : vector<8x96xf32> to vector<8x32xf32>
    %159 = arith.mulf %157, %142 : vector<8x32xf32>
    %160 = arith.mulf %156, %155 : vector<8x32xf32>
    %161 = arith.addf %159, %160 : vector<8x32xf32>
    %162 = math.tanh %161 : vector<8x32xf32>
    %163 = arith.mulf %158, %162 : vector<8x32xf32>
    %164 = vector.extract_strided_slice %22 {offsets = [56, 0], sizes = [8, 128], strides = [1, 1]} : vector<64x128xf32> to vector<8x128xf32>
    %cst_36 = arith.constant dense<0.000000e+00> : vector<8x128xf32>
    %165 = tpu.matmul %163, %2, %cst_36 {dimension_numbers = #tpu.dot_dimension_numbers<[1], [0], [0], [1], [0, 0, 1, 1], [], []>} : vector<8x32xf32>, vector<32x128xf32>, vector<8x128xf32> -> vector<8x128xf32>
    %166 = arith.addf %164, %165 : vector<8x128xf32>
    %167 = vector.extract_strided_slice %166 {offsets = [0, 0], sizes = [8, 96], strides = [1, 1]} : vector<8x128xf32> to vector<8x96xf32>
    %168 = arith.negf %167 : vector<8x96xf32>
    %169 = math.exp %168 : vector<8x96xf32>
    %cst_37 = arith.constant 1.000000e+00 : f32
    %170 = vector.broadcast %cst_37 : f32 to vector<8x96xf32>
    %171 = arith.addf %170, %169 : vector<8x96xf32>
    %172 = arith.divf %170, %171 : vector<8x96xf32>
    %173 = vector.extract_strided_slice %166 {offsets = [0, 96], sizes = [8, 32], strides = [1, 1]} : vector<8x128xf32> to vector<8x32xf32>
    %174 = math.tanh %173 : vector<8x32xf32>
    %175 = vector.extract_strided_slice %172 {offsets = [0, 0], sizes = [8, 32], strides = [1, 1]} : vector<8x96xf32> to vector<8x32xf32>
    %176 = vector.extract_strided_slice %172 {offsets = [0, 32], sizes = [8, 32], strides = [1, 1]} : vector<8x96xf32> to vector<8x32xf32>
    %177 = vector.extract_strided_slice %172 {offsets = [0, 64], sizes = [8, 32], strides = [1, 1]} : vector<8x96xf32> to vector<8x32xf32>
    %178 = arith.mulf %176, %161 : vector<8x32xf32>
    %179 = arith.mulf %175, %174 : vector<8x32xf32>
    %180 = arith.addf %178, %179 : vector<8x32xf32>
    %181 = math.tanh %180 : vector<8x32xf32>
    %182 = arith.mulf %177, %181 : vector<8x32xf32>
    %183 = arith.select %28, %182, %144 : vector<8x32xi1>, vector<8x32xf32>
    %cst_38 = arith.constant 0.000000e+00 : f32
    %184 = vector.broadcast %cst_38 : f32 to vector<8x32xf32>
    %cst_39 = arith.constant 0.000000e+00 : f32
    %185 = vector.broadcast %cst_39 : f32 to vector<8x32xf32>
    %186 = vector.extract_strided_slice %25 {offsets = [0, 0], sizes = [8, 128], strides = [1, 1]} : vector<64x128xf32> to vector<8x128xf32>
    %cst_40 = arith.constant dense<0.000000e+00> : vector<8x128xf32>
    %187 = tpu.matmul %184, %5, %cst_40 {dimension_numbers = #tpu.dot_dimension_numbers<[1], [0], [0], [1], [0, 0, 1, 1], [], []>} : vector<8x32xf32>, vector<32x128xf32>, vector<8x128xf32> -> vector<8x128xf32>
    %188 = arith.addf %186, %187 : vector<8x128xf32>
    %189 = vector.extract_strided_slice %188 {offsets = [0, 0], sizes = [8, 96], strides = [1, 1]} : vector<8x128xf32> to vector<8x96xf32>
    %190 = arith.negf %189 : vector<8x96xf32>
    %191 = math.exp %190 : vector<8x96xf32>
    %cst_41 = arith.constant 1.000000e+00 : f32
    %192 = vector.broadcast %cst_41 : f32 to vector<8x96xf32>
    %193 = arith.addf %192, %191 : vector<8x96xf32>
    %194 = arith.divf %192, %193 : vector<8x96xf32>
    %195 = vector.extract_strided_slice %188 {offsets = [0, 96], sizes = [8, 32], strides = [1, 1]} : vector<8x128xf32> to vector<8x32xf32>
    %196 = math.tanh %195 : vector<8x32xf32>
    %197 = vector.extract_strided_slice %194 {offsets = [0, 0], sizes = [8, 32], strides = [1, 1]} : vector<8x96xf32> to vector<8x32xf32>
    %198 = vector.extract_strided_slice %194 {offsets = [0, 32], sizes = [8, 32], strides = [1, 1]} : vector<8x96xf32> to vector<8x32xf32>
    %199 = vector.extract_strided_slice %194 {offsets = [0, 64], sizes = [8, 32], strides = [1, 1]} : vector<8x96xf32> to vector<8x32xf32>
    %200 = arith.mulf %198, %185 : vector<8x32xf32>
    %201 = arith.mulf %197, %196 : vector<8x32xf32>
    %202 = arith.addf %200, %201 : vector<8x32xf32>
    %203 = math.tanh %202 : vector<8x32xf32>
    %204 = arith.mulf %199, %203 : vector<8x32xf32>
    %205 = vector.extract_strided_slice %25 {offsets = [8, 0], sizes = [8, 128], strides = [1, 1]} : vector<64x128xf32> to vector<8x128xf32>
    %cst_42 = arith.constant dense<0.000000e+00> : vector<8x128xf32>
    %206 = tpu.matmul %204, %5, %cst_42 {dimension_numbers = #tpu.dot_dimension_numbers<[1], [0], [0], [1], [0, 0, 1, 1], [], []>} : vector<8x32xf32>, vector<32x128xf32>, vector<8x128xf32> -> vector<8x128xf32>
    %207 = arith.addf %205, %206 : vector<8x128xf32>
    %208 = vector.extract_strided_slice %207 {offsets = [0, 0], sizes = [8, 96], strides = [1, 1]} : vector<8x128xf32> to vector<8x96xf32>
    %209 = arith.negf %208 : vector<8x96xf32>
    %210 = math.exp %209 : vector<8x96xf32>
    %cst_43 = arith.constant 1.000000e+00 : f32
    %211 = vector.broadcast %cst_43 : f32 to vector<8x96xf32>
    %212 = arith.addf %211, %210 : vector<8x96xf32>
    %213 = arith.divf %211, %212 : vector<8x96xf32>
    %214 = vector.extract_strided_slice %207 {offsets = [0, 96], sizes = [8, 32], strides = [1, 1]} : vector<8x128xf32> to vector<8x32xf32>
    %215 = math.tanh %214 : vector<8x32xf32>
    %216 = vector.extract_strided_slice %213 {offsets = [0, 0], sizes = [8, 32], strides = [1, 1]} : vector<8x96xf32> to vector<8x32xf32>
    %217 = vector.extract_strided_slice %213 {offsets = [0, 32], sizes = [8, 32], strides = [1, 1]} : vector<8x96xf32> to vector<8x32xf32>
    %218 = vector.extract_strided_slice %213 {offsets = [0, 64], sizes = [8, 32], strides = [1, 1]} : vector<8x96xf32> to vector<8x32xf32>
    %219 = arith.mulf %217, %202 : vector<8x32xf32>
    %220 = arith.mulf %216, %215 : vector<8x32xf32>
    %221 = arith.addf %219, %220 : vector<8x32xf32>
    %222 = math.tanh %221 : vector<8x32xf32>
    %223 = arith.mulf %218, %222 : vector<8x32xf32>
    %224 = vector.extract_strided_slice %25 {offsets = [16, 0], sizes = [8, 128], strides = [1, 1]} : vector<64x128xf32> to vector<8x128xf32>
    %cst_44 = arith.constant dense<0.000000e+00> : vector<8x128xf32>
    %225 = tpu.matmul %223, %5, %cst_44 {dimension_numbers = #tpu.dot_dimension_numbers<[1], [0], [0], [1], [0, 0, 1, 1], [], []>} : vector<8x32xf32>, vector<32x128xf32>, vector<8x128xf32> -> vector<8x128xf32>
    %226 = arith.addf %224, %225 : vector<8x128xf32>
    %227 = vector.extract_strided_slice %226 {offsets = [0, 0], sizes = [8, 96], strides = [1, 1]} : vector<8x128xf32> to vector<8x96xf32>
    %228 = arith.negf %227 : vector<8x96xf32>
    %229 = math.exp %228 : vector<8x96xf32>
    %cst_45 = arith.constant 1.000000e+00 : f32
    %230 = vector.broadcast %cst_45 : f32 to vector<8x96xf32>
    %231 = arith.addf %230, %229 : vector<8x96xf32>
    %232 = arith.divf %230, %231 : vector<8x96xf32>
    %233 = vector.extract_strided_slice %226 {offsets = [0, 96], sizes = [8, 32], strides = [1, 1]} : vector<8x128xf32> to vector<8x32xf32>
    %234 = math.tanh %233 : vector<8x32xf32>
    %235 = vector.extract_strided_slice %232 {offsets = [0, 0], sizes = [8, 32], strides = [1, 1]} : vector<8x96xf32> to vector<8x32xf32>
    %236 = vector.extract_strided_slice %232 {offsets = [0, 32], sizes = [8, 32], strides = [1, 1]} : vector<8x96xf32> to vector<8x32xf32>
    %237 = vector.extract_strided_slice %232 {offsets = [0, 64], sizes = [8, 32], strides = [1, 1]} : vector<8x96xf32> to vector<8x32xf32>
    %238 = arith.mulf %236, %221 : vector<8x32xf32>
    %239 = arith.mulf %235, %234 : vector<8x32xf32>
    %240 = arith.addf %238, %239 : vector<8x32xf32>
    %241 = math.tanh %240 : vector<8x32xf32>
    %242 = arith.mulf %237, %241 : vector<8x32xf32>
    %243 = vector.extract_strided_slice %25 {offsets = [24, 0], sizes = [8, 128], strides = [1, 1]} : vector<64x128xf32> to vector<8x128xf32>
    %cst_46 = arith.constant dense<0.000000e+00> : vector<8x128xf32>
    %244 = tpu.matmul %242, %5, %cst_46 {dimension_numbers = #tpu.dot_dimension_numbers<[1], [0], [0], [1], [0, 0, 1, 1], [], []>} : vector<8x32xf32>, vector<32x128xf32>, vector<8x128xf32> -> vector<8x128xf32>
    %245 = arith.addf %243, %244 : vector<8x128xf32>
    %246 = vector.extract_strided_slice %245 {offsets = [0, 0], sizes = [8, 96], strides = [1, 1]} : vector<8x128xf32> to vector<8x96xf32>
    %247 = arith.negf %246 : vector<8x96xf32>
    %248 = math.exp %247 : vector<8x96xf32>
    %cst_47 = arith.constant 1.000000e+00 : f32
    %249 = vector.broadcast %cst_47 : f32 to vector<8x96xf32>
    %250 = arith.addf %249, %248 : vector<8x96xf32>
    %251 = arith.divf %249, %250 : vector<8x96xf32>
    %252 = vector.extract_strided_slice %245 {offsets = [0, 96], sizes = [8, 32], strides = [1, 1]} : vector<8x128xf32> to vector<8x32xf32>
    %253 = math.tanh %252 : vector<8x32xf32>
    %254 = vector.extract_strided_slice %251 {offsets = [0, 0], sizes = [8, 32], strides = [1, 1]} : vector<8x96xf32> to vector<8x32xf32>
    %255 = vector.extract_strided_slice %251 {offsets = [0, 32], sizes = [8, 32], strides = [1, 1]} : vector<8x96xf32> to vector<8x32xf32>
    %256 = vector.extract_strided_slice %251 {offsets = [0, 64], sizes = [8, 32], strides = [1, 1]} : vector<8x96xf32> to vector<8x32xf32>
    %257 = arith.mulf %255, %240 : vector<8x32xf32>
    %258 = arith.mulf %254, %253 : vector<8x32xf32>
    %259 = arith.addf %257, %258 : vector<8x32xf32>
    %260 = math.tanh %259 : vector<8x32xf32>
    %261 = arith.mulf %256, %260 : vector<8x32xf32>
    %262 = vector.extract_strided_slice %25 {offsets = [32, 0], sizes = [8, 128], strides = [1, 1]} : vector<64x128xf32> to vector<8x128xf32>
    %cst_48 = arith.constant dense<0.000000e+00> : vector<8x128xf32>
    %263 = tpu.matmul %261, %5, %cst_48 {dimension_numbers = #tpu.dot_dimension_numbers<[1], [0], [0], [1], [0, 0, 1, 1], [], []>} : vector<8x32xf32>, vector<32x128xf32>, vector<8x128xf32> -> vector<8x128xf32>
    %264 = arith.addf %262, %263 : vector<8x128xf32>
    %265 = vector.extract_strided_slice %264 {offsets = [0, 0], sizes = [8, 96], strides = [1, 1]} : vector<8x128xf32> to vector<8x96xf32>
    %266 = arith.negf %265 : vector<8x96xf32>
    %267 = math.exp %266 : vector<8x96xf32>
    %cst_49 = arith.constant 1.000000e+00 : f32
    %268 = vector.broadcast %cst_49 : f32 to vector<8x96xf32>
    %269 = arith.addf %268, %267 : vector<8x96xf32>
    %270 = arith.divf %268, %269 : vector<8x96xf32>
    %271 = vector.extract_strided_slice %264 {offsets = [0, 96], sizes = [8, 32], strides = [1, 1]} : vector<8x128xf32> to vector<8x32xf32>
    %272 = math.tanh %271 : vector<8x32xf32>
    %273 = vector.extract_strided_slice %270 {offsets = [0, 0], sizes = [8, 32], strides = [1, 1]} : vector<8x96xf32> to vector<8x32xf32>
    %274 = vector.extract_strided_slice %270 {offsets = [0, 32], sizes = [8, 32], strides = [1, 1]} : vector<8x96xf32> to vector<8x32xf32>
    %275 = vector.extract_strided_slice %270 {offsets = [0, 64], sizes = [8, 32], strides = [1, 1]} : vector<8x96xf32> to vector<8x32xf32>
    %276 = arith.mulf %274, %259 : vector<8x32xf32>
    %277 = arith.mulf %273, %272 : vector<8x32xf32>
    %278 = arith.addf %276, %277 : vector<8x32xf32>
    %279 = math.tanh %278 : vector<8x32xf32>
    %280 = arith.mulf %275, %279 : vector<8x32xf32>
    %281 = vector.extract_strided_slice %25 {offsets = [40, 0], sizes = [8, 128], strides = [1, 1]} : vector<64x128xf32> to vector<8x128xf32>
    %cst_50 = arith.constant dense<0.000000e+00> : vector<8x128xf32>
    %282 = tpu.matmul %280, %5, %cst_50 {dimension_numbers = #tpu.dot_dimension_numbers<[1], [0], [0], [1], [0, 0, 1, 1], [], []>} : vector<8x32xf32>, vector<32x128xf32>, vector<8x128xf32> -> vector<8x128xf32>
    %283 = arith.addf %281, %282 : vector<8x128xf32>
    %284 = vector.extract_strided_slice %283 {offsets = [0, 0], sizes = [8, 96], strides = [1, 1]} : vector<8x128xf32> to vector<8x96xf32>
    %285 = arith.negf %284 : vector<8x96xf32>
    %286 = math.exp %285 : vector<8x96xf32>
    %cst_51 = arith.constant 1.000000e+00 : f32
    %287 = vector.broadcast %cst_51 : f32 to vector<8x96xf32>
    %288 = arith.addf %287, %286 : vector<8x96xf32>
    %289 = arith.divf %287, %288 : vector<8x96xf32>
    %290 = vector.extract_strided_slice %283 {offsets = [0, 96], sizes = [8, 32], strides = [1, 1]} : vector<8x128xf32> to vector<8x32xf32>
    %291 = math.tanh %290 : vector<8x32xf32>
    %292 = vector.extract_strided_slice %289 {offsets = [0, 0], sizes = [8, 32], strides = [1, 1]} : vector<8x96xf32> to vector<8x32xf32>
    %293 = vector.extract_strided_slice %289 {offsets = [0, 32], sizes = [8, 32], strides = [1, 1]} : vector<8x96xf32> to vector<8x32xf32>
    %294 = vector.extract_strided_slice %289 {offsets = [0, 64], sizes = [8, 32], strides = [1, 1]} : vector<8x96xf32> to vector<8x32xf32>
    %295 = arith.mulf %293, %278 : vector<8x32xf32>
    %296 = arith.mulf %292, %291 : vector<8x32xf32>
    %297 = arith.addf %295, %296 : vector<8x32xf32>
    %298 = math.tanh %297 : vector<8x32xf32>
    %299 = arith.mulf %294, %298 : vector<8x32xf32>
    %300 = vector.extract_strided_slice %25 {offsets = [48, 0], sizes = [8, 128], strides = [1, 1]} : vector<64x128xf32> to vector<8x128xf32>
    %cst_52 = arith.constant dense<0.000000e+00> : vector<8x128xf32>
    %301 = tpu.matmul %299, %5, %cst_52 {dimension_numbers = #tpu.dot_dimension_numbers<[1], [0], [0], [1], [0, 0, 1, 1], [], []>} : vector<8x32xf32>, vector<32x128xf32>, vector<8x128xf32> -> vector<8x128xf32>
    %302 = arith.addf %300, %301 : vector<8x128xf32>
    %303 = vector.extract_strided_slice %302 {offsets = [0, 0], sizes = [8, 96], strides = [1, 1]} : vector<8x128xf32> to vector<8x96xf32>
    %304 = arith.negf %303 : vector<8x96xf32>
    %305 = math.exp %304 : vector<8x96xf32>
    %cst_53 = arith.constant 1.000000e+00 : f32
    %306 = vector.broadcast %cst_53 : f32 to vector<8x96xf32>
    %307 = arith.addf %306, %305 : vector<8x96xf32>
    %308 = arith.divf %306, %307 : vector<8x96xf32>
    %309 = vector.extract_strided_slice %302 {offsets = [0, 96], sizes = [8, 32], strides = [1, 1]} : vector<8x128xf32> to vector<8x32xf32>
    %310 = math.tanh %309 : vector<8x32xf32>
    %311 = vector.extract_strided_slice %308 {offsets = [0, 0], sizes = [8, 32], strides = [1, 1]} : vector<8x96xf32> to vector<8x32xf32>
    %312 = vector.extract_strided_slice %308 {offsets = [0, 32], sizes = [8, 32], strides = [1, 1]} : vector<8x96xf32> to vector<8x32xf32>
    %313 = vector.extract_strided_slice %308 {offsets = [0, 64], sizes = [8, 32], strides = [1, 1]} : vector<8x96xf32> to vector<8x32xf32>
    %314 = arith.mulf %312, %297 : vector<8x32xf32>
    %315 = arith.mulf %311, %310 : vector<8x32xf32>
    %316 = arith.addf %314, %315 : vector<8x32xf32>
    %317 = math.tanh %316 : vector<8x32xf32>
    %318 = arith.mulf %313, %317 : vector<8x32xf32>
    %319 = vector.extract_strided_slice %25 {offsets = [56, 0], sizes = [8, 128], strides = [1, 1]} : vector<64x128xf32> to vector<8x128xf32>
    %cst_54 = arith.constant dense<0.000000e+00> : vector<8x128xf32>
    %320 = tpu.matmul %318, %5, %cst_54 {dimension_numbers = #tpu.dot_dimension_numbers<[1], [0], [0], [1], [0, 0, 1, 1], [], []>} : vector<8x32xf32>, vector<32x128xf32>, vector<8x128xf32> -> vector<8x128xf32>
    %321 = arith.addf %319, %320 : vector<8x128xf32>
    %322 = vector.extract_strided_slice %321 {offsets = [0, 0], sizes = [8, 96], strides = [1, 1]} : vector<8x128xf32> to vector<8x96xf32>
    %323 = arith.negf %322 : vector<8x96xf32>
    %324 = math.exp %323 : vector<8x96xf32>
    %cst_55 = arith.constant 1.000000e+00 : f32
    %325 = vector.broadcast %cst_55 : f32 to vector<8x96xf32>
    %326 = arith.addf %325, %324 : vector<8x96xf32>
    %327 = arith.divf %325, %326 : vector<8x96xf32>
    %328 = vector.extract_strided_slice %321 {offsets = [0, 96], sizes = [8, 32], strides = [1, 1]} : vector<8x128xf32> to vector<8x32xf32>
    %329 = math.tanh %328 : vector<8x32xf32>
    %330 = vector.extract_strided_slice %327 {offsets = [0, 0], sizes = [8, 32], strides = [1, 1]} : vector<8x96xf32> to vector<8x32xf32>
    %331 = vector.extract_strided_slice %327 {offsets = [0, 32], sizes = [8, 32], strides = [1, 1]} : vector<8x96xf32> to vector<8x32xf32>
    %332 = vector.extract_strided_slice %327 {offsets = [0, 64], sizes = [8, 32], strides = [1, 1]} : vector<8x96xf32> to vector<8x32xf32>
    %333 = arith.mulf %331, %316 : vector<8x32xf32>
    %334 = arith.mulf %330, %329 : vector<8x32xf32>
    %335 = arith.addf %333, %334 : vector<8x32xf32>
    %336 = math.tanh %335 : vector<8x32xf32>
    %337 = arith.mulf %332, %336 : vector<8x32xf32>
    %338 = arith.select %28, %337, %299 : vector<8x32xi1>, vector<8x32xf32>
    %339 = tpu.concatenate %183, %338 in 1 : vector<8x32xf32>, vector<8x32xf32> -> vector<8x64xf32>
    %340 = arith.mulf %339, %339 : vector<8x64xf32>
    %cst_56 = arith.constant dense<0.000000e+00> : vector<8xf32>
    %341 = vector.multi_reduction <add>, %340, %cst_56 [1] : vector<8x64xf32> to vector<8xf32>
    %342 = vector.shape_cast %341 : vector<8xf32> to vector<8x1xf32>
    %343 = math.rsqrt %342 : vector<8x1xf32>
    %344 = tpu.iota {dimensions = array<i32: 0>} : vector<8x1xi32>
    %c4_i32_57 = arith.constant 4 : i32
    %345 = vector.broadcast %c4_i32_57 : i32 to vector<8x1xi32>
    %346 = arith.cmpi slt, %344, %345 : vector<8x1xi32>
    %cst_58 = arith.constant 1.000000e+00 : f32
    %347 = vector.broadcast %cst_58 : f32 to vector<8x1xf32>
    %348 = arith.select %346, %347, %343 : vector<8x1xi1>, vector<8x1xf32>
    %349 = vector.broadcast %348 : vector<8x1xf32> to vector<8x64xf32>
    %350 = arith.mulf %339, %349 : vector<8x64xf32>
    %351 = vector.extract_strided_slice %350 {offsets = [0, 0], sizes = [4, 64], strides = [1, 1]} : vector<8x64xf32> to vector<4x64xf32>
    %352 = vector.extract_strided_slice %350 {offsets = [4, 0], sizes = [4, 64], strides = [1, 1]} : vector<8x64xf32> to vector<4x64xf32>
    %353 = tpu.concatenate %351, %352 in 1 : vector<4x64xf32>, vector<4x64xf32> -> vector<4x128xf32>
    %c0_59 = arith.constant 0 : index
    %c0_60 = arith.constant 0 : index
    %354 = vector.load %arg9[%c0_59, %c0_60] : memref<128x64xf32, #tpu.memory_space<vmem>>, vector<128x64xf32>
    %cst_61 = arith.constant dense<0.000000e+00> : vector<4x64xf32>
    %355 = tpu.matmul %353, %354, %cst_61 {dimension_numbers = #tpu.dot_dimension_numbers<[1], [0], [0], [1], [0, 0, 1, 1], [], []>} : vector<4x128xf32>, vector<128x64xf32>, vector<4x64xf32> -> vector<4x64xf32>
    %c0_62 = arith.constant 0 : index
    %c0_63 = arith.constant 0 : index
    %356 = vector.load %arg10[%c0_62, %c0_63] : memref<1x64xf32, #tpu.memory_space<vmem>>, vector<1x64xf32>
    %357 = vector.broadcast %356 : vector<1x64xf32> to vector<4x64xf32>
    %358 = arith.addf %355, %357 : vector<4x64xf32>
    %cst_64 = arith.constant 0.000000e+00 : f32
    %359 = vector.broadcast %cst_64 : f32 to vector<4x64xf32>
    %360 = arith.maximumf %358, %359 : vector<4x64xf32>
    %c0_65 = arith.constant 0 : index
    %c0_66 = arith.constant 0 : index
    %361 = vector.load %arg11[%c0_65, %c0_66] : memref<64x8xf32, #tpu.memory_space<vmem>>, vector<64x8xf32>
    %cst_67 = arith.constant dense<0.000000e+00> : vector<4x8xf32>
    %362 = tpu.matmul %360, %361, %cst_67 {dimension_numbers = #tpu.dot_dimension_numbers<[1], [0], [0], [1], [0, 0, 1, 1], [], []>} : vector<4x64xf32>, vector<64x8xf32>, vector<4x8xf32> -> vector<4x8xf32>
    %c0_68 = arith.constant 0 : index
    %c0_69 = arith.constant 0 : index
    %363 = vector.load %arg12[%c0_68, %c0_69] : memref<1x8xf32, #tpu.memory_space<vmem>>, vector<1x8xf32>
    %364 = vector.broadcast %363 : vector<1x8xf32> to vector<4x8xf32>
    %365 = arith.addf %362, %364 : vector<4x8xf32>
    %cst_70 = arith.constant dense<0xFF800000> : vector<4xf32>
    %366 = vector.multi_reduction <maximumf>, %365, %cst_70 [1] : vector<4x8xf32> to vector<4xf32>
    %367 = vector.shape_cast %366 : vector<4xf32> to vector<4x1xf32>
    %368 = vector.broadcast %367 : vector<4x1xf32> to vector<4x8xf32>
    %369 = arith.subf %365, %368 : vector<4x8xf32>
    %370 = math.exp %369 : vector<4x8xf32>
    %cst_71 = arith.constant dense<0.000000e+00> : vector<4xf32>
    %371 = vector.multi_reduction <add>, %370, %cst_71 [1] : vector<4x8xf32> to vector<4xf32>
    %372 = vector.shape_cast %371 : vector<4xf32> to vector<4x1xf32>
    %373 = math.log %372 : vector<4x1xf32>
    %374 = vector.broadcast %373 : vector<4x1xf32> to vector<4x8xf32>
    %375 = arith.subf %369, %374 : vector<4x8xf32>
    %c0_72 = arith.constant 0 : index
    %c0_73 = arith.constant 0 : index
    %376 = vector.load %arg13[%c0_72, %c0_73] : memref<4x8xf32, #tpu.memory_space<vmem>>, vector<4x8xf32>
    tpu.vector_store %arg13[%c0_72, %c0_73], %375 {strides = array<i32>} : memref<4x8xf32, #tpu.memory_space<vmem>>, vector<4x8xf32>,
    return
  }
}

</mosaic_0001>

<llo_original>
// kernel: fused_forward.1
$region0: #{fused_forward.1}
  #allocation0 [shape = 'u32[]', space=smem, size = 0x4, offset = 0x4, fixed_abs, tag = 'smem constant byte address 0x4 - core index']
  #allocation1 [shape = 'u32[144,128]{1,0:T(1,128)}', space=vmem, size = 0x12000, scoped, tag = 'internal scratch']
  %s0 = inlined_call_operand.vmem [shape: s32[64,1], index: 0, kind: input, shape index: {}]
  %s1 = inlined_call_operand.vmem [shape: s32[64,1], index: 1, kind: input, shape index: {}]
  %s2 = inlined_call_operand.vmem [shape: f32[128,32], index: 2, kind: input, shape index: {}]
  %s3 = inlined_call_operand.vmem [shape: f32[32,128], index: 3, kind: input, shape index: {}]
  %s4 = inlined_call_operand.vmem [shape: f32[32,128], index: 4, kind: input, shape index: {}]
  %s5 = inlined_call_operand.vmem [shape: f32[1,128], index: 5, kind: input, shape index: {}]
  %s6 = inlined_call_operand.vmem [shape: f32[32,128], index: 6, kind: input, shape index: {}]
  %s7 = inlined_call_operand.vmem [shape: f32[32,128], index: 7, kind: input, shape index: {}]
  %s8 = inlined_call_operand.vmem [shape: f32[1,128], index: 8, kind: input, shape index: {}]
  %s9 = inlined_call_operand.vmem [shape: f32[128,64], index: 9, kind: input, shape index: {}]
  %s10 = inlined_call_operand.vmem [shape: f32[1,64], index: 10, kind: input, shape index: {}]
  %s11 = inlined_call_operand.vmem [shape: f32[64,8], index: 11, kind: input, shape index: {}]
  %s12 = inlined_call_operand.vmem [shape: f32[1,8], index: 12, kind: input, shape index: {}]
  %s13 = inlined_call_operand.hbm [shape: f32[4,8], index: 13, kind: output, shape index: {}]
  %s14 = sld [smem:[#allocation0]]
  $region62: #{fused_forward.1} parent=0
    _
  %s16 = ssub.s32 1, %s14
  %s17 = scalar_select 0, %s16, %s14
  $region1: #{fused_forward.1} parent=0
    #allocation2 [shape = 'u8[2048]{0}', space=vmem, size = 0x800, scoped, tag = 'output window, operand 0, single buffered']
    #allocation3 [shape = 's32[1]{0}', space=sflag, size = 0x4, scoped, tag = 'scoped memory for fused_forward.1']
    %18 = vsyncpa [#allocation3], 0
    // Predicated region
    $region2: #{fused_forward.1} parent=1 // pred_check
      _
    $region3: #{fused_forward.1} parent=1 // pred_check_branch
      %20 = sbr.rel (0) target = $region5
    $region4: #{fused_forward.1} parent=1 // pred_region
      _
    $region5: #{fused_forward.1} parent=1 // pred_fallthru
      _
    // Predicated region
    $region6: #{fused_forward.1} parent=1 // pred_check
      _
    $region7: #{fused_forward.1} parent=1 // pred_check_branch
      %22 = sbr.rel (0) target = $region9
    $region8: #{fused_forward.1} parent=1 // pred_region
      _
    $region9: #{fused_forward.1} parent=1 // pred_fallthru
      _
    // Predicated region
    $region10: #{fused_forward.1} parent=1 // pred_check
      _
    $region11: #{fused_forward.1} parent=1 // pred_check_branch
      %24 = sbr.rel (0) target = $region13
    $region12: #{fused_forward.1} parent=1 // pred_region
      _
    $region13: #{fused_forward.1} parent=1 // pred_fallthru
      _
    // Predicated region
    $region14: #{fused_forward.1} parent=1 // pred_check
      _
    $region15: #{fused_forward.1} parent=1 // pred_check_branch
      %26 = sbr.rel (0) target = $region17
    $region16: #{fused_forward.1} parent=1 // pred_region
      _
    $region17: #{fused_forward.1} parent=1 // pred_fallthru
      _
    // Predicated region
    $region18: #{fused_forward.1} parent=1 // pred_check
      _
    $region19: #{fused_forward.1} parent=1 // pred_check_branch
      %28 = sbr.rel (0) target = $region21
    $region20: #{fused_forward.1} parent=1 // pred_region
      _
    $region21: #{fused_forward.1} parent=1 // pred_fallthru
      _
    // Predicated region
    $region22: #{fused_forward.1} parent=1 // pred_check
      _
    $region23: #{fused_forward.1} parent=1 // pred_check_branch
      %30 = sbr.rel (0) target = $region25
    $region24: #{fused_forward.1} parent=1 // pred_region
      _
    $region25: #{fused_forward.1} parent=1 // pred_fallthru
      _
    // Predicated region
    $region26: #{fused_forward.1} parent=1 // pred_check
      _
    $region27: #{fused_forward.1} parent=1 // pred_check_branch
      %32 = sbr.rel (0) target = $region29
    $region28: #{fused_forward.1} parent=1 // pred_region
      _
    $region29: #{fused_forward.1} parent=1 // pred_fallthru
      _
    // Predicated region
    $region30: #{fused_forward.1} parent=1 // pred_check
      _
    $region31: #{fused_forward.1} parent=1 // pred_check_branch
      %34 = sbr.rel (0) target = $region33
    $region32: #{fused_forward.1} parent=1 // pred_region
      _
    $region33: #{fused_forward.1} parent=1 // pred_fallthru
      _
    // Predicated region
    $region34: #{fused_forward.1} parent=1 // pred_check
      _
    $region35: #{fused_forward.1} parent=1 // pred_check_branch
      %36 = sbr.rel (0) target = $region37
    $region36: #{fused_forward.1} parent=1 // pred_region
      _
    $region37: #{fused_forward.1} parent=1 // pred_fallthru
      _
    // Predicated region
    $region38: #{fused_forward.1} parent=1 // pred_check
      _
    $region39: #{fused_forward.1} parent=1 // pred_check_branch
      %38 = sbr.rel (0) target = $region41
    $region40: #{fused_forward.1} parent=1 // pred_region
      _
    $region41: #{fused_forward.1} parent=1 // pred_fallthru
      _
    // Predicated region
    $region42: #{fused_forward.1} parent=1 // pred_check
      _
    $region43: #{fused_forward.1} parent=1 // pred_check_branch
      %40 = sbr.rel (0) target = $region45
    $region44: #{fused_forward.1} parent=1 // pred_region
      _
    $region45: #{fused_forward.1} parent=1 // pred_fallthru
      _
    // Predicated region
    $region46: #{fused_forward.1} parent=1 // pred_check
      _
    $region47: #{fused_forward.1} parent=1 // pred_check_branch
      %42 = sbr.rel (0) target = $region49
    $region48: #{fused_forward.1} parent=1 // pred_region
      _
    $region49: #{fused_forward.1} parent=1 // pred_fallthru
      _
    // Predicated region
    $region50: #{fused_forward.1} parent=1 // pred_check
      _
    $region51: #{fused_forward.1} parent=1 // pred_check_branch
      %44 = sbr.rel (0) target = $region53
    $region52: #{fused_forward.1} parent=1 // pred_region
      _
    $region53: #{fused_forward.1} parent=1 // pred_fallthru
      _
    %v45 = vld [vmem:[%s2] sm:$0xff]
    %v46 = vld [vmem:[%s2 + $0x8] sm:$0xff]
    %v47 = vld [vmem:[%s2 + $0x10] sm:$0xff]
    %v48 = vld [vmem:[%s2 + $0x18] sm:$0xff]
    %v49 = vld [vmem:[%s2 + $0x20] sm:$0xff]
    %v50 = vld [vmem:[%s2 + $0x28] sm:$0xff]
    %v51 = vld [vmem:[%s2 + $0x30] sm:$0xff]
    %v52 = vld [vmem:[%s2 + $0x38] sm:$0xff]
    %v53 = vld [vmem:[%s2 + $0x40] sm:$0xff]
    %v54 = vld [vmem:[%s2 + $0x48] sm:$0xff]
    %v55 = vld [vmem:[%s2 + $0x50] sm:$0xff]
    %v56 = vld [vmem:[%s2 + $0x58] sm:$0xff]
    %v57 = vld [vmem:[%s2 + $0x60] sm:$0xff]
    %v58 = vld [vmem:[%s2 + $0x68] sm:$0xff]
    %v59 = vld [vmem:[%s2 + $0x70] sm:$0xff]
    %v60 = vld [vmem:[%s2 + $0x78] sm:$0xff]
    %v61 = vld [vmem:[%s3] sm:$0xff]
    %v62 = vld [vmem:[%s3 + $0x8] sm:$0xff]
    %v63 = vld [vmem:[%s3 + $0x10] sm:$0xff]
    %v64 = vld [vmem:[%s3 + $0x18] sm:$0xff]
    %v65 = vld [vmem:[%s4] sm:$0xff]
    %v66 = vld [vmem:[%s4 + $0x8] sm:$0xff]
    %v67 = vld [vmem:[%s4 + $0x10] sm:$0xff]
    %v68 = vld [vmem:[%s4 + $0x18] sm:$0xff]
    %v69 = vld [vmem:[%s5] sm:$0x1]
    %v70 = vld [vmem:[%s6] sm:$0xff]
    %v71 = vld [vmem:[%s6 + $0x8] sm:$0xff]
    %v72 = vld [vmem:[%s6 + $0x10] sm:$0xff]
    %v73 = vld [vmem:[%s6 + $0x18] sm:$0xff]
    %v74 = vld [vmem:[%s7] sm:$0xff]
    %v75 = vld [vmem:[%s7 + $0x8] sm:$0xff]
    %v76 = vld [vmem:[%s7 + $0x10] sm:$0xff]
    %v77 = vld [vmem:[%s7 + $0x18] sm:$0xff]
    %v78 = vld [vmem:[%s8] sm:$0x1]
    %v79 = vld [vmem:[%s0] sm:$0xff]
    %v80 = vld [vmem:[%s0 + $0x8] sm:$0xff]
    %v81 = vld [vmem:[%s0 + $0x10] sm:$0xff]
    %v82 = vld [vmem:[%s0 + $0x18] sm:$0xff]
    %v83 = vld [vmem:[%s0 + $0x20] sm:$0xff]
    %v84 = vld [vmem:[%s0 + $0x28] sm:$0xff]
    %v85 = vld [vmem:[%s0 + $0x30] sm:$0xff]
    %v86 = vld [vmem:[%s0 + $0x38] sm:$0xff]
    %v87 = vld [vmem:[%s1] sm:$0xff]
    %v88 = vld [vmem:[%s1 + $0x8] sm:$0xff]
    %v89 = vld [vmem:[%s1 + $0x10] sm:$0xff]
    %v90 = vld [vmem:[%s1 + $0x18] sm:$0xff]
    %v91 = vld [vmem:[%s1 + $0x20] sm:$0xff]
    %v92 = vld [vmem:[%s1 + $0x28] sm:$0xff]
    %v93 = vld [vmem:[%s1 + $0x30] sm:$0xff]
    %v94 = vld [vmem:[%s1 + $0x38] sm:$0xff]
    %v95 = vlaneseq
    %v96 = vand.u32 %v95, 127
    %97 = vset.pattern.permute.xlu0 0
    %98 = vperm.xlu0 %97, %v79
    %v99 = vpop.permute.xlu0 %98
    %100 = vset.pattern.permute.xlu0 0
    %101 = vperm.xlu0 %100, %v80
    %v102 = vpop.permute.xlu0 %101
    %103 = vset.pattern.permute.xlu0 0
    %104 = vperm.xlu0 %103, %v81
    %v105 = vpop.permute.xlu0 %104
    %106 = vset.pattern.permute.xlu0 0
    %107 = vperm.xlu0 %106, %v82
    %v108 = vpop.permute.xlu0 %107
    %109 = vset.pattern.permute.xlu0 0
    %110 = vperm.xlu0 %109, %v83
    %v111 = vpop.permute.xlu0 %110
    %112 = vset.pattern.permute.xlu0 0
    %113 = vperm.xlu0 %112, %v84
    %v114 = vpop.permute.xlu0 %113
    %115 = vset.pattern.permute.xlu0 0
    %116 = vperm.xlu0 %115, %v85
    %v117 = vpop.permute.xlu0 %116
    %118 = vset.pattern.permute.xlu0 0
    %119 = vperm.xlu0 %118, %v86
    %v120 = vpop.permute.xlu0 %119
    %vm121 = vcmp.eq.s32.totalorder %v99, %v96
    %vm122 = vcmp.eq.s32.totalorder %v102, %v96
    %vm123 = vcmp.eq.s32.totalorder %v105, %v96
    %vm124 = vcmp.eq.s32.totalorder %v108, %v96
    %vm125 = vcmp.eq.s32.totalorder %v111, %v96
    %vm126 = vcmp.eq.s32.totalorder %v114, %v96
    %vm127 = vcmp.eq.s32.totalorder %v117, %v96
    %vm128 = vcmp.eq.s32.totalorder %v120, %v96
    %v129 = vsel %vm121, 1, 0
    %v130 = vsel %vm122, 1, 0
    %v131 = vsel %vm123, 1, 0
    %v132 = vsel %vm124, 1, 0
    %v133 = vsel %vm125, 1, 0
    %v134 = vsel %vm126, 1, 0
    %v135 = vsel %vm127, 1, 0
    %v136 = vsel %vm128, 1, 0
    %v137 = vcvt.s32.f32 %v129
    %v138 = vcvt.s32.f32 %v130
    %v139 = vcvt.s32.f32 %v131
    %v140 = vcvt.s32.f32 %v132
    %v141 = vcvt.s32.f32 %v133
    %v142 = vcvt.s32.f32 %v134
    %v143 = vcvt.s32.f32 %v135
    %v144 = vcvt.s32.f32 %v136
    %145 = vset.pattern.permute.xlu0 0
    %146 = vperm.xlu0 %145, %v87
    %v147 = vpop.permute.xlu0 %146
    %148 = vset.pattern.permute.xlu0 0
    %149 = vperm.xlu0 %148, %v88
    %v150 = vpop.permute.xlu0 %149
    %151 = vset.pattern.permute.xlu0 0
    %152 = vperm.xlu0 %151, %v89
    %v153 = vpop.permute.xlu0 %152
    %154 = vset.pattern.permute.xlu0 0
    %155 = vperm.xlu0 %154, %v90
    %v156 = vpop.permute.xlu0 %155
    %157 = vset.pattern.permute.xlu0 0
    %158 = vperm.xlu0 %157, %v91
    %v159 = vpop.permute.xlu0 %158
    %160 = vset.pattern.permute.xlu0 0
    %161 = vperm.xlu0 %160, %v92
    %v162 = vpop.permute.xlu0 %161
    %163 = vset.pattern.permute.xlu0 0
    %164 = vperm.xlu0 %163, %v93
    %v165 = vpop.permute.xlu0 %164
    %166 = vset.pattern.permute.xlu0 0
    %167 = vperm.xlu0 %166, %v94
    %v168 = vpop.permute.xlu0 %167
    %vm169 = vcmp.eq.s32.totalorder %v147, %v96
    %vm170 = vcmp.eq.s32.totalorder %v150, %v96
    %vm171 = vcmp.eq.s32.totalorder %v153, %v96
    %vm172 = vcmp.eq.s32.totalorder %v156, %v96
    %vm173 = vcmp.eq.s32.totalorder %v159, %v96
    %vm174 = vcmp.eq.s32.totalorder %v162, %v96
    %vm175 = vcmp.eq.s32.totalorder %v165, %v96
    %vm176 = vcmp.eq.s32.totalorder %v168, %v96
    %v177 = vsel %vm169, 1, 0
    %v178 = vsel %vm170, 1, 0
    %v179 = vsel %vm171, 1, 0
    %v180 = vsel %vm172, 1, 0
    %v181 = vsel %vm173, 1, 0
    %v182 = vsel %vm174, 1, 0
    %v183 = vsel %vm175, 1, 0
    %v184 = vsel %vm176, 1, 0
    %v185 = vcvt.s32.f32 %v177
    %v186 = vcvt.s32.f32 %v178
    %v187 = vcvt.s32.f32 %v179
    %v188 = vcvt.s32.f32 %v180
    %v189 = vcvt.s32.f32 %v181
    %v190 = vcvt.s32.f32 %v182
    %v191 = vcvt.s32.f32 %v183
    %v192 = vcvt.s32.f32 %v184
    %vm193 = vcmask 261120
    %v195 = vsel %vm193, %v45, 0
    %v198 = vsel %vm193, %v46, 0
    %v201 = vsel %vm193, %v47, 0
    %v204 = vsel %vm193, %v48, 0
    %v207 = vsel %vm193, %v49, 0
    %v210 = vsel %vm193, %v50, 0
    %v213 = vsel %vm193, %v51, 0
    %v216 = vsel %vm193, %v52, 0
    %v219 = vsel %vm193, %v53, 0
    %v222 = vsel %vm193, %v54, 0
    %v225 = vsel %vm193, %v55, 0
    %v228 = vsel %vm193, %v56, 0
    %v231 = vsel %vm193, %v57, 0
    %v234 = vsel %vm193, %v58, 0
    %v237 = vsel %vm193, %v59, 0
    %v240 = vsel %vm193, %v60, 0
    %242 = vmatprep.subr.mxu0 0.0
    %243 = vmatpush1.msra.mxu0 %v61
    %244 = vmatprep.subr.mxu0 0.0
    %245 = vmatpush1.msra.mxu0 %v62
    %246 = vmatprep.subr.mxu0 0.0
    %247 = vmatpush1.msra.mxu0 %v63
    %248 = vmatprep.subr.mxu0 0.0
    %249 = vmatpush1.msra.mxu0 %v64
    %250 = vmatprep.subr.mxu0 0.0
    %251 = vmatpush1.msra.mxu0 0.0
    %252 = vmatprep.subr.mxu0 0.0
    %253 = vmatpush1.msra.mxu0 0.0
    %254 = vmatprep.subr.mxu0 0.0
    %255 = vmatpush1.msra.mxu0 0.0
    %256 = vmatprep.subr.mxu0 0.0
    %257 = vmatpush1.msra.mxu0 0.0
    %258 = vmatprep.subr.mxu0 0.0
    %259 = vmatpush1.msra.mxu0 0.0
    %260 = vmatprep.subr.mxu0 0.0
    %261 = vmatpush1.msra.mxu0 0.0
    %262 = vmatprep.subr.mxu0 0.0
    %263 = vmatpush1.msra.mxu0 0.0
    %264 = vmatprep.subr.mxu0 0.0
    %265 = vmatpush1.msra.mxu0 0.0
    %266 = vmatprep.subr.mxu0 0.0
    %267 = vmatpush1.msra.mxu0 0.0
    %268 = vmatprep.subr.mxu0 0.0
    %269 = vmatpush1.msra.mxu0 0.0
    %270 = vmatprep.subr.mxu0 0.0
    %271 = vmatpush1.msra.mxu0 0.0
    %272 = vmatprep.subr.mxu0 0.0
    %273 = vmatpush1.msra.mxu0 0.0
    %274 = vmatprep.subr.mxu0 0.0
    %275 = vmatpush1.msra.mxu0 0.0
    %276 = vmatprep.subr.mxu0 0.0
    %277 = vmatpush1.msra.mxu0 0.0
    %278 = vmatprep.subr.mxu0 0.0
    %279 = vmatpush1.msra.mxu0 0.0
    %280 = vmatprep.subr.mxu0 0.0
    %281 = vmatpush1.msra.mxu0 0.0
    %282 = vmatprep.subr.mxu0 0.0
    %283 = vmatpush1.msra.mxu0 0.0
    %284 = vmatprep.subr.mxu0 0.0
    %285 = vmatpush1.msra.mxu0 0.0
    %286 = vmatprep.subr.mxu0 0.0
    %287 = vmatpush1.msra.mxu0 0.0
    %288 = vmatprep.subr.mxu0 0.0
    %289 = vmatpush1.msra.mxu0 0.0
    %290 = vmatprep.subr.mxu0 0.0
    %291 = vmatpush1.msra.mxu0 0.0
    %292 = vmatprep.subr.mxu0 0.0
    %293 = vmatpush1.msra.mxu0 0.0
    %294 = vmatprep.subr.mxu0 0.0
    %295 = vmatpush1.msra.mxu0 0.0
    %296 = vmatprep.subr.mxu0 0.0
    %297 = vmatpush1.msra.mxu0 0.0
    %298 = vmatprep.subr.mxu0 0.0
    %299 = vmatpush1.msra.mxu0 0.0
    %300 = vmatprep.subr.mxu0 0.0
    %301 = vmatpush1.msra.mxu0 0.0
    %302 = vmatprep.subr.mxu0 0.0
    %303 = vmatpush1.msra.mxu0 0.0
    %304 = vmatprep.subr.mxu0 0.0
    %305 = vmatpush1.msra.mxu0 0.0
    %306 = vmatprep.mubr.f32.mxu0 0.0
    %307 = vmatmul.mubr.f32.gmra.mrb[0].mxu0 %v195
    %v308 = vpop.f32.mrb[0].mxu0
    %v309 = vadd.f32 0.0, %v308
    %v310 = vpop.f32.mrb[0].mxu0
    %311 = vmatprep.mubr.f32.mxu0 0.0
    %312 = vmatmul.mubr.f32.gmra.mrb[0].mxu0 %v198
    %v313 = vpop.f32.mrb[0].mxu0
    %v314 = vadd.f32 0.0, %v313
    %v315 = vpop.f32.mrb[0].mxu0
    %316 = vmatprep.mubr.f32.mxu0 0.0
    %317 = vmatmul.mubr.f32.gmra.mrb[0].mxu0 %v201
    %v318 = vpop.f32.mrb[0].mxu0
    %v319 = vadd.f32 0.0, %v318
    %v320 = vpop.f32.mrb[0].mxu0
    %321 = vmatprep.mubr.f32.mxu0 0.0
    %322 = vmatmul.mubr.f32.gmra.mrb[0].mxu0 %v204
    %v323 = vpop.f32.mrb[0].mxu0
    %v324 = vadd.f32 0.0, %v323
    %v325 = vpop.f32.mrb[0].mxu0
    %326 = vmatprep.mubr.f32.mxu0 0.0
    %327 = vmatmul.mubr.f32.gmra.mrb[0].mxu0 %v207
    %v328 = vpop.f32.mrb[0].mxu0
    %v329 = vadd.f32 0.0, %v328
    %v330 = vpop.f32.mrb[0].mxu0
    %331 = vmatprep.mubr.f32.mxu0 0.0
    %332 = vmatmul.mubr.f32.gmra.mrb[0].mxu0 %v210
    %v333 = vpop.f32.mrb[0].mxu0
    %v334 = vadd.f32 0.0, %v333
    %v335 = vpop.f32.mrb[0].mxu0
    %336 = vmatprep.mubr.f32.mxu0 0.0
    %337 = vmatmul.mubr.f32.gmra.mrb[0].mxu0 %v213
    %v338 = vpop.f32.mrb[0].mxu0
    %v339 = vadd.f32 0.0, %v338
    %v340 = vpop.f32.mrb[0].mxu0
    %341 = vmatprep.mubr.f32.mxu0 0.0
    %342 = vmatmul.mubr.f32.gmra.mrb[0].mxu0 %v216
    %v343 = vpop.f32.mrb[0].mxu0
    %v344 = vadd.f32 0.0, %v343
    %v345 = vpop.f32.mrb[0].mxu0
    %346 = vmatprep.mubr.f32.mxu0 0.0
    %347 = vmatmul.mubr.f32.gmra.mrb[0].mxu0 %v219
    %v348 = vpop.f32.mrb[0].mxu0
    %v349 = vadd.f32 0.0, %v348
    %v350 = vpop.f32.mrb[0].mxu0
    %351 = vmatprep.mubr.f32.mxu0 0.0
    %352 = vmatmul.mubr.f32.gmra.mrb[0].mxu0 %v222
    %v353 = vpop.f32.mrb[0].mxu0
    %v354 = vadd.f32 0.0, %v353
    %v355 = vpop.f32.mrb[0].mxu0
    %356 = vmatprep.mubr.f32.mxu0 0.0
    %357 = vmatmul.mubr.f32.gmra.mrb[0].mxu0 %v225
    %v358 = vpop.f32.mrb[0].mxu0
    %v359 = vadd.f32 0.0, %v358
    %v360 = vpop.f32.mrb[0].mxu0
    %361 = vmatprep.mubr.f32.mxu0 0.0
    %362 = vmatmul.mubr.f32.gmra.mrb[0].mxu0 %v228
    %v363 = vpop.f32.mrb[0].mxu0
    %v364 = vadd.f32 0.0, %v363
    %v365 = vpop.f32.mrb[0].mxu0
    %366 = vmatprep.mubr.f32.mxu0 0.0
    %367 = vmatmul.mubr.f32.gmra.mrb[0].mxu0 %v231
    %v368 = vpop.f32.mrb[0].mxu0
    %v369 = vadd.f32 0.0, %v368
    %v370 = vpop.f32.mrb[0].mxu0
    %371 = vmatprep.mubr.f32.mxu0 0.0
    %372 = vmatmul.mubr.f32.gmra.mrb[0].mxu0 %v234
    %v373 = vpop.f32.mrb[0].mxu0
    %v374 = vadd.f32 0.0, %v373
    %v375 = vpop.f32.mrb[0].mxu0
    %376 = vmatprep.mubr.f32.mxu0 0.0
    %377 = vmatmul.mubr.f32.gmra.mrb[0].mxu0 %v237
    %v378 = vpop.f32.mrb[0].mxu0
    %v379 = vadd.f32 0.0, %v378
    %v380 = vpop.f32.mrb[0].mxu0
    %381 = vmatprep.mubr.f32.mxu0 0.0
    %382 = vmatmul.mubr.f32.gmra.mrb[0].mxu0 %v240
    %v383 = vpop.f32.mrb[0].mxu0
    %v384 = vadd.f32 0.0, %v383
    %v385 = vpop.f32.mrb[0].mxu0
    %386 = vdwg.mxu0
    %387 = vmatprep.subr.mxu0 0.0
    %388 = vmatpush1.msra.mxu0 %v70
    %389 = vmatprep.subr.mxu0 0.0
    %390 = vmatpush1.msra.mxu0 %v71
    %391 = vmatprep.subr.mxu0 0.0
    %392 = vmatpush1.msra.mxu0 %v72
    %393 = vmatprep.subr.mxu0 0.0
    %394 = vmatpush1.msra.mxu0 %v73
    %395 = vmatprep.subr.mxu0 0.0
    %396 = vmatpush1.msra.mxu0 0.0
    %397 = vmatprep.subr.mxu0 0.0
    %398 = vmatpush1.msra.mxu0 0.0
    %399 = vmatprep.subr.mxu0 0.0
    %400 = vmatpush1.msra.mxu0 0.0
    %401 = vmatprep.subr.mxu0 0.0
    %402 = vmatpush1.msra.mxu0 0.0
    %403 = vmatprep.subr.mxu0 0.0
    %404 = vmatpush1.msra.mxu0 0.0
    %405 = vmatprep.subr.mxu0 0.0
    %406 = vmatpush1.msra.mxu0 0.0
    %407 = vmatprep.subr.mxu0 0.0
    %408 = vmatpush1.msra.mxu0 0.0
    %409 = vmatprep.subr.mxu0 0.0
    %410 = vmatpush1.msra.mxu0 0.0
    %411 = vmatprep.subr.mxu0 0.0
    %412 = vmatpush1.msra.mxu0 0.0
    %413 = vmatprep.subr.mxu0 0.0
    %414 = vmatpush1.msra.mxu0 0.0
    %415 = vmatprep.subr.mxu0 0.0
    %416 = vmatpush1.msra.mxu0 0.0
    %417 = vmatprep.subr.mxu0 0.0
    %418 = vmatpush1.msra.mxu0 0.0
    %419 = vmatprep.subr.mxu0 0.0
    %420 = vmatpush1.msra.mxu0 0.0
    %421 = vmatprep.subr.mxu0 0.0
    %422 = vmatpush1.msra.mxu0 0.0
    %423 = vmatprep.subr.mxu0 0.0
    %424 = vmatpush1.msra.mxu0 0.0
    %425 = vmatprep.subr.mxu0 0.0
    %426 = vmatpush1.msra.mxu0 0.0
    %427 = vmatprep.subr.mxu0 0.0
    %428 = vmatpush1.msra.mxu0 0.0
    %429 = vmatprep.subr.mxu0 0.0
    %430 = vmatpush1.msra.mxu0 0.0
    %431 = vmatprep.subr.mxu0 0.0
    %432 = vmatpush1.msra.mxu0 0.0
    %433 = vmatprep.subr.mxu0 0.0
    %434 = vmatpush1.msra.mxu0 0.0
    %435 = vmatprep.subr.mxu0 0.0
    %436 = vmatpush1.msra.mxu0 0.0
    %437 = vmatprep.subr.mxu0 0.0
    %438 = vmatpush1.msra.mxu0 0.0
    %439 = vmatprep.subr.mxu0 0.0
    %440 = vmatpush1.msra.mxu0 0.0
    %441 = vmatprep.subr.mxu0 0.0
    %442 = vmatpush1.msra.mxu0 0.0
    %443 = vmatprep.subr.mxu0 0.0
    %444 = vmatpush1.msra.mxu0 0.0
    %445 = vmatprep.subr.mxu0 0.0
    %446 = vmatpush1.msra.mxu0 0.0
    %447 = vmatprep.subr.mxu0 0.0
    %448 = vmatpush1.msra.mxu0 0.0
    %449 = vmatprep.subr.mxu0 0.0
    %450 = vmatpush1.msra.mxu0 0.0
    %451 = vmatprep.mubr.f32.mxu0 0.0
    %452 = vmatmul.mubr.f32.gmra.mrb[0].mxu0 %v195
    %v453 = vpop.f32.mrb[0].mxu0
    %v454 = vadd.f32 0.0, %v453
    %v455 = vpop.f32.mrb[0].mxu0
    %456 = vmatprep.mubr.f32.mxu0 0.0
    %457 = vmatmul.mubr.f32.gmra.mrb[0].mxu0 %v198
    %v458 = vpop.f32.mrb[0].mxu0
    %v459 = vadd.f32 0.0, %v458
    %v460 = vpop.f32.mrb[0].mxu0
    %461 = vmatprep.mubr.f32.mxu0 0.0
    %462 = vmatmul.mubr.f32.gmra.mrb[0].mxu0 %v201
    %v463 = vpop.f32.mrb[0].mxu0
    %v464 = vadd.f32 0.0, %v463
    %v465 = vpop.f32.mrb[0].mxu0
    %466 = vmatprep.mubr.f32.mxu0 0.0
    %467 = vmatmul.mubr.f32.gmra.mrb[0].mxu0 %v204
    %v468 = vpop.f32.mrb[0].mxu0
    %v469 = vadd.f32 0.0, %v468
    %v470 = vpop.f32.mrb[0].mxu0
    %471 = vmatprep.mubr.f32.mxu0 0.0
    %472 = vmatmul.mubr.f32.gmra.mrb[0].mxu0 %v207
    %v473 = vpop.f32.mrb[0].mxu0
    %v474 = vadd.f32 0.0, %v473
    %v475 = vpop.f32.mrb[0].mxu0
    %476 = vmatprep.mubr.f32.mxu0 0.0
    %477 = vmatmul.mubr.f32.gmra.mrb[0].mxu0 %v210
    %v478 = vpop.f32.mrb[0].mxu0
    %v479 = vadd.f32 0.0, %v478
    %v480 = vpop.f32.mrb[0].mxu0
    %481 = vmatprep.mubr.f32.mxu0 0.0
    %482 = vmatmul.mubr.f32.gmra.mrb[0].mxu0 %v213
    %v483 = vpop.f32.mrb[0].mxu0
    %v484 = vadd.f32 0.0, %v483
    %v485 = vpop.f32.mrb[0].mxu0
    %486 = vmatprep.mubr.f32.mxu0 0.0
    %487 = vmatmul.mubr.f32.gmra.mrb[0].mxu0 %v216
    %v488 = vpop.f32.mrb[0].mxu0
    %v489 = vadd.f32 0.0, %v488
    %v490 = vpop.f32.mrb[0].mxu0
    %491 = vmatprep.mubr.f32.mxu0 0.0
    %492 = vmatmul.mubr.f32.gmra.mrb[0].mxu0 %v219
    %v493 = vpop.f32.mrb[0].mxu0
    %v494 = vadd.f32 0.0, %v493
    %v495 = vpop.f32.mrb[0].mxu0
    %496 = vmatprep.mubr.f32.mxu0 0.0
    %497 = vmatmul.mubr.f32.gmra.mrb[0].mxu0 %v222
    %v498 = vpop.f32.mrb[0].mxu0
    %v499 = vadd.f32 0.0, %v498
    %v500 = vpop.f32.mrb[0].mxu0
    %501 = vmatprep.mubr.f32.mxu0 0.0
    %502 = vmatmul.mubr.f32.gmra.mrb[0].mxu0 %v225
    %v503 = vpop.f32.mrb[0].mxu0
    %v504 = vadd.f32 0.0, %v503
    %v505 = vpop.f32.mrb[0].mxu0
    %506 = vmatprep.mubr.f32.mxu0 0.0
    %507 = vmatmul.mubr.f32.gmra.mrb[0].mxu0 %v228
    %v508 = vpop.f32.mrb[0].mxu0
    %v509 = vadd.f32 0.0, %v508
    %v510 = vpop.f32.mrb[0].mxu0
    %511 = vmatprep.mubr.f32.mxu0 0.0
    %512 = vmatmul.mubr.f32.gmra.mrb[0].mxu0 %v231
    %v513 = vpop.f32.mrb[0].mxu0
    %v514 = vadd.f32 0.0, %v513
    %v515 = vpop.f32.mrb[0].mxu0
    %516 = vmatprep.mubr.f32.mxu0 0.0
    %517 = vmatmul.mubr.f32.gmra.mrb[0].mxu0 %v234
    %v518 = vpop.f32.mrb[0].mxu0
    %v519 = vadd.f32 0.0, %v518
    %v520 = vpop.f32.mrb[0].mxu0
    %521 = vmatprep.mubr.f32.mxu0 0.0
    %522 = vmatmul.mubr.f32.gmra.mrb[0].mxu0 %v237
    %v523 = vpop.f32.mrb[0].mxu0
    %v524 = vadd.f32 0.0, %v523
    %v525 = vpop.f32.mrb[0].mxu0
    %526 = vmatprep.mubr.f32.mxu0 0.0
    %527 = vmatmul.mubr.f32.gmra.mrb[0].mxu0 %v240
    %v528 = vpop.f32.mrb[0].mxu0
    %v529 = vadd.f32 0.0, %v528
    %v530 = vpop.f32.mrb[0].mxu0
    %531 = vdwg.mxu0
    %v533 = vlaneseq
    %v534 = vshrl.u32 %v533, 7
    %v535 = vsub.s32 0, %v534
    %v536 = vrot.slane %v69, %v535
    %538 = vmatprep.subr.mxu0 0.0
    %539 = vmatpush1.msra.mxu0 %v309
    %540 = vmatprep.subr.mxu0 0.0
    %541 = vmatpush1.msra.mxu0 %v314
    %542 = vmatprep.subr.mxu0 0.0
    %543 = vmatpush1.msra.mxu0 %v319
    %544 = vmatprep.subr.mxu0 0.0
    %545 = vmatpush1.msra.mxu0 %v324
    %546 = vmatprep.subr.mxu0 0.0
    %547 = vmatpush1.msra.mxu0 %v329
    %548 = vmatprep.subr.mxu0 0.0
    %549 = vmatpush1.msra.mxu0 %v334
    %550 = vmatprep.subr.mxu0 0.0
    %551 = vmatpush1.msra.mxu0 %v339
    %552 = vmatprep.subr.mxu0 0.0
    %553 = vmatpush1.msra.mxu0 %v344
    %554 = vmatprep.subr.mxu0 0.0
    %555 = vmatpush1.msra.mxu0 %v349
    %556 = vmatprep.subr.mxu0 0.0
    %557 = vmatpush1.msra.mxu0 %v354
    %558 = vmatprep.subr.mxu0 0.0
    %559 = vmatpush1.msra.mxu0 %v359
    %560 = vmatprep.subr.mxu0 0.0
    %561 = vmatpush1.msra.mxu0 %v364
    %562 = vmatprep.subr.mxu0 0.0
    %563 = vmatpush1.msra.mxu0 %v369
    %564 = vmatprep.subr.mxu0 0.0
    %565 = vmatpush1.msra.mxu0 %v374
    %566 = vmatprep.subr.mxu0 0.0
    %567 = vmatpush1.msra.mxu0 %v379
    %568 = vmatprep.subr.mxu0 0.0
    %569 = vmatpush1.msra.mxu0 %v384
    %570 = vmatprep.subr.mxu0 0.0
    %571 = vmatpush1.msra.mxu0 0.0
    %572 = vmatprep.subr.mxu0 0.0
    %573 = vmatpush1.msra.mxu0 0.0
    %574 = vmatprep.subr.mxu0 0.0
    %575 = vmatpush1.msra.mxu0 0.0
    %576 = vmatprep.subr.mxu0 0.0
    %577 = vmatpush1.msra.mxu0 0.0
    %578 = vmatprep.subr.mxu0 0.0
    %579 = vmatpush1.msra.mxu0 0.0
    %580 = vmatprep.subr.mxu0 0.0
    %581 = vmatpush1.msra.mxu0 0.0
    %582 = vmatprep.subr.mxu0 0.0
    %583 = vmatpush1.msra.mxu0 0.0
    %584 = vmatprep.subr.mxu0 0.0
    %585 = vmatpush1.msra.mxu0 0.0
    %586 = vmatprep.subr.mxu0 0.0
    %587 = vmatpush1.msra.mxu0 0.0
    %588 = vmatprep.subr.mxu0 0.0
    %589 = vmatpush1.msra.mxu0 0.0
    %590 = vmatprep.subr.mxu0 0.0
    %591 = vmatpush1.msra.mxu0 0.0
    %592 = vmatprep.subr.mxu0 0.0
    %593 = vmatpush1.msra.mxu0 0.0
    %594 = vmatprep.subr.mxu0 0.0
    %595 = vmatpush1.msra.mxu0 0.0
    %596 = vmatprep.subr.mxu0 0.0
    %597 = vmatpush1.msra.mxu0 0.0
    %598 = vmatprep.subr.mxu0 0.0
    %599 = vmatpush1.msra.mxu0 0.0
    %600 = vmatprep.subr.mxu0 0.0
    %601 = vmatpush1.msra.mxu0 0.0
    %602 = vmatprep.mubr.f32.mxu0 0.0
    %603 = vmatmul.mubr.f32.gmra.mrb[0].mxu0 %v137
    %v604 = vpop.f32.mrb[0].mxu0
    %v605 = vadd.f32 %v536, %v604
    %v606 = vpop.f32.mrb[0].mxu0
    %607 = vmatprep.mubr.f32.mxu0 0.0
    %608 = vmatmul.mubr.f32.gmra.mrb[0].mxu0 %v138
    %v609 = vpop.f32.mrb[0].mxu0
    %v610 = vadd.f32 %v536, %v609
    %v611 = vpop.f32.mrb[0].mxu0
    %612 = vmatprep.mubr.f32.mxu0 0.0
    %613 = vmatmul.mubr.f32.gmra.mrb[0].mxu0 %v139
    %v614 = vpop.f32.mrb[0].mxu0
    %v615 = vadd.f32 %v536, %v614
    %v616 = vpop.f32.mrb[0].mxu0
    %617 = vmatprep.mubr.f32.mxu0 0.0
    %618 = vmatmul.mubr.f32.gmra.mrb[0].mxu0 %v140
    %v619 = vpop.f32.mrb[0].mxu0
    %v620 = vadd.f32 %v536, %v619
    %v621 = vpop.f32.mrb[0].mxu0
    %622 = vmatprep.mubr.f32.mxu0 0.0
    %623 = vmatmul.mubr.f32.gmra.mrb[0].mxu0 %v141
    %v624 = vpop.f32.mrb[0].mxu0
    %v625 = vadd.f32 %v536, %v624
    %v626 = vpop.f32.mrb[0].mxu0
    %627 = vmatprep.mubr.f32.mxu0 0.0
    %628 = vmatmul.mubr.f32.gmra.mrb[0].mxu0 %v142
    %v629 = vpop.f32.mrb[0].mxu0
    %v630 = vadd.f32 %v536, %v629
    %v631 = vpop.f32.mrb[0].mxu0
    %632 = vmatprep.mubr.f32.mxu0 0.0
    %633 = vmatmul.mubr.f32.gmra.mrb[0].mxu0 %v143
    %v634 = vpop.f32.mrb[0].mxu0
    %v635 = vadd.f32 %v536, %v634
    %v636 = vpop.f32.mrb[0].mxu0
    %637 = vmatprep.mubr.f32.mxu0 0.0
    %638 = vmatmul.mubr.f32.gmra.mrb[0].mxu0 %v144
    %v639 = vpop.f32.mrb[0].mxu0
    %v640 = vadd.f32 %v536, %v639
    %v641 = vpop.f32.mrb[0].mxu0
    %642 = vdwg.mxu0
    %v644 = vlaneseq
    %v645 = vshrl.u32 %v644, 7
    %v646 = vsub.s32 0, %v645
    %v647 = vrot.slane %v78, %v646
    %649 = vmatprep.subr.mxu0 0.0
    %650 = vmatpush1.msra.mxu0 %v454
    %651 = vmatprep.subr.mxu0 0.0
    %652 = vmatpush1.msra.mxu0 %v459
    %653 = vmatprep.subr.mxu0 0.0
    %654 = vmatpush1.msra.mxu0 %v464
    %655 = vmatprep.subr.mxu0 0.0
    %656 = vmatpush1.msra.mxu0 %v469
    %657 = vmatprep.subr.mxu0 0.0
    %658 = vmatpush1.msra.mxu0 %v474
    %659 = vmatprep.subr.mxu0 0.0
    %660 = vmatpush1.msra.mxu0 %v479
    %661 = vmatprep.subr.mxu0 0.0
    %662 = vmatpush1.msra.mxu0 %v484
    %663 = vmatprep.subr.mxu0 0.0
    %664 = vmatpush1.msra.mxu0 %v489
    %665 = vmatprep.subr.mxu0 0.0
    %666 = vmatpush1.msra.mxu0 %v494
    %667 = vmatprep.subr.mxu0 0.0
    %668 = vmatpush1.msra.mxu0 %v499
    %669 = vmatprep.subr.mxu0 0.0
    %670 = vmatpush1.msra.mxu0 %v504
    %671 = vmatprep.subr.mxu0 0.0
    %672 = vmatpush1.msra.mxu0 %v509
    %673 = vmatprep.subr.mxu0 0.0
    %674 = vmatpush1.msra.mxu0 %v514
    %675 = vmatprep.subr.mxu0 0.0
    %676 = vmatpush1.msra.mxu0 %v519
    %677 = vmatprep.subr.mxu0 0.0
    %678 = vmatpush1.msra.mxu0 %v524
    %679 = vmatprep.subr.mxu0 0.0
    %680 = vmatpush1.msra.mxu0 %v529
    %681 = vmatprep.subr.mxu0 0.0
    %682 = vmatpush1.msra.mxu0 0.0
    %683 = vmatprep.subr.mxu0 0.0
    %684 = vmatpush1.msra.mxu0 0.0
    %685 = vmatprep.subr.mxu0 0.0
    %686 = vmatpush1.msra.mxu0 0.0
    %687 = vmatprep.subr.mxu0 0.0
    %688 = vmatpush1.msra.mxu0 0.0
    %689 = vmatprep.subr.mxu0 0.0
    %690 = vmatpush1.msra.mxu0 0.0
    %691 = vmatprep.subr.mxu0 0.0
    %692 = vmatpush1.msra.mxu0 0.0
    %693 = vmatprep.subr.mxu0 0.0
    %694 = vmatpush1.msra.mxu0 0.0
    %695 = vmatprep.subr.mxu0 0.0
    %696 = vmatpush1.msra.mxu0 0.0
    %697 = vmatprep.subr.mxu0 0.0
    %698 = vmatpush1.msra.mxu0 0.0
    %699 = vmatprep.subr.mxu0 0.0
    %700 = vmatpush1.msra.mxu0 0.0
    %701 = vmatprep.subr.mxu0 0.0
    %702 = vmatpush1.msra.mxu0 0.0
    %703 = vmatprep.subr.mxu0 0.0
    %704 = vmatpush1.msra.mxu0 0.0
    %705 = vmatprep.subr.mxu0 0.0
    %706 = vmatpush1.msra.mxu0 0.0
    %707 = vmatprep.subr.mxu0 0.0
    %708 = vmatpush1.msra.mxu0 0.0
    %709 = vmatprep.subr.mxu0 0.0
    %710 = vmatpush1.msra.mxu0 0.0
    %711 = vmatprep.subr.mxu0 0.0
    %712 = vmatpush1.msra.mxu0 0.0
    %713 = vmatprep.mubr.f32.mxu0 0.0
    %714 = vmatmul.mubr.f32.gmra.mrb[0].mxu0 %v185
    %v715 = vpop.f32.mrb[0].mxu0
    %v716 = vadd.f32 %v647, %v715
    %v717 = vpop.f32.mrb[0].mxu0
    %718 = vmatprep.mubr.f32.mxu0 0.0
    %719 = vmatmul.mubr.f32.gmra.mrb[0].mxu0 %v186
    %v720 = vpop.f32.mrb[0].mxu0
    %v721 = vadd.f32 %v647, %v720
    %v722 = vpop.f32.mrb[0].mxu0
    %723 = vmatprep.mubr.f32.mxu0 0.0
    %724 = vmatmul.mubr.f32.gmra.mrb[0].mxu0 %v187
    %v725 = vpop.f32.mrb[0].mxu0
    %v726 = vadd.f32 %v647, %v725
    %v727 = vpop.f32.mrb[0].mxu0
    %728 = vmatprep.mubr.f32.mxu0 0.0
    %729 = vmatmul.mubr.f32.gmra.mrb[0].mxu0 %v188
    %v730 = vpop.f32.mrb[0].mxu0
    %v731 = vadd.f32 %v647, %v730
    %v732 = vpop.f32.mrb[0].mxu0
    %733 = vmatprep.mubr.f32.mxu0 0.0
    %734 = vmatmul.mubr.f32.gmra.mrb[0].mxu0 %v189
    %v735 = vpop.f32.mrb[0].mxu0
    %v736 = vadd.f32 %v647, %v735
    %v737 = vpop.f32.mrb[0].mxu0
    %738 = vmatprep.mubr.f32.mxu0 0.0
    %739 = vmatmul.mubr.f32.gmra.mrb[0].mxu0 %v190
    %v740 = vpop.f32.mrb[0].mxu0
    %v741 = vadd.f32 %v647, %v740
    %v742 = vpop.f32.mrb[0].mxu0
    %743 = vmatprep.mubr.f32.mxu0 0.0
    %744 = vmatmul.mubr.f32.gmra.mrb[0].mxu0 %v191
    %v745 = vpop.f32.mrb[0].mxu0
    %v746 = vadd.f32 %v647, %v745
    %v747 = vpop.f32.mrb[0].mxu0
    %748 = vmatprep.mubr.f32.mxu0 0.0
    %749 = vmatmul.mubr.f32.gmra.mrb[0].mxu0 %v192
    %v750 = vpop.f32.mrb[0].mxu0
    %v751 = vadd.f32 %v647, %v750
    %v752 = vpop.f32.mrb[0].mxu0
    %753 = vdwg.mxu0
    %v754 = vlaneseq
    %v755 = vshrl.u32 %v754, 7
    %vm756 = vcmp.lt.s32.totalorder %v755, 4
    %v758 = vsel %vm193, 0.0, 0
    %760 = vmatprep.subr.mxu0 0.0
    %761 = vmatpush1.msra.mxu0 %v65
    %762 = vmatprep.subr.mxu0 0.0
    %763 = vmatpush1.msra.mxu0 %v66
    %764 = vmatprep.subr.mxu0 0.0
    %765 = vmatpush1.msra.mxu0 %v67
    %766 = vmatprep.subr.mxu0 0.0
    %767 = vmatpush1.msra.mxu0 %v68
    %768 = vmatprep.subr.mxu0 0.0
    %769 = vmatpush1.msra.mxu0 0.0
    %770 = vmatprep.subr.mxu0 0.0
    %771 = vmatpush1.msra.mxu0 0.0
    %772 = vmatprep.subr.mxu0 0.0
    %773 = vmatpush1.msra.mxu0 0.0
    %774 = vmatprep.subr.mxu0 0.0
    %775 = vmatpush1.msra.mxu0 0.0
    %776 = vmatprep.subr.mxu0 0.0
    %777 = vmatpush1.msra.mxu0 0.0
    %778 = vmatprep.subr.mxu0 0.0
    %779 = vmatpush1.msra.mxu0 0.0
    %780 = vmatprep.subr.mxu0 0.0
    %781 = vmatpush1.msra.mxu0 0.0
    %782 = vmatprep.subr.mxu0 0.0
    %783 = vmatpush1.msra.mxu0 0.0
    %784 = vmatprep.subr.mxu0 0.0
    %785 = vmatpush1.msra.mxu0 0.0
    %786 = vmatprep.subr.mxu0 0.0
    %787 = vmatpush1.msra.mxu0 0.0
    %788 = vmatprep.subr.mxu0 0.0
    %789 = vmatpush1.msra.mxu0 0.0
    %790 = vmatprep.subr.mxu0 0.0
    %791 = vmatpush1.msra.mxu0 0.0
    %792 = vmatprep.subr.mxu0 0.0
    %793 = vmatpush1.msra.mxu0 0.0
    %794 = vmatprep.subr.mxu0 0.0
    %795 = vmatpush1.msra.mxu0 0.0
    %796 = vmatprep.subr.mxu0 0.0
    %797 = vmatpush1.msra.mxu0 0.0
    %798 = vmatprep.subr.mxu0 0.0
    %799 = vmatpush1.msra.mxu0 0.0
    %800 = vmatprep.subr.mxu0 0.0
    %801 = vmatpush1.msra.mxu0 0.0
    %802 = vmatprep.subr.mxu0 0.0
    %803 = vmatpush1.msra.mxu0 0.0
    %804 = vmatprep.subr.mxu0 0.0
    %805 = vmatpush1.msra.mxu0 0.0
    %806 = vmatprep.subr.mxu0 0.0
    %807 = vmatpush1.msra.mxu0 0.0
    %808 = vmatprep.subr.mxu0 0.0
    %809 = vmatpush1.msra.mxu0 0.0
    %810 = vmatprep.subr.mxu0 0.0
    %811 = vmatpush1.msra.mxu0 0.0
    %812 = vmatprep.subr.mxu0 0.0
    %813 = vmatpush1.msra.mxu0 0.0
    %814 = vmatprep.subr.mxu0 0.0
    %815 = vmatpush1.msra.mxu0 0.0
    %816 = vmatprep.subr.mxu0 0.0
    %817 = vmatpush1.msra.mxu0 0.0
    %818 = vmatprep.subr.mxu0 0.0
    %819 = vmatpush1.msra.mxu0 0.0
    %820 = vmatprep.subr.mxu0 0.0
    %821 = vmatpush1.msra.mxu0 0.0
    %822 = vmatprep.subr.mxu0 0.0
    %823 = vmatpush1.msra.mxu0 0.0
    %824 = vmatprep.mubr.f32.mxu0 0.0
    %825 = vmatmul.mubr.f32.gmra.mrb[0].mxu0 %v758
    %v826 = vpop.f32.mrb[0].mxu0
    %v827 = vadd.f32 0.0, %v826
    %v828 = vpop.f32.mrb[0].mxu0
    %829 = vdwg.mxu0
    %v830 = vadd.f32 %v605, %v827
    %v831 = vxor.u32 %v830, 2147483648
    %v832 = vmul.f32 %v831, 1.442695
    %v833 = vpow.pop %v832
    %v834 = vadd.f32 %v833, 1.0
    %v835 = vrcp.pop %v834
    %v836 = vmul.f32 1.0, %v835
    %v837 = vtanh.pop %v830
    %v838 = vmul.f32 %v836, 0.0
    %840 = vrot.lane.b32.xlu0 %v837, 32
    %v841 = vpop.permute.xlu0 %840
    %v843 = vmul.f32 %v836, %v841
    %845 = vrot.lane.b32.xlu0 %v843, 32
    %v846 = vpop.permute.xlu0 %845
    %v848 = vadd.f32 %v838, %v846
    %v849 = vtanh.pop %v848
    %851 = vrot.lane.b32.xlu0 %v849, 32
    %v852 = vpop.permute.xlu0 %851
    %v854 = vmul.f32 %v836, %v852
    %856 = vrot.lane.b32.xlu0 %v854, 64
    %v857 = vpop.permute.xlu0 %856
    %v858 = vsel %vm193, %v857, 0
    %860 = vmatprep.subr.mxu0 0.0
    %861 = vmatpush1.msra.mxu0 %v65
    %862 = vmatprep.subr.mxu0 0.0
    %863 = vmatpush1.msra.mxu0 %v66
    %864 = vmatprep.subr.mxu0 0.0
    %865 = vmatpush1.msra.mxu0 %v67
    %866 = vmatprep.subr.mxu0 0.0
    %867 = vmatpush1.msra.mxu0 %v68
    %868 = vmatprep.subr.mxu0 0.0
    %869 = vmatpush1.msra.mxu0 0.0
    %870 = vmatprep.subr.mxu0 0.0
    %871 = vmatpush1.msra.mxu0 0.0
    %872 = vmatprep.subr.mxu0 0.0
    %873 = vmatpush1.msra.mxu0 0.0
    %874 = vmatprep.subr.mxu0 0.0
    %875 = vmatpush1.msra.mxu0 0.0
    %876 = vmatprep.subr.mxu0 0.0
    %877 = vmatpush1.msra.mxu0 0.0
    %878 = vmatprep.subr.mxu0 0.0
    %879 = vmatpush1.msra.mxu0 0.0
    %880 = vmatprep.subr.mxu0 0.0
    %881 = vmatpush1.msra.mxu0 0.0
    %882 = vmatprep.subr.mxu0 0.0
    %883 = vmatpush1.msra.mxu0 0.0
    %884 = vmatprep.subr.mxu0 0.0
    %885 = vmatpush1.msra.mxu0 0.0
    %886 = vmatprep.subr.mxu0 0.0
    %887 = vmatpush1.msra.mxu0 0.0
    %888 = vmatprep.subr.mxu0 0.0
    %889 = vmatpush1.msra.mxu0 0.0
    %890 = vmatprep.subr.mxu0 0.0
    %891 = vmatpush1.msra.mxu0 0.0
    %892 = vmatprep.subr.mxu0 0.0
    %893 = vmatpush1.msra.mxu0 0.0
    %894 = vmatprep.subr.mxu0 0.0
    %895 = vmatpush1.msra.mxu0 0.0
    %896 = vmatprep.subr.mxu0 0.0
    %897 = vmatpush1.msra.mxu0 0.0
    %898 = vmatprep.subr.mxu0 0.0
    %899 = vmatpush1.msra.mxu0 0.0
    %900 = vmatprep.subr.mxu0 0.0
    %901 = vmatpush1.msra.mxu0 0.0
    %902 = vmatprep.subr.mxu0 0.0
    %903 = vmatpush1.msra.mxu0 0.0
    %904 = vmatprep.subr.mxu0 0.0
    %905 = vmatpush1.msra.mxu0 0.0
    %906 = vmatprep.subr.mxu0 0.0
    %907 = vmatpush1.msra.mxu0 0.0
    %908 = vmatprep.subr.mxu0 0.0
    %909 = vmatpush1.msra.mxu0 0.0
    %910 = vmatprep.subr.mxu0 0.0
    %911 = vmatpush1.msra.mxu0 0.0
    %912 = vmatprep.subr.mxu0 0.0
    %913 = vmatpush1.msra.mxu0 0.0
    %914 = vmatprep.subr.mxu0 0.0
    %915 = vmatpush1.msra.mxu0 0.0
    %916 = vmatprep.subr.mxu0 0.0
    %917 = vmatpush1.msra.mxu0 0.0
    %918 = vmatprep.subr.mxu0 0.0
    %919 = vmatpush1.msra.mxu0 0.0
    %920 = vmatprep.subr.mxu0 0.0
    %921 = vmatpush1.msra.mxu0 0.0
    %922 = vmatprep.subr.mxu0 0.0
    %923 = vmatpush1.msra.mxu0 0.0
    %924 = vmatprep.mubr.f32.mxu0 0.0
    %925 = vmatmul.mubr.f32.gmra.mrb[0].mxu0 %v858
    %v926 = vpop.f32.mrb[0].mxu0
    %v927 = vadd.f32 0.0, %v926
    %v928 = vpop.f32.mrb[0].mxu0
    %929 = vdwg.mxu0
    %v930 = vadd.f32 %v610, %v927
    %v931 = vxor.u32 %v930, 2147483648
    %v932 = vmul.f32 %v931, 1.442695
    %v933 = vpow.pop %v932
    %v934 = vadd.f32 %v933, 1.0
    %v935 = vrcp.pop %v934
    %v936 = vmul.f32 1.0, %v935
    %v937 = vtanh.pop %v930
    %v938 = vmul.f32 %v936, %v848
    %940 = vrot.lane.b32.xlu0 %v937, 32
    %v941 = vpop.permute.xlu0 %940
    %v943 = vmul.f32 %v936, %v941
    %945 = vrot.lane.b32.xlu0 %v943, 32
    %v946 = vpop.permute.xlu0 %945
    %v948 = vadd.f32 %v938, %v946
    %v949 = vtanh.pop %v948
    %951 = vrot.lane.b32.xlu0 %v949, 32
    %v952 = vpop.permute.xlu0 %951
    %v954 = vmul.f32 %v936, %v952
    %956 = vrot.lane.b32.xlu0 %v954, 64
    %v957 = vpop.permute.xlu0 %956
    %v958 = vsel %vm193, %v957, 0
    %960 = vmatprep.subr.mxu0 0.0
    %961 = vmatpush1.msra.mxu0 %v65
    %962 = vmatprep.subr.mxu0 0.0
    %963 = vmatpush1.msra.mxu0 %v66
    %964 = vmatprep.subr.mxu0 0.0
    %965 = vmatpush1.msra.mxu0 %v67
    %966 = vmatprep.subr.mxu0 0.0
    %967 = vmatpush1.msra.mxu0 %v68
    %968 = vmatprep.subr.mxu0 0.0
    %969 = vmatpush1.msra.mxu0 0.0
    %970 = vmatprep.subr.mxu0 0.0
    %971 = vmatpush1.msra.mxu0 0.0
    %972 = vmatprep.subr.mxu0 0.0
    %973 = vmatpush1.msra.mxu0 0.0
    %974 = vmatprep.subr.mxu0 0.0
    %975 = vmatpush1.msra.mxu0 0.0
    %976 = vmatprep.subr.mxu0 0.0
    %977 = vmatpush1.msra.mxu0 0.0
    %978 = vmatprep.subr.mxu0 0.0
    %979 = vmatpush1.msra.mxu0 0.0
    %980 = vmatprep.subr.mxu0 0.0
    %981 = vmatpush1.msra.mxu0 0.0
    %982 = vmatprep.subr.mxu0 0.0
    %983 = vmatpush1.msra.mxu0 0.0
    %984 = vmatprep.subr.mxu0 0.0
    %985 = vmatpush1.msra.mxu0 0.0
    %986 = vmatprep.subr.mxu0 0.0
    %987 = vmatpush1.msra.mxu0 0.0
    %988 = vmatprep.subr.mxu0 0.0
    %989 = vmatpush1.msra.mxu0 0.0
    %990 = vmatprep.subr.mxu0 0.0
    %991 = vmatpush1.msra.mxu0 0.0
    %992 = vmatprep.subr.mxu0 0.0
    %993 = vmatpush1.msra.mxu0 0.0
    %994 = vmatprep.subr.mxu0 0.0
    %995 = vmatpush1.msra.mxu0 0.0
    %996 = vmatprep.subr.mxu0 0.0
    %997 = vmatpush1.msra.mxu0 0.0
    %998 = vmatprep.subr.mxu0 0.0
    %999 = vmatpush1.msra.mxu0 0.0
    %1000 = vmatprep.subr.mxu0 0.0
    %1001 = vmatpush1.msra.mxu0 0.0
    %1002 = vmatprep.subr.mxu0 0.0
    %1003 = vmatpush1.msra.mxu0 0.0
    %1004 = vmatprep.subr.mxu0 0.0
    %1005 = vmatpush1.msra.mxu0 0.0
    %1006 = vmatprep.subr.mxu0 0.0
    %1007 = vmatpush1.msra.mxu0 0.0
    %1008 = vmatprep.subr.mxu0 0.0
    %1009 = vmatpush1.msra.mxu0 0.0
    %1010 = vmatprep.subr.mxu0 0.0
    %1011 = vmatpush1.msra.mxu0 0.0
    %1012 = vmatprep.subr.mxu0 0.0
    %1013 = vmatpush1.msra.mxu0 0.0
    %1014 = vmatprep.subr.mxu0 0.0
    %1015 = vmatpush1.msra.mxu0 0.0
    %1016 = vmatprep.subr.mxu0 0.0
    %1017 = vmatpush1.msra.mxu0 0.0
    %1018 = vmatprep.subr.mxu0 0.0
    %1019 = vmatpush1.msra.mxu0 0.0
    %1020 = vmatprep.subr.mxu0 0.0
    %1021 = vmatpush1.msra.mxu0 0.0
    %1022 = vmatprep.subr.mxu0 0.0
    %1023 = vmatpush1.msra.mxu0 0.0
    %1024 = vmatprep.mubr.f32.mxu0 0.0
    %1025 = vmatmul.mubr.f32.gmra.mrb[0].mxu0 %v958
    %v1026 = vpop.f32.mrb[0].mxu0
    %v1027 = vadd.f32 0.0, %v1026
    %v1028 = vpop.f32.mrb[0].mxu0
    %1029 = vdwg.mxu0
    %v1030 = vadd.f32 %v615, %v1027
    %v1031 = vxor.u32 %v1030, 2147483648
    %v1032 = vmul.f32 %v1031, 1.442695
    %v1033 = vpow.pop %v1032
    %v1034 = vadd.f32 %v1033, 1.0
    %v1035 = vrcp.pop %v1034
    %v1036 = vmul.f32 1.0, %v1035
    %v1037 = vtanh.pop %v1030
    %v1038 = vmul.f32 %v1036, %v948
    %1040 = vrot.lane.b32.xlu0 %v1037, 32
    %v1041 = vpop.permute.xlu0 %1040
    %v1043 = vmul.f32 %v1036, %v1041
    %1045 = vrot.lane.b32.xlu0 %v1043, 32
    %v1046 = vpop.permute.xlu0 %1045
    %v1048 = vadd.f32 %v1038, %v1046
    %v1049 = vtanh.pop %v1048
    %1051 = vrot.lane.b32.xlu0 %v1049, 32
    %v1052 = vpop.permute.xlu0 %1051
    %v1054 = vmul.f32 %v1036, %v1052
    %1056 = vrot.lane.b32.xlu0 %v1054, 64
    %v1057 = vpop.permute.xlu0 %1056
    %v1058 = vsel %vm193, %v1057, 0
    %1060 = vmatprep.subr.mxu0 0.0
    %1061 = vmatpush1.msra.mxu0 %v65
    %1062 = vmatprep.subr.mxu0 0.0
    %1063 = vmatpush1.msra.mxu0 %v66
    %1064 = vmatprep.subr.mxu0 0.0
    %1065 = vmatpush1.msra.mxu0 %v67
    %1066 = vmatprep.subr.mxu0 0.0
    %1067 = vmatpush1.msra.mxu0 %v68
    %1068 = vmatprep.subr.mxu0 0.0
    %1069 = vmatpush1.msra.mxu0 0.0
    %1070 = vmatprep.subr.mxu0 0.0
    %1071 = vmatpush1.msra.mxu0 0.0
    %1072 = vmatprep.subr.mxu0 0.0
    %1073 = vmatpush1.msra.mxu0 0.0
    %1074 = vmatprep.subr.mxu0 0.0
    %1075 = vmatpush1.msra.mxu0 0.0
    %1076 = vmatprep.subr.mxu0 0.0
    %1077 = vmatpush1.msra.mxu0 0.0
    %1078 = vmatprep.subr.mxu0 0.0
    %1079 = vmatpush1.msra.mxu0 0.0
    %1080 = vmatprep.subr.mxu0 0.0
    %1081 = vmatpush1.msra.mxu0 0.0
    %1082 = vmatprep.subr.mxu0 0.0
    %1083 = vmatpush1.msra.mxu0 0.0
    %1084 = vmatprep.subr.mxu0 0.0
    %1085 = vmatpush1.msra.mxu0 0.0
    %1086 = vmatprep.subr.mxu0 0.0
    %1087 = vmatpush1.msra.mxu0 0.0
    %1088 = vmatprep.subr.mxu0 0.0
    %1089 = vmatpush1.msra.mxu0 0.0
    %1090 = vmatprep.subr.mxu0 0.0
    %1091 = vmatpush1.msra.mxu0 0.0
    %1092 = vmatprep.subr.mxu0 0.0
    %1093 = vmatpush1.msra.mxu0 0.0
    %1094 = vmatprep.subr.mxu0 0.0
    %1095 = vmatpush1.msra.mxu0 0.0
    %1096 = vmatprep.subr.mxu0 0.0
    %1097 = vmatpush1.msra.mxu0 0.0
    %1098 = vmatprep.subr.mxu0 0.0
    %1099 = vmatpush1.msra.mxu0 0.0
    %1100 = vmatprep.subr.mxu0 0.0
    %1101 = vmatpush1.msra.mxu0 0.0
    %1102 = vmatprep.subr.mxu0 0.0
    %1103 = vmatpush1.msra.mxu0 0.0
    %1104 = vmatprep.subr.mxu0 0.0
    %1105 = vmatpush1.msra.mxu0 0.0
    %1106 = vmatprep.subr.mxu0 0.0
    %1107 = vmatpush1.msra.mxu0 0.0
    %1108 = vmatprep.subr.mxu0 0.0
    %1109 = vmatpush1.msra.mxu0 0.0
    %1110 = vmatprep.subr.mxu0 0.0
    %1111 = vmatpush1.msra.mxu0 0.0
    %1112 = vmatprep.subr.mxu0 0.0
    %1113 = vmatpush1.msra.mxu0 0.0
    %1114 = vmatprep.subr.mxu0 0.0
    %1115 = vmatpush1.msra.mxu0 0.0
    %1116 = vmatprep.subr.mxu0 0.0
    %1117 = vmatpush1.msra.mxu0 0.0
    %1118 = vmatprep.subr.mxu0 0.0
    %1119 = vmatpush1.msra.mxu0 0.0
    %1120 = vmatprep.subr.mxu0 0.0
    %1121 = vmatpush1.msra.mxu0 0.0
    %1122 = vmatprep.subr.mxu0 0.0
    %1123 = vmatpush1.msra.mxu0 0.0
    %1124 = vmatprep.mubr.f32.mxu0 0.0
    %1125 = vmatmul.mubr.f32.gmra.mrb[0].mxu0 %v1058
    %v1126 = vpop.f32.mrb[0].mxu0
    %v1127 = vadd.f32 0.0, %v1126
    %v1128 = vpop.f32.mrb[0].mxu0
    %1129 = vdwg.mxu0
    %v1130 = vadd.f32 %v620, %v1127
    %v1131 = vxor.u32 %v1130, 2147483648
    %v1132 = vmul.f32 %v1131, 1.442695
    %v1133 = vpow.pop %v1132
    %v1134 = vadd.f32 %v1133, 1.0
    %v1135 = vrcp.pop %v1134
    %v1136 = vmul.f32 1.0, %v1135
    %v1137 = vtanh.pop %v1130
    %v1138 = vmul.f32 %v1136, %v1048
    %1140 = vrot.lane.b32.xlu0 %v1137, 32
    %v1141 = vpop.permute.xlu0 %1140
    %v1143 = vmul.f32 %v1136, %v1141
    %1145 = vrot.lane.b32.xlu0 %v1143, 32
    %v1146 = vpop.permute.xlu0 %1145
    %v1148 = vadd.f32 %v1138, %v1146
    %v1149 = vtanh.pop %v1148
    %1151 = vrot.lane.b32.xlu0 %v1149, 32
    %v1152 = vpop.permute.xlu0 %1151
    %v1154 = vmul.f32 %v1136, %v1152
    %1156 = vrot.lane.b32.xlu0 %v1154, 64
    %v1157 = vpop.permute.xlu0 %1156
    %v1158 = vsel %vm193, %v1157, 0
    %1160 = vmatprep.subr.mxu0 0.0
    %1161 = vmatpush1.msra.mxu0 %v65
    %1162 = vmatprep.subr.mxu0 0.0
    %1163 = vmatpush1.msra.mxu0 %v66
    %1164 = vmatprep.subr.mxu0 0.0
    %1165 = vmatpush1.msra.mxu0 %v67
    %1166 = vmatprep.subr.mxu0 0.0
    %1167 = vmatpush1.msra.mxu0 %v68
    %1168 = vmatprep.subr.mxu0 0.0
    %1169 = vmatpush1.msra.mxu0 0.0
    %1170 = vmatprep.subr.mxu0 0.0
    %1171 = vmatpush1.msra.mxu0 0.0
    %1172 = vmatprep.subr.mxu0 0.0
    %1173 = vmatpush1.msra.mxu0 0.0
    %1174 = vmatprep.subr.mxu0 0.0
    %1175 = vmatpush1.msra.mxu0 0.0
    %1176 = vmatprep.subr.mxu0 0.0
    %1177 = vmatpush1.msra.mxu0 0.0
    %1178 = vmatprep.subr.mxu0 0.0
    %1179 = vmatpush1.msra.mxu0 0.0
    %1180 = vmatprep.subr.mxu0 0.0
    %1181 = vmatpush1.msra.mxu0 0.0
    %1182 = vmatprep.subr.mxu0 0.0
    %1183 = vmatpush1.msra.mxu0 0.0
    %1184 = vmatprep.subr.mxu0 0.0
    %1185 = vmatpush1.msra.mxu0 0.0
    %1186 = vmatprep.subr.mxu0 0.0
    %1187 = vmatpush1.msra.mxu0 0.0
    %1188 = vmatprep.subr.mxu0 0.0
    %1189 = vmatpush1.msra.mxu0 0.0
    %1190 = vmatprep.subr.mxu0 0.0
    %1191 = vmatpush1.msra.mxu0 0.0
    %1192 = vmatprep.subr.mxu0 0.0
    %1193 = vmatpush1.msra.mxu0 0.0
    %1194 = vmatprep.subr.mxu0 0.0
    %1195 = vmatpush1.msra.mxu0 0.0
    %1196 = vmatprep.subr.mxu0 0.0
    %1197 = vmatpush1.msra.mxu0 0.0
    %1198 = vmatprep.subr.mxu0 0.0
    %1199 = vmatpush1.msra.mxu0 0.0
    %1200 = vmatprep.subr.mxu0 0.0
    %1201 = vmatpush1.msra.mxu0 0.0
    %1202 = vmatprep.subr.mxu0 0.0
    %1203 = vmatpush1.msra.mxu0 0.0
    %1204 = vmatprep.subr.mxu0 0.0
    %1205 = vmatpush1.msra.mxu0 0.0
    %1206 = vmatprep.subr.mxu0 0.0
    %1207 = vmatpush1.msra.mxu0 0.0
    %1208 = vmatprep.subr.mxu0 0.0
    %1209 = vmatpush1.msra.mxu0 0.0
    %1210 = vmatprep.subr.mxu0 0.0
    %1211 = vmatpush1.msra.mxu0 0.0
    %1212 = vmatprep.subr.mxu0 0.0
    %1213 = vmatpush1.msra.mxu0 0.0
    %1214 = vmatprep.subr.mxu0 0.0
    %1215 = vmatpush1.msra.mxu0 0.0
    %1216 = vmatprep.subr.mxu0 0.0
    %1217 = vmatpush1.msra.mxu0 0.0
    %1218 = vmatprep.subr.mxu0 0.0
    %1219 = vmatpush1.msra.mxu0 0.0
    %1220 = vmatprep.subr.mxu0 0.0
    %1221 = vmatpush1.msra.mxu0 0.0
    %1222 = vmatprep.subr.mxu0 0.0
    %1223 = vmatpush1.msra.mxu0 0.0
    %1224 = vmatprep.mubr.f32.mxu0 0.0
    %1225 = vmatmul.mubr.f32.gmra.mrb[0].mxu0 %v1158
    %v1226 = vpop.f32.mrb[0].mxu0
    %v1227 = vadd.f32 0.0, %v1226
    %v1228 = vpop.f32.mrb[0].mxu0
    %1229 = vdwg.mxu0
    %v1230 = vadd.f32 %v625, %v1227
    %v1231 = vxor.u32 %v1230, 2147483648
    %v1232 = vmul.f32 %v1231, 1.442695
    %v1233 = vpow.pop %v1232
    %v1234 = vadd.f32 %v1233, 1.0
    %v1235 = vrcp.pop %v1234
    %v1236 = vmul.f32 1.0, %v1235
    %v1237 = vtanh.pop %v1230
    %v1238 = vmul.f32 %v1236, %v1148
    %1240 = vrot.lane.b32.xlu0 %v1237, 32
    %v1241 = vpop.permute.xlu0 %1240
    %v1243 = vmul.f32 %v1236, %v1241
    %1245 = vrot.lane.b32.xlu0 %v1243, 32
    %v1246 = vpop.permute.xlu0 %1245
    %v1248 = vadd.f32 %v1238, %v1246
    %v1249 = vtanh.pop %v1248
    %1251 = vrot.lane.b32.xlu0 %v1249, 32
    %v1252 = vpop.permute.xlu0 %1251
    %v1254 = vmul.f32 %v1236, %v1252
    %1256 = vrot.lane.b32.xlu0 %v1254, 64
    %v1257 = vpop.permute.xlu0 %1256
    %v1258 = vsel %vm193, %v1257, 0
    %1260 = vmatprep.subr.mxu0 0.0
    %1261 = vmatpush1.msra.mxu0 %v65
    %1262 = vmatprep.subr.mxu0 0.0
    %1263 = vmatpush1.msra.mxu0 %v66
    %1264 = vmatprep.subr.mxu0 0.0
    %1265 = vmatpush1.msra.mxu0 %v67
    %1266 = vmatprep.subr.mxu0 0.0
    %1267 = vmatpush1.msra.mxu0 %v68
    %1268 = vmatprep.subr.mxu0 0.0
    %1269 = vmatpush1.msra.mxu0 0.0
    %1270 = vmatprep.subr.mxu0 0.0
    %1271 = vmatpush1.msra.mxu0 0.0
    %1272 = vmatprep.subr.mxu0 0.0
    %1273 = vmatpush1.msra.mxu0 0.0
    %1274 = vmatprep.subr.mxu0 0.0
    %1275 = vmatpush1.msra.mxu0 0.0
    %1276 = vmatprep.subr.mxu0 0.0
    %1277 = vmatpush1.msra.mxu0 0.0
    %1278 = vmatprep.subr.mxu0 0.0
    %1279 = vmatpush1.msra.mxu0 0.0
    %1280 = vmatprep.subr.mxu0 0.0
    %1281 = vmatpush1.msra.mxu0 0.0
    %1282 = vmatprep.subr.mxu0 0.0
    %1283 = vmatpush1.msra.mxu0 0.0
    %1284 = vmatprep.subr.mxu0 0.0
    %1285 = vmatpush1.msra.mxu0 0.0
    %1286 = vmatprep.subr.mxu0 0.0
    %1287 = vmatpush1.msra.mxu0 0.0
    %1288 = vmatprep.subr.mxu0 0.0
    %1289 = vmatpush1.msra.mxu0 0.0
    %1290 = vmatprep.subr.mxu0 0.0
    %1291 = vmatpush1.msra.mxu0 0.0
    %1292 = vmatprep.subr.mxu0 0.0
    %1293 = vmatpush1.msra.mxu0 0.0
    %1294 = vmatprep.subr.mxu0 0.0
    %1295 = vmatpush1.msra.mxu0 0.0
    %1296 = vmatprep.subr.mxu0 0.0
    %1297 = vmatpush1.msra.mxu0 0.0
    %1298 = vmatprep.subr.mxu0 0.0
    %1299 = vmatpush1.msra.mxu0 0.0
    %1300 = vmatprep.subr.mxu0 0.0
    %1301 = vmatpush1.msra.mxu0 0.0
    %1302 = vmatprep.subr.mxu0 0.0
    %1303 = vmatpush1.msra.mxu0 0.0
    %1304 = vmatprep.subr.mxu0 0.0
    %1305 = vmatpush1.msra.mxu0 0.0
    %1306 = vmatprep.subr.mxu0 0.0
    %1307 = vmatpush1.msra.mxu0 0.0
    %1308 = vmatprep.subr.mxu0 0.0
    %1309 = vmatpush1.msra.mxu0 0.0
    %1310 = vmatprep.subr.mxu0 0.0
    %1311 = vmatpush1.msra.mxu0 0.0
    %1312 = vmatprep.subr.mxu0 0.0
    %1313 = vmatpush1.msra.mxu0 0.0
    %1314 = vmatprep.subr.mxu0 0.0
    %1315 = vmatpush1.msra.mxu0 0.0
    %1316 = vmatprep.subr.mxu0 0.0
    %1317 = vmatpush1.msra.mxu0 0.0
    %1318 = vmatprep.subr.mxu0 0.0
    %1319 = vmatpush1.msra.mxu0 0.0
    %1320 = vmatprep.subr.mxu0 0.0
    %1321 = vmatpush1.msra.mxu0 0.0
    %1322 = vmatprep.subr.mxu0 0.0
    %1323 = vmatpush1.msra.mxu0 0.0
    %1324 = vmatprep.mubr.f32.mxu0 0.0
    %1325 = vmatmul.mubr.f32.gmra.mrb[0].mxu0 %v1258
    %v1326 = vpop.f32.mrb[0].mxu0
    %v1327 = vadd.f32 0.0, %v1326
    %v1328 = vpop.f32.mrb[0].mxu0
    %1329 = vdwg.mxu0
    %v1330 = vadd.f32 %v630, %v1327
    %v1331 = vxor.u32 %v1330, 2147483648
    %v1332 = vmul.f32 %v1331, 1.442695
    %v1333 = vpow.pop %v1332
    %v1334 = vadd.f32 %v1333, 1.0
    %v1335 = vrcp.pop %v1334
    %v1336 = vmul.f32 1.0, %v1335
    %v1337 = vtanh.pop %v1330
    %v1338 = vmul.f32 %v1336, %v1248
    %1340 = vrot.lane.b32.xlu0 %v1337, 32
    %v1341 = vpop.permute.xlu0 %1340
    %v1343 = vmul.f32 %v1336, %v1341
    %1345 = vrot.lane.b32.xlu0 %v1343, 32
    %v1346 = vpop.permute.xlu0 %1345
    %v1348 = vadd.f32 %v1338, %v1346
    %v1349 = vtanh.pop %v1348
    %1351 = vrot.lane.b32.xlu0 %v1349, 32
    %v1352 = vpop.permute.xlu0 %1351
    %v1354 = vmul.f32 %v1336, %v1352
    %1356 = vrot.lane.b32.xlu0 %v1354, 64
    %v1357 = vpop.permute.xlu0 %1356
    %v1358 = vsel %vm193, %v1357, 0
    %1360 = vmatprep.subr.mxu0 0.0
    %1361 = vmatpush1.msra.mxu0 %v65
    %1362 = vmatprep.subr.mxu0 0.0
    %1363 = vmatpush1.msra.mxu0 %v66
    %1364 = vmatprep.subr.mxu0 0.0
    %1365 = vmatpush1.msra.mxu0 %v67
    %1366 = vmatprep.subr.mxu0 0.0
    %1367 = vmatpush1.msra.mxu0 %v68
    %1368 = vmatprep.subr.mxu0 0.0
    %1369 = vmatpush1.msra.mxu0 0.0
    %1370 = vmatprep.subr.mxu0 0.0
    %1371 = vmatpush1.msra.mxu0 0.0
    %1372 = vmatprep.subr.mxu0 0.0
    %1373 = vmatpush1.msra.mxu0 0.0
    %1374 = vmatprep.subr.mxu0 0.0
    %1375 = vmatpush1.msra.mxu0 0.0
    %1376 = vmatprep.subr.mxu0 0.0
    %1377 = vmatpush1.msra.mxu0 0.0
    %1378 = vmatprep.subr.mxu0 0.0
    %1379 = vmatpush1.msra.mxu0 0.0
    %1380 = vmatprep.subr.mxu0 0.0
    %1381 = vmatpush1.msra.mxu0 0.0
    %1382 = vmatprep.subr.mxu0 0.0
    %1383 = vmatpush1.msra.mxu0 0.0
    %1384 = vmatprep.subr.mxu0 0.0
    %1385 = vmatpush1.msra.mxu0 0.0
    %1386 = vmatprep.subr.mxu0 0.0
    %1387 = vmatpush1.msra.mxu0 0.0
    %1388 = vmatprep.subr.mxu0 0.0
    %1389 = vmatpush1.msra.mxu0 0.0
    %1390 = vmatprep.subr.mxu0 0.0
    %1391 = vmatpush1.msra.mxu0 0.0
    %1392 = vmatprep.subr.mxu0 0.0
    %1393 = vmatpush1.msra.mxu0 0.0
    %1394 = vmatprep.subr.mxu0 0.0
    %1395 = vmatpush1.msra.mxu0 0.0
    %1396 = vmatprep.subr.mxu0 0.0
    %1397 = vmatpush1.msra.mxu0 0.0
    %1398 = vmatprep.subr.mxu0 0.0
    %1399 = vmatpush1.msra.mxu0 0.0
    %1400 = vmatprep.subr.mxu0 0.0
    %1401 = vmatpush1.msra.mxu0 0.0
    %1402 = vmatprep.subr.mxu0 0.0
    %1403 = vmatpush1.msra.mxu0 0.0
    %1404 = vmatprep.subr.mxu0 0.0
    %1405 = vmatpush1.msra.mxu0 0.0
    %1406 = vmatprep.subr.mxu0 0.0
    %1407 = vmatpush1.msra.mxu0 0.0
    %1408 = vmatprep.subr.mxu0 0.0
    %1409 = vmatpush1.msra.mxu0 0.0
    %1410 = vmatprep.subr.mxu0 0.0
    %1411 = vmatpush1.msra.mxu0 0.0
    %1412 = vmatprep.subr.mxu0 0.0
    %1413 = vmatpush1.msra.mxu0 0.0
    %1414 = vmatprep.subr.mxu0 0.0
    %1415 = vmatpush1.msra.mxu0 0.0
    %1416 = vmatprep.subr.mxu0 0.0
    %1417 = vmatpush1.msra.mxu0 0.0
    %1418 = vmatprep.subr.mxu0 0.0
    %1419 = vmatpush1.msra.mxu0 0.0
    %1420 = vmatprep.subr.mxu0 0.0
    %1421 = vmatpush1.msra.mxu0 0.0
    %1422 = vmatprep.subr.mxu0 0.0
    %1423 = vmatpush1.msra.mxu0 0.0
    %1424 = vmatprep.mubr.f32.mxu0 0.0
    %1425 = vmatmul.mubr.f32.gmra.mrb[0].mxu0 %v1358
    %v1426 = vpop.f32.mrb[0].mxu0
    %v1427 = vadd.f32 0.0, %v1426
    %v1428 = vpop.f32.mrb[0].mxu0
    %1429 = vdwg.mxu0
    %v1430 = vadd.f32 %v635, %v1427
    %v1431 = vxor.u32 %v1430, 2147483648
    %v1432 = vmul.f32 %v1431, 1.442695
    %v1433 = vpow.pop %v1432
    %v1434 = vadd.f32 %v1433, 1.0
    %v1435 = vrcp.pop %v1434
    %v1436 = vmul.f32 1.0, %v1435
    %v1437 = vtanh.pop %v1430
    %v1438 = vmul.f32 %v1436, %v1348
    %1440 = vrot.lane.b32.xlu0 %v1437, 32
    %v1441 = vpop.permute.xlu0 %1440
    %v1443 = vmul.f32 %v1436, %v1441
    %1445 = vrot.lane.b32.xlu0 %v1443, 32
    %v1446 = vpop.permute.xlu0 %1445
    %v1448 = vadd.f32 %v1438, %v1446
    %v1449 = vtanh.pop %v1448
    %1451 = vrot.lane.b32.xlu0 %v1449, 32
    %v1452 = vpop.permute.xlu0 %1451
    %v1454 = vmul.f32 %v1436, %v1452
    %1456 = vrot.lane.b32.xlu0 %v1454, 64
    %v1457 = vpop.permute.xlu0 %1456
    %v1458 = vsel %vm193, %v1457, 0
    %1460 = vmatprep.subr.mxu0 0.0
    %1461 = vmatpush1.msra.mxu0 %v65
    %1462 = vmatprep.subr.mxu0 0.0
    %1463 = vmatpush1.msra.mxu0 %v66
    %1464 = vmatprep.subr.mxu0 0.0
    %1465 = vmatpush1.msra.mxu0 %v67
    %1466 = vmatprep.subr.mxu0 0.0
    %1467 = vmatpush1.msra.mxu0 %v68
    %1468 = vmatprep.subr.mxu0 0.0
    %1469 = vmatpush1.msra.mxu0 0.0
    %1470 = vmatprep.subr.mxu0 0.0
    %1471 = vmatpush1.msra.mxu0 0.0
    %1472 = vmatprep.subr.mxu0 0.0
    %1473 = vmatpush1.msra.mxu0 0.0
    %1474 = vmatprep.subr.mxu0 0.0
    %1475 = vmatpush1.msra.mxu0 0.0
    %1476 = vmatprep.subr.mxu0 0.0
    %1477 = vmatpush1.msra.mxu0 0.0
    %1478 = vmatprep.subr.mxu0 0.0
    %1479 = vmatpush1.msra.mxu0 0.0
    %1480 = vmatprep.subr.mxu0 0.0
    %1481 = vmatpush1.msra.mxu0 0.0
    %1482 = vmatprep.subr.mxu0 0.0
    %1483 = vmatpush1.msra.mxu0 0.0
    %1484 = vmatprep.subr.mxu0 0.0
    %1485 = vmatpush1.msra.mxu0 0.0
    %1486 = vmatprep.subr.mxu0 0.0
    %1487 = vmatpush1.msra.mxu0 0.0
    %1488 = vmatprep.subr.mxu0 0.0
    %1489 = vmatpush1.msra.mxu0 0.0
    %1490 = vmatprep.subr.mxu0 0.0
    %1491 = vmatpush1.msra.mxu0 0.0
    %1492 = vmatprep.subr.mxu0 0.0
    %1493 = vmatpush1.msra.mxu0 0.0
    %1494 = vmatprep.subr.mxu0 0.0
    %1495 = vmatpush1.msra.mxu0 0.0
    %1496 = vmatprep.subr.mxu0 0.0
    %1497 = vmatpush1.msra.mxu0 0.0
    %1498 = vmatprep.subr.mxu0 0.0
    %1499 = vmatpush1.msra.mxu0 0.0
    %1500 = vmatprep.subr.mxu0 0.0
    %1501 = vmatpush1.msra.mxu0 0.0
    %1502 = vmatprep.subr.mxu0 0.0
    %1503 = vmatpush1.msra.mxu0 0.0
    %1504 = vmatprep.subr.mxu0 0.0
    %1505 = vmatpush1.msra.mxu0 0.0
    %1506 = vmatprep.subr.mxu0 0.0
    %1507 = vmatpush1.msra.mxu0 0.0
    %1508 = vmatprep.subr.mxu0 0.0
    %1509 = vmatpush1.msra.mxu0 0.0
    %1510 = vmatprep.subr.mxu0 0.0
    %1511 = vmatpush1.msra.mxu0 0.0
    %1512 = vmatprep.subr.mxu0 0.0
    %1513 = vmatpush1.msra.mxu0 0.0
    %1514 = vmatprep.subr.mxu0 0.0
    %1515 = vmatpush1.msra.mxu0 0.0
    %1516 = vmatprep.subr.mxu0 0.0
    %1517 = vmatpush1.msra.mxu0 0.0
    %1518 = vmatprep.subr.mxu0 0.0
    %1519 = vmatpush1.msra.mxu0 0.0
    %1520 = vmatprep.subr.mxu0 0.0
    %1521 = vmatpush1.msra.mxu0 0.0
    %1522 = vmatprep.subr.mxu0 0.0
    %1523 = vmatpush1.msra.mxu0 0.0
    %1524 = vmatprep.mubr.f32.mxu0 0.0
    %1525 = vmatmul.mubr.f32.gmra.mrb[0].mxu0 %v1458
    %v1526 = vpop.f32.mrb[0].mxu0
    %v1527 = vadd.f32 0.0, %v1526
    %v1528 = vpop.f32.mrb[0].mxu0
    %1529 = vdwg.mxu0
    %v1530 = vadd.f32 %v640, %v1527
    %v1531 = vxor.u32 %v1530, 2147483648
    %v1532 = vmul.f32 %v1531, 1.442695
    %v1533 = vpow.pop %v1532
    %v1534 = vadd.f32 %v1533, 1.0
    %v1535 = vrcp.pop %v1534
    %v1536 = vmul.f32 1.0, %v1535
    %v1537 = vtanh.pop %v1530
    %v1538 = vmul.f32 %v1536, %v1448
    %1540 = vrot.lane.b32.xlu0 %v1537, 32
    %v1541 = vpop.permute.xlu0 %1540
    %v1543 = vmul.f32 %v1536, %v1541
    %1545 = vrot.lane.b32.xlu0 %v1543, 32
    %v1546 = vpop.permute.xlu0 %1545
    %v1548 = vadd.f32 %v1538, %v1546
    %v1549 = vtanh.pop %v1548
    %1551 = vrot.lane.b32.xlu0 %v1549, 32
    %v1552 = vpop.permute.xlu0 %1551
    %v1554 = vmul.f32 %v1536, %v1552
    %v1555 = vsel %vm756, %v1554, %v1354
    %1556 = vmatprep.subr.mxu0 0.0
    %1557 = vmatpush1.msra.mxu0 %v74
    %1558 = vmatprep.subr.mxu0 0.0
    %1559 = vmatpush1.msra.mxu0 %v75
    %1560 = vmatprep.subr.mxu0 0.0
    %1561 = vmatpush1.msra.mxu0 %v76
    %1562 = vmatprep.subr.mxu0 0.0
    %1563 = vmatpush1.msra.mxu0 %v77
    %1564 = vmatprep.subr.mxu0 0.0
    %1565 = vmatpush1.msra.mxu0 0.0
    %1566 = vmatprep.subr.mxu0 0.0
    %1567 = vmatpush1.msra.mxu0 0.0
    %1568 = vmatprep.subr.mxu0 0.0
    %1569 = vmatpush1.msra.mxu0 0.0
    %1570 = vmatprep.subr.mxu0 0.0
    %1571 = vmatpush1.msra.mxu0 0.0
    %1572 = vmatprep.subr.mxu0 0.0
    %1573 = vmatpush1.msra.mxu0 0.0
    %1574 = vmatprep.subr.mxu0 0.0
    %1575 = vmatpush1.msra.mxu0 0.0
    %1576 = vmatprep.subr.mxu0 0.0
    %1577 = vmatpush1.msra.mxu0 0.0
    %1578 = vmatprep.subr.mxu0 0.0
    %1579 = vmatpush1.msra.mxu0 0.0
    %1580 = vmatprep.subr.mxu0 0.0
    %1581 = vmatpush1.msra.mxu0 0.0
    %1582 = vmatprep.subr.mxu0 0.0
    %1583 = vmatpush1.msra.mxu0 0.0
    %1584 = vmatprep.subr.mxu0 0.0
    %1585 = vmatpush1.msra.mxu0 0.0
    %1586 = vmatprep.subr.mxu0 0.0
    %1587 = vmatpush1.msra.mxu0 0.0
    %1588 = vmatprep.subr.mxu0 0.0
    %1589 = vmatpush1.msra.mxu0 0.0
    %1590 = vmatprep.subr.mxu0 0.0
    %1591 = vmatpush1.msra.mxu0 0.0
    %1592 = vmatprep.subr.mxu0 0.0
    %1593 = vmatpush1.msra.mxu0 0.0
    %1594 = vmatprep.subr.mxu0 0.0
    %1595 = vmatpush1.msra.mxu0 0.0
    %1596 = vmatprep.subr.mxu0 0.0
    %1597 = vmatpush1.msra.mxu0 0.0
    %1598 = vmatprep.subr.mxu0 0.0
    %1599 = vmatpush1.msra.mxu0 0.0
    %1600 = vmatprep.subr.mxu0 0.0
    %1601 = vmatpush1.msra.mxu0 0.0
    %1602 = vmatprep.subr.mxu0 0.0
    %1603 = vmatpush1.msra.mxu0 0.0
    %1604 = vmatprep.subr.mxu0 0.0
    %1605 = vmatpush1.msra.mxu0 0.0
    %1606 = vmatprep.subr.mxu0 0.0
    %1607 = vmatpush1.msra.mxu0 0.0
    %1608 = vmatprep.subr.mxu0 0.0
    %1609 = vmatpush1.msra.mxu0 0.0
    %1610 = vmatprep.subr.mxu0 0.0
    %1611 = vmatpush1.msra.mxu0 0.0
    %1612 = vmatprep.subr.mxu0 0.0
    %1613 = vmatpush1.msra.mxu0 0.0
    %1614 = vmatprep.subr.mxu0 0.0
    %1615 = vmatpush1.msra.mxu0 0.0
    %1616 = vmatprep.subr.mxu0 0.0
    %1617 = vmatpush1.msra.mxu0 0.0
    %1618 = vmatprep.subr.mxu0 0.0
    %1619 = vmatpush1.msra.mxu0 0.0
    %1620 = vmatprep.mubr.f32.mxu0 0.0
    %1621 = vmatmul.mubr.f32.gmra.mrb[0].mxu0 %v758
    %v1622 = vpop.f32.mrb[0].mxu0
    %v1623 = vadd.f32 0.0, %v1622
    %v1624 = vpop.f32.mrb[0].mxu0
    %1625 = vdwg.mxu0
    %v1626 = vadd.f32 %v716, %v1623
    %v1627 = vxor.u32 %v1626, 2147483648
    %v1628 = vmul.f32 %v1627, 1.442695
    %v1629 = vpow.pop %v1628
    %v1630 = vadd.f32 %v1629, 1.0
    %v1631 = vrcp.pop %v1630
    %v1632 = vmul.f32 1.0, %v1631
    %v1633 = vtanh.pop %v1626
    %v1634 = vmul.f32 %v1632, 0.0
    %1636 = vrot.lane.b32.xlu0 %v1633, 32
    %v1637 = vpop.permute.xlu0 %1636
    %v1639 = vmul.f32 %v1632, %v1637
    %1641 = vrot.lane.b32.xlu0 %v1639, 32
    %v1642 = vpop.permute.xlu0 %1641
    %v1644 = vadd.f32 %v1634, %v1642
    %v1645 = vtanh.pop %v1644
    %1647 = vrot.lane.b32.xlu0 %v1645, 32
    %v1648 = vpop.permute.xlu0 %1647
    %v1650 = vmul.f32 %v1632, %v1648
    %1652 = vrot.lane.b32.xlu0 %v1650, 64
    %v1653 = vpop.permute.xlu0 %1652
    %v1654 = vsel %vm193, %v1653, 0
    %1656 = vmatprep.subr.mxu0 0.0
    %1657 = vmatpush1.msra.mxu0 %v74
    %1658 = vmatprep.subr.mxu0 0.0
    %1659 = vmatpush1.msra.mxu0 %v75
    %1660 = vmatprep.subr.mxu0 0.0
    %1661 = vmatpush1.msra.mxu0 %v76
    %1662 = vmatprep.subr.mxu0 0.0
    %1663 = vmatpush1.msra.mxu0 %v77
    %1664 = vmatprep.subr.mxu0 0.0
    %1665 = vmatpush1.msra.mxu0 0.0
    %1666 = vmatprep.subr.mxu0 0.0
    %1667 = vmatpush1.msra.mxu0 0.0
    %1668 = vmatprep.subr.mxu0 0.0
    %1669 = vmatpush1.msra.mxu0 0.0
    %1670 = vmatprep.subr.mxu0 0.0
    %1671 = vmatpush1.msra.mxu0 0.0
    %1672 = vmatprep.subr.mxu0 0.0
    %1673 = vmatpush1.msra.mxu0 0.0
    %1674 = vmatprep.subr.mxu0 0.0
    %1675 = vmatpush1.msra.mxu0 0.0
    %1676 = vmatprep.subr.mxu0 0.0
    %1677 = vmatpush1.msra.mxu0 0.0
    %1678 = vmatprep.subr.mxu0 0.0
    %1679 = vmatpush1.msra.mxu0 0.0
    %1680 = vmatprep.subr.mxu0 0.0
    %1681 = vmatpush1.msra.mxu0 0.0
    %1682 = vmatprep.subr.mxu0 0.0
    %1683 = vmatpush1.msra.mxu0 0.0
    %1684 = vmatprep.subr.mxu0 0.0
    %1685 = vmatpush1.msra.mxu0 0.0
    %1686 = vmatprep.subr.mxu0 0.0
    %1687 = vmatpush1.msra.mxu0 0.0
    %1688 = vmatprep.subr.mxu0 0.0
    %1689 = vmatpush1.msra.mxu0 0.0
    %1690 = vmatprep.subr.mxu0 0.0
    %1691 = vmatpush1.msra.mxu0 0.0
    %1692 = vmatprep.subr.mxu0 0.0
    %1693 = vmatpush1.msra.mxu0 0.0
    %1694 = vmatprep.subr.mxu0 0.0
    %1695 = vmatpush1.msra.mxu0 0.0
    %1696 = vmatprep.subr.mxu0 0.0
    %1697 = vmatpush1.msra.mxu0 0.0
    %1698 = vmatprep.subr.mxu0 0.0
    %1699 = vmatpush1.msra.mxu0 0.0
    %1700 = vmatprep.subr.mxu0 0.0
    %1701 = vmatpush1.msra.mxu0 0.0
    %1702 = vmatprep.subr.mxu0 0.0
    %1703 = vmatpush1.msra.mxu0 0.0
    %1704 = vmatprep.subr.mxu0 0.0
    %1705 = vmatpush1.msra.mxu0 0.0
    %1706 = vmatprep.subr.mxu0 0.0
    %1707 = vmatpush1.msra.mxu0 0.0
    %1708 = vmatprep.subr.mxu0 0.0
    %1709 = vmatpush1.msra.mxu0 0.0
    %1710 = vmatprep.subr.mxu0 0.0
    %1711 = vmatpush1.msra.mxu0 0.0
    %1712 = vmatprep.subr.mxu0 0.0
    %1713 = vmatpush1.msra.mxu0 0.0
    %1714 = vmatprep.subr.mxu0 0.0
    %1715 = vmatpush1.msra.mxu0 0.0
    %1716 = vmatprep.subr.mxu0 0.0
    %1717 = vmatpush1.msra.mxu0 0.0
    %1718 = vmatprep.subr.mxu0 0.0
    %1719 = vmatpush1.msra.mxu0 0.0
    %1720 = vmatprep.mubr.f32.mxu0 0.0
    %1721 = vmatmul.mubr.f32.gmra.mrb[0].mxu0 %v1654
    %v1722 = vpop.f32.mrb[0].mxu0
    %v1723 = vadd.f32 0.0, %v1722
    %v1724 = vpop.f32.mrb[0].mxu0
    %1725 = vdwg.mxu0
    %v1726 = vadd.f32 %v721, %v1723
    %v1727 = vxor.u32 %v1726, 2147483648
    %v1728 = vmul.f32 %v1727, 1.442695
    %v1729 = vpow.pop %v1728
    %v1730 = vadd.f32 %v1729, 1.0
    %v1731 = vrcp.pop %v1730
    %v1732 = vmul.f32 1.0, %v1731
    %v1733 = vtanh.pop %v1726
    %v1734 = vmul.f32 %v1732, %v1644
    %1736 = vrot.lane.b32.xlu0 %v1733, 32
    %v1737 = vpop.permute.xlu0 %1736
    %v1739 = vmul.f32 %v1732, %v1737
    %1741 = vrot.lane.b32.xlu0 %v1739, 32
    %v1742 = vpop.permute.xlu0 %1741
    %v1744 = vadd.f32 %v1734, %v1742
    %v1745 = vtanh.pop %v1744
    %1747 = vrot.lane.b32.xlu0 %v1745, 32
    %v1748 = vpop.permute.xlu0 %1747
    %v1750 = vmul.f32 %v1732, %v1748
    %1752 = vrot.lane.b32.xlu0 %v1750, 64
    %v1753 = vpop.permute.xlu0 %1752
    %v1754 = vsel %vm193, %v1753, 0
    %1756 = vmatprep.subr.mxu0 0.0
    %1757 = vmatpush1.msra.mxu0 %v74
    %1758 = vmatprep.subr.mxu0 0.0
    %1759 = vmatpush1.msra.mxu0 %v75
    %1760 = vmatprep.subr.mxu0 0.0
    %1761 = vmatpush1.msra.mxu0 %v76
    %1762 = vmatprep.subr.mxu0 0.0
    %1763 = vmatpush1.msra.mxu0 %v77
    %1764 = vmatprep.subr.mxu0 0.0
    %1765 = vmatpush1.msra.mxu0 0.0
    %1766 = vmatprep.subr.mxu0 0.0
    %1767 = vmatpush1.msra.mxu0 0.0
    %1768 = vmatprep.subr.mxu0 0.0
    %1769 = vmatpush1.msra.mxu0 0.0
    %1770 = vmatprep.subr.mxu0 0.0
    %1771 = vmatpush1.msra.mxu0 0.0
    %1772 = vmatprep.subr.mxu0 0.0
    %1773 = vmatpush1.msra.mxu0 0.0
    %1774 = vmatprep.subr.mxu0 0.0
    %1775 = vmatpush1.msra.mxu0 0.0
    %1776 = vmatprep.subr.mxu0 0.0
    %1777 = vmatpush1.msra.mxu0 0.0
    %1778 = vmatprep.subr.mxu0 0.0
    %1779 = vmatpush1.msra.mxu0 0.0
    %1780 = vmatprep.subr.mxu0 0.0
    %1781 = vmatpush1.msra.mxu0 0.0
    %1782 = vmatprep.subr.mxu0 0.0
    %1783 = vmatpush1.msra.mxu0 0.0
    %1784 = vmatprep.subr.mxu0 0.0
    %1785 = vmatpush1.msra.mxu0 0.0
    %1786 = vmatprep.subr.mxu0 0.0
    %1787 = vmatpush1.msra.mxu0 0.0
    %1788 = vmatprep.subr.mxu0 0.0
    %1789 = vmatpush1.msra.mxu0 0.0
    %1790 = vmatprep.subr.mxu0 0.0
    %1791 = vmatpush1.msra.mxu0 0.0
    %1792 = vmatprep.subr.mxu0 0.0
    %1793 = vmatpush1.msra.mxu0 0.0
    %1794 = vmatprep.subr.mxu0 0.0
    %1795 = vmatpush1.msra.mxu0 0.0
    %1796 = vmatprep.subr.mxu0 0.0
    %1797 = vmatpush1.msra.mxu0 0.0
    %1798 = vmatprep.subr.mxu0 0.0
    %1799 = vmatpush1.msra.mxu0 0.0
    %1800 = vmatprep.subr.mxu0 0.0
    %1801 = vmatpush1.msra.mxu0 0.0
    %1802 = vmatprep.subr.mxu0 0.0
    %1803 = vmatpush1.msra.mxu0 0.0
    %1804 = vmatprep.subr.mxu0 0.0
    %1805 = vmatpush1.msra.mxu0 0.0
    %1806 = vmatprep.subr.mxu0 0.0
    %1807 = vmatpush1.msra.mxu0 0.0
    %1808 = vmatprep.subr.mxu0 0.0
    %1809 = vmatpush1.msra.mxu0 0.0
    %1810 = vmatprep.subr.mxu0 0.0
    %1811 = vmatpush1.msra.mxu0 0.0
    %1812 = vmatprep.subr.mxu0 0.0
    %1813 = vmatpush1.msra.mxu0 0.0
    %1814 = vmatprep.subr.mxu0 0.0
    %1815 = vmatpush1.msra.mxu0 0.0
    %1816 = vmatprep.subr.mxu0 0.0
    %1817 = vmatpush1.msra.mxu0 0.0
    %1818 = vmatprep.subr.mxu0 0.0
    %1819 = vmatpush1.msra.mxu0 0.0
    %1820 = vmatprep.mubr.f32.mxu0 0.0
    %1821 = vmatmul.mubr.f32.gmra.mrb[0].mxu0 %v1754
    %v1822 = vpop.f32.mrb[0].mxu0
    %v1823 = vadd.f32 0.0, %v1822
    %v1824 = vpop.f32.mrb[0].mxu0
    %1825 = vdwg.mxu0
    %v1826 = vadd.f32 %v726, %v1823
    %v1827 = vxor.u32 %v1826, 2147483648
    %v1828 = vmul.f32 %v1827, 1.442695
    %v1829 = vpow.pop %v1828
    %v1830 = vadd.f32 %v1829, 1.0
    %v1831 = vrcp.pop %v1830
    %v1832 = vmul.f32 1.0, %v1831
    %v1833 = vtanh.pop %v1826
    %v1834 = vmul.f32 %v1832, %v1744
    %1836 = vrot.lane.b32.xlu0 %v1833, 32
    %v1837 = vpop.permute.xlu0 %1836
    %v1839 = vmul.f32 %v1832, %v1837
    %1841 = vrot.lane.b32.xlu0 %v1839, 32
    %v1842 = vpop.permute.xlu0 %1841
    %v1844 = vadd.f32 %v1834, %v1842
    %v1845 = vtanh.pop %v1844
    %1847 = vrot.lane.b32.xlu0 %v1845, 32
    %v1848 = vpop.permute.xlu0 %1847
    %v1850 = vmul.f32 %v1832, %v1848
    %1852 = vrot.lane.b32.xlu0 %v1850, 64
    %v1853 = vpop.permute.xlu0 %1852
    %v1854 = vsel %vm193, %v1853, 0
    %1856 = vmatprep.subr.mxu0 0.0
    %1857 = vmatpush1.msra.mxu0 %v74
    %1858 = vmatprep.subr.mxu0 0.0
    %1859 = vmatpush1.msra.mxu0 %v75
    %1860 = vmatprep.subr.mxu0 0.0
    %1861 = vmatpush1.msra.mxu0 %v76
    %1862 = vmatprep.subr.mxu0 0.0
    %1863 = vmatpush1.msra.mxu0 %v77
    %1864 = vmatprep.subr.mxu0 0.0
    %1865 = vmatpush1.msra.mxu0 0.0
    %1866 = vmatprep.subr.mxu0 0.0
    %1867 = vmatpush1.msra.mxu0 0.0
    %1868 = vmatprep.subr.mxu0 0.0
    %1869 = vmatpush1.msra.mxu0 0.0
    %1870 = vmatprep.subr.mxu0 0.0
    %1871 = vmatpush1.msra.mxu0 0.0
    %1872 = vmatprep.subr.mxu0 0.0
    %1873 = vmatpush1.msra.mxu0 0.0
    %1874 = vmatprep.subr.mxu0 0.0
    %1875 = vmatpush1.msra.mxu0 0.0
    %1876 = vmatprep.subr.mxu0 0.0
    %1877 = vmatpush1.msra.mxu0 0.0
    %1878 = vmatprep.subr.mxu0 0.0
    %1879 = vmatpush1.msra.mxu0 0.0
    %1880 = vmatprep.subr.mxu0 0.0
    %1881 = vmatpush1.msra.mxu0 0.0
    %1882 = vmatprep.subr.mxu0 0.0
    %1883 = vmatpush1.msra.mxu0 0.0
    %1884 = vmatprep.subr.mxu0 0.0
    %1885 = vmatpush1.msra.mxu0 0.0
    %1886 = vmatprep.subr.mxu0 0.0
    %1887 = vmatpush1.msra.mxu0 0.0
    %1888 = vmatprep.subr.mxu0 0.0
    %1889 = vmatpush1.msra.mxu0 0.0
    %1890 = vmatprep.subr.mxu0 0.0
    %1891 = vmatpush1.msra.mxu0 0.0
    %1892 = vmatprep.subr.mxu0 0.0
    %1893 = vmatpush1.msra.mxu0 0.0
    %1894 = vmatprep.subr.mxu0 0.0
    %1895 = vmatpush1.msra.mxu0 0.0
    %1896 = vmatprep.subr.mxu0 0.0
    %1897 = vmatpush1.msra.mxu0 0.0
    %1898 = vmatprep.subr.mxu0 0.0
    %1899 = vmatpush1.msra.mxu0 0.0
    %1900 = vmatprep.subr.mxu0 0.0
    %1901 = vmatpush1.msra.mxu0 0.0
    %1902 = vmatprep.subr.mxu0 0.0
    %1903 = vmatpush1.msra.mxu0 0.0
    %1904 = vmatprep.subr.mxu0 0.0
    %1905 = vmatpush1.msra.mxu0 0.0
    %1906 = vmatprep.subr.mxu0 0.0
    %1907 = vmatpush1.msra.mxu0 0.0
    %1908 = vmatprep.subr.mxu0 0.0
    %1909 = vmatpush1.msra.mxu0 0.0
    %1910 = vmatprep.subr.mxu0 0.0
    %1911 = vmatpush1.msra.mxu0 0.0
    %1912 = vmatprep.subr.mxu0 0.0
    %1913 = vmatpush1.msra.mxu0 0.0
    %1914 = vmatprep.subr.mxu0 0.0
    %1915 = vmatpush1.msra.mxu0 0.0
    %1916 = vmatprep.subr.mxu0 0.0
    %1917 = vmatpush1.msra.mxu0 0.0
    %1918 = vmatprep.subr.mxu0 0.0
    %1919 = vmatpush1.msra.mxu0 0.0
    %1920 = vmatprep.mubr.f32.mxu0 0.0
    %1921 = vmatmul.mubr.f32.gmra.mrb[0].mxu0 %v1854
    %v1922 = vpop.f32.mrb[0].mxu0
    %v1923 = vadd.f32 0.0, %v1922
    %v1924 = vpop.f32.mrb[0].mxu0
    %1925 = vdwg.mxu0
    %v1926 = vadd.f32 %v731, %v1923
    %v1927 = vxor.u32 %v1926, 2147483648
    %v1928 = vmul.f32 %v1927, 1.442695
    %v1929 = vpow.pop %v1928
    %v1930 = vadd.f32 %v1929, 1.0
    %v1931 = vrcp.pop %v1930
    %v1932 = vmul.f32 1.0, %v1931
    %v1933 = vtanh.pop %v1926
    %v1934 = vmul.f32 %v1932, %v1844
    %1936 = vrot.lane.b32.xlu0 %v1933, 32
    %v1937 = vpop.permute.xlu0 %1936
    %v1939 = vmul.f32 %v1932, %v1937
    %1941 = vrot.lane.b32.xlu0 %v1939, 32
    %v1942 = vpop.permute.xlu0 %1941
    %v1944 = vadd.f32 %v1934, %v1942
    %v1945 = vtanh.pop %v1944
    %1947 = vrot.lane.b32.xlu0 %v1945, 32
    %v1948 = vpop.permute.xlu0 %1947
    %v1950 = vmul.f32 %v1932, %v1948
    %1952 = vrot.lane.b32.xlu0 %v1950, 64
    %v1953 = vpop.permute.xlu0 %1952
    %v1954 = vsel %vm193, %v1953, 0
    %1956 = vmatprep.subr.mxu0 0.0
    %1957 = vmatpush1.msra.mxu0 %v74
    %1958 = vmatprep.subr.mxu0 0.0
    %1959 = vmatpush1.msra.mxu0 %v75
    %1960 = vmatprep.subr.mxu0 0.0
    %1961 = vmatpush1.msra.mxu0 %v76
    %1962 = vmatprep.subr.mxu0 0.0
    %1963 = vmatpush1.msra.mxu0 %v77
    %1964 = vmatprep.subr.mxu0 0.0
    %1965 = vmatpush1.msra.mxu0 0.0
    %1966 = vmatprep.subr.mxu0 0.0
    %1967 = vmatpush1.msra.mxu0 0.0
    %1968 = vmatprep.subr.mxu0 0.0
    %1969 = vmatpush1.msra.mxu0 0.0
    %1970 = vmatprep.subr.mxu0 0.0
    %1971 = vmatpush1.msra.mxu0 0.0
    %1972 = vmatprep.subr.mxu0 0.0
    %1973 = vmatpush1.msra.mxu0 0.0
    %1974 = vmatprep.subr.mxu0 0.0
    %1975 = vmatpush1.msra.mxu0 0.0
    %1976 = vmatprep.subr.mxu0 0.0
    %1977 = vmatpush1.msra.mxu0 0.0
    %1978 = vmatprep.subr.mxu0 0.0
    %1979 = vmatpush1.msra.mxu0 0.0
    %1980 = vmatprep.subr.mxu0 0.0
    %1981 = vmatpush1.msra.mxu0 0.0
    %1982 = vmatprep.subr.mxu0 0.0
    %1983 = vmatpush1.msra.mxu0 0.0
    %1984 = vmatprep.subr.mxu0 0.0
    %1985 = vmatpush1.msra.mxu0 0.0
    %1986 = vmatprep.subr.mxu0 0.0
    %1987 = vmatpush1.msra.mxu0 0.0
    %1988 = vmatprep.subr.mxu0 0.0
    %1989 = vmatpush1.msra.mxu0 0.0
    %1990 = vmatprep.subr.mxu0 0.0
    %1991 = vmatpush1.msra.mxu0 0.0
    %1992 = vmatprep.subr.mxu0 0.0
    %1993 = vmatpush1.msra.mxu0 0.0
    %1994 = vmatprep.subr.mxu0 0.0
    %1995 = vmatpush1.msra.mxu0 0.0
    %1996 = vmatprep.subr.mxu0 0.0
    %1997 = vmatpush1.msra.mxu0 0.0
    %1998 = vmatprep.subr.mxu0 0.0
    %1999 = vmatpush1.msra.mxu0 0.0
    %2000 = vmatprep.subr.mxu0 0.0
    %2001 = vmatpush1.msra.mxu0 0.0
    %2002 = vmatprep.subr.mxu0 0.0
    %2003 = vmatpush1.msra.mxu0 0.0
    %2004 = vmatprep.subr.mxu0 0.0
    %2005 = vmatpush1.msra.mxu0 0.0
    %2006 = vmatprep.subr.mxu0 0.0
    %2007 = vmatpush1.msra.mxu0 0.0
    %2008 = vmatprep.subr.mxu0 0.0
    %2009 = vmatpush1.msra.mxu0 0.0
    %2010 = vmatprep.subr.mxu0 0.0
    %2011 = vmatpush1.msra.mxu0 0.0
    %2012 = vmatprep.subr.mxu0 0.0
    %2013 = vmatpush1.msra.mxu0 0.0
    %2014 = vmatprep.subr.mxu0 0.0
    %2015 = vmatpush1.msra.mxu0 0.0
    %2016 = vmatprep.subr.mxu0 0.0
    %2017 = vmatpush1.msra.mxu0 0.0
    %2018 = vmatprep.subr.mxu0 0.0
    %2019 = vmatpush1.msra.mxu0 0.0
    %2020 = vmatprep.mubr.f32.mxu0 0.0
    %2021 = vmatmul.mubr.f32.gmra.mrb[0].mxu0 %v1954
    %v2022 = vpop.f32.mrb[0].mxu0
    %v2023 = vadd.f32 0.0, %v2022
    %v2024 = vpop.f32.mrb[0].mxu0
    %2025 = vdwg.mxu0
    %v2026 = vadd.f32 %v736, %v2023
    %v2027 = vxor.u32 %v2026, 2147483648
    %v2028 = vmul.f32 %v2027, 1.442695
    %v2029 = vpow.pop %v2028
    %v2030 = vadd.f32 %v2029, 1.0
    %v2031 = vrcp.pop %v2030
    %v2032 = vmul.f32 1.0, %v2031
    %v2033 = vtanh.pop %v2026
    %v2034 = vmul.f32 %v2032, %v1944
    %2036 = vrot.lane.b32.xlu0 %v2033, 32
    %v2037 = vpop.permute.xlu0 %2036
    %v2039 = vmul.f32 %v2032, %v2037
    %2041 = vrot.lane.b32.xlu0 %v2039, 32
    %v2042 = vpop.permute.xlu0 %2041
    %v2044 = vadd.f32 %v2034, %v2042
    %v2045 = vtanh.pop %v2044
    %2047 = vrot.lane.b32.xlu0 %v2045, 32
    %v2048 = vpop.permute.xlu0 %2047
    %v2050 = vmul.f32 %v2032, %v2048
    %2052 = vrot.lane.b32.xlu0 %v2050, 64
    %v2053 = vpop.permute.xlu0 %2052
    %v2054 = vsel %vm193, %v2053, 0
    %2056 = vmatprep.subr.mxu0 0.0
    %2057 = vmatpush1.msra.mxu0 %v74
    %2058 = vmatprep.subr.mxu0 0.0
    %2059 = vmatpush1.msra.mxu0 %v75
    %2060 = vmatprep.subr.mxu0 0.0
    %2061 = vmatpush1.msra.mxu0 %v76
    %2062 = vmatprep.subr.mxu0 0.0
    %2063 = vmatpush1.msra.mxu0 %v77
    %2064 = vmatprep.subr.mxu0 0.0
    %2065 = vmatpush1.msra.mxu0 0.0
    %2066 = vmatprep.subr.mxu0 0.0
    %2067 = vmatpush1.msra.mxu0 0.0
    %2068 = vmatprep.subr.mxu0 0.0
    %2069 = vmatpush1.msra.mxu0 0.0
    %2070 = vmatprep.subr.mxu0 0.0
    %2071 = vmatpush1.msra.mxu0 0.0
    %2072 = vmatprep.subr.mxu0 0.0
    %2073 = vmatpush1.msra.mxu0 0.0
    %2074 = vmatprep.subr.mxu0 0.0
    %2075 = vmatpush1.msra.mxu0 0.0
    %2076 = vmatprep.subr.mxu0 0.0
    %2077 = vmatpush1.msra.mxu0 0.0
    %2078 = vmatprep.subr.mxu0 0.0
    %2079 = vmatpush1.msra.mxu0 0.0
    %2080 = vmatprep.subr.mxu0 0.0
    %2081 = vmatpush1.msra.mxu0 0.0
    %2082 = vmatprep.subr.mxu0 0.0
    %2083 = vmatpush1.msra.mxu0 0.0
    %2084 = vmatprep.subr.mxu0 0.0
    %2085 = vmatpush1.msra.mxu0 0.0
    %2086 = vmatprep.subr.mxu0 0.0
    %2087 = vmatpush1.msra.mxu0 0.0
    %2088 = vmatprep.subr.mxu0 0.0
    %2089 = vmatpush1.msra.mxu0 0.0
    %2090 = vmatprep.subr.mxu0 0.0
    %2091 = vmatpush1.msra.mxu0 0.0
    %2092 = vmatprep.subr.mxu0 0.0
    %2093 = vmatpush1.msra.mxu0 0.0
    %2094 = vmatprep.subr.mxu0 0.0
    %2095 = vmatpush1.msra.mxu0 0.0
    %2096 = vmatprep.subr.mxu0 0.0
    %2097 = vmatpush1.msra.mxu0 0.0
    %2098 = vmatprep.subr.mxu0 0.0
    %2099 = vmatpush1.msra.mxu0 0.0
    %2100 = vmatprep.subr.mxu0 0.0
    %2101 = vmatpush1.msra.mxu0 0.0
    %2102 = vmatprep.subr.mxu0 0.0
    %2103 = vmatpush1.msra.mxu0 0.0
    %2104 = vmatprep.subr.mxu0 0.0
    %2105 = vmatpush1.msra.mxu0 0.0
    %2106 = vmatprep.subr.mxu0 0.0
    %2107 = vmatpush1.msra.mxu0 0.0
    %2108 = vmatprep.subr.mxu0 0.0
    %2109 = vmatpush1.msra.mxu0 0.0
    %2110 = vmatprep.subr.mxu0 0.0
    %2111 = vmatpush1.msra.mxu0 0.0
    %2112 = vmatprep.subr.mxu0 0.0
    %2113 = vmatpush1.msra.mxu0 0.0
    %2114 = vmatprep.subr.mxu0 0.0
    %2115 = vmatpush1.msra.mxu0 0.0
    %2116 = vmatprep.subr.mxu0 0.0
    %2117 = vmatpush1.msra.mxu0 0.0
    %2118 = vmatprep.subr.mxu0 0.0
    %2119 = vmatpush1.msra.mxu0 0.0
    %2120 = vmatprep.mubr.f32.mxu0 0.0
    %2121 = vmatmul.mubr.f32.gmra.mrb[0].mxu0 %v2054
    %v2122 = vpop.f32.mrb[0].mxu0
    %v2123 = vadd.f32 0.0, %v2122
    %v2124 = vpop.f32.mrb[0].mxu0
    %2125 = vdwg.mxu0
    %v2126 = vadd.f32 %v741, %v2123
    %v2127 = vxor.u32 %v2126, 2147483648
    %v2128 = vmul.f32 %v2127, 1.442695
    %v2129 = vpow.pop %v2128
    %v2130 = vadd.f32 %v2129, 1.0
    %v2131 = vrcp.pop %v2130
    %v2132 = vmul.f32 1.0, %v2131
    %v2133 = vtanh.pop %v2126
    %v2134 = vmul.f32 %v2132, %v2044
    %2136 = vrot.lane.b32.xlu0 %v2133, 32
    %v2137 = vpop.permute.xlu0 %2136
    %v2139 = vmul.f32 %v2132, %v2137
    %2141 = vrot.lane.b32.xlu0 %v2139, 32
    %v2142 = vpop.permute.xlu0 %2141
    %v2144 = vadd.f32 %v2134, %v2142
    %v2145 = vtanh.pop %v2144
    %2147 = vrot.lane.b32.xlu0 %v2145, 32
    %v2148 = vpop.permute.xlu0 %2147
    %v2150 = vmul.f32 %v2132, %v2148
    %2152 = vrot.lane.b32.xlu0 %v2150, 64
    %v2153 = vpop.permute.xlu0 %2152
    %v2154 = vsel %vm193, %v2153, 0
    %2156 = vmatprep.subr.mxu0 0.0
    %2157 = vmatpush1.msra.mxu0 %v74
    %2158 = vmatprep.subr.mxu0 0.0
    %2159 = vmatpush1.msra.mxu0 %v75
    %2160 = vmatprep.subr.mxu0 0.0
    %2161 = vmatpush1.msra.mxu0 %v76
    %2162 = vmatprep.subr.mxu0 0.0
    %2163 = vmatpush1.msra.mxu0 %v77
    %2164 = vmatprep.subr.mxu0 0.0
    %2165 = vmatpush1.msra.mxu0 0.0
    %2166 = vmatprep.subr.mxu0 0.0
    %2167 = vmatpush1.msra.mxu0 0.0
    %2168 = vmatprep.subr.mxu0 0.0
    %2169 = vmatpush1.msra.mxu0 0.0
    %2170 = vmatprep.subr.mxu0 0.0
    %2171 = vmatpush1.msra.mxu0 0.0
    %2172 = vmatprep.subr.mxu0 0.0
    %2173 = vmatpush1.msra.mxu0 0.0
    %2174 = vmatprep.subr.mxu0 0.0
    %2175 = vmatpush1.msra.mxu0 0.0
    %2176 = vmatprep.subr.mxu0 0.0
    %2177 = vmatpush1.msra.mxu0 0.0
    %2178 = vmatprep.subr.mxu0 0.0
    %2179 = vmatpush1.msra.mxu0 0.0
    %2180 = vmatprep.subr.mxu0 0.0
    %2181 = vmatpush1.msra.mxu0 0.0
    %2182 = vmatprep.subr.mxu0 0.0
    %2183 = vmatpush1.msra.mxu0 0.0
    %2184 = vmatprep.subr.mxu0 0.0
    %2185 = vmatpush1.msra.mxu0 0.0
    %2186 = vmatprep.subr.mxu0 0.0
    %2187 = vmatpush1.msra.mxu0 0.0
    %2188 = vmatprep.subr.mxu0 0.0
    %2189 = vmatpush1.msra.mxu0 0.0
    %2190 = vmatprep.subr.mxu0 0.0
    %2191 = vmatpush1.msra.mxu0 0.0
    %2192 = vmatprep.subr.mxu0 0.0
    %2193 = vmatpush1.msra.mxu0 0.0
    %2194 = vmatprep.subr.mxu0 0.0
    %2195 = vmatpush1.msra.mxu0 0.0
    %2196 = vmatprep.subr.mxu0 0.0
    %2197 = vmatpush1.msra.mxu0 0.0
    %2198 = vmatprep.subr.mxu0 0.0
    %2199 = vmatpush1.msra.mxu0 0.0
    %2200 = vmatprep.subr.mxu0 0.0
    %2201 = vmatpush1.msra.mxu0 0.0
    %2202 = vmatprep.subr.mxu0 0.0
    %2203 = vmatpush1.msra.mxu0 0.0
    %2204 = vmatprep.subr.mxu0 0.0
    %2205 = vmatpush1.msra.mxu0 0.0
    %2206 = vmatprep.subr.mxu0 0.0
    %2207 = vmatpush1.msra.mxu0 0.0
    %2208 = vmatprep.subr.mxu0 0.0
    %2209 = vmatpush1.msra.mxu0 0.0
    %2210 = vmatprep.subr.mxu0 0.0
    %2211 = vmatpush1.msra.mxu0 0.0
    %2212 = vmatprep.subr.mxu0 0.0
    %2213 = vmatpush1.msra.mxu0 0.0
    %2214 = vmatprep.subr.mxu0 0.0
    %2215 = vmatpush1.msra.mxu0 0.0
    %2216 = vmatprep.subr.mxu0 0.0
    %2217 = vmatpush1.msra.mxu0 0.0
    %2218 = vmatprep.subr.mxu0 0.0
    %2219 = vmatpush1.msra.mxu0 0.0
    %2220 = vmatprep.mubr.f32.mxu0 0.0
    %2221 = vmatmul.mubr.f32.gmra.mrb[0].mxu0 %v2154
    %v2222 = vpop.f32.mrb[0].mxu0
    %v2223 = vadd.f32 0.0, %v2222
    %v2224 = vpop.f32.mrb[0].mxu0
    %2225 = vdwg.mxu0
    %v2226 = vadd.f32 %v746, %v2223
    %v2227 = vxor.u32 %v2226, 2147483648
    %v2228 = vmul.f32 %v2227, 1.442695
    %v2229 = vpow.pop %v2228
    %v2230 = vadd.f32 %v2229, 1.0
    %v2231 = vrcp.pop %v2230
    %v2232 = vmul.f32 1.0, %v2231
    %v2233 = vtanh.pop %v2226
    %v2234 = vmul.f32 %v2232, %v2144
    %2236 = vrot.lane.b32.xlu0 %v2233, 32
    %v2237 = vpop.permute.xlu0 %2236
    %v2239 = vmul.f32 %v2232, %v2237
    %2241 = vrot.lane.b32.xlu0 %v2239, 32
    %v2242 = vpop.permute.xlu0 %2241
    %v2244 = vadd.f32 %v2234, %v2242
    %v2245 = vtanh.pop %v2244
    %2247 = vrot.lane.b32.xlu0 %v2245, 32
    %v2248 = vpop.permute.xlu0 %2247
    %v2250 = vmul.f32 %v2232, %v2248
    %2252 = vrot.lane.b32.xlu0 %v2250, 64
    %v2253 = vpop.permute.xlu0 %2252
    %v2254 = vsel %vm193, %v2253, 0
    %2256 = vmatprep.subr.mxu0 0.0
    %2257 = vmatpush1.msra.mxu0 %v74
    %2258 = vmatprep.subr.mxu0 0.0
    %2259 = vmatpush1.msra.mxu0 %v75
    %2260 = vmatprep.subr.mxu0 0.0
    %2261 = vmatpush1.msra.mxu0 %v76
    %2262 = vmatprep.subr.mxu0 0.0
    %2263 = vmatpush1.msra.mxu0 %v77
    %2264 = vmatprep.subr.mxu0 0.0
    %2265 = vmatpush1.msra.mxu0 0.0
    %2266 = vmatprep.subr.mxu0 0.0
    %2267 = vmatpush1.msra.mxu0 0.0
    %2268 = vmatprep.subr.mxu0 0.0
    %2269 = vmatpush1.msra.mxu0 0.0
    %2270 = vmatprep.subr.mxu0 0.0
    %2271 = vmatpush1.msra.mxu0 0.0
    %2272 = vmatprep.subr.mxu0 0.0
    %2273 = vmatpush1.msra.mxu0 0.0
    %2274 = vmatprep.subr.mxu0 0.0
    %2275 = vmatpush1.msra.mxu0 0.0
    %2276 = vmatprep.subr.mxu0 0.0
    %2277 = vmatpush1.msra.mxu0 0.0
    %2278 = vmatprep.subr.mxu0 0.0
    %2279 = vmatpush1.msra.mxu0 0.0
    %2280 = vmatprep.subr.mxu0 0.0
    %2281 = vmatpush1.msra.mxu0 0.0
    %2282 = vmatprep.subr.mxu0 0.0
    %2283 = vmatpush1.msra.mxu0 0.0
    %2284 = vmatprep.subr.mxu0 0.0
    %2285 = vmatpush1.msra.mxu0 0.0
    %2286 = vmatprep.subr.mxu0 0.0
    %2287 = vmatpush1.msra.mxu0 0.0
    %2288 = vmatprep.subr.mxu0 0.0
    %2289 = vmatpush1.msra.mxu0 0.0
    %2290 = vmatprep.subr.mxu0 0.0
    %2291 = vmatpush1.msra.mxu0 0.0
    %2292 = vmatprep.subr.mxu0 0.0
    %2293 = vmatpush1.msra.mxu0 0.0
    %2294 = vmatprep.subr.mxu0 0.0
    %2295 = vmatpush1.msra.mxu0 0.0
    %2296 = vmatprep.subr.mxu0 0.0
    %2297 = vmatpush1.msra.mxu0 0.0
    %2298 = vmatprep.subr.mxu0 0.0
    %2299 = vmatpush1.msra.mxu0 0.0
    %2300 = vmatprep.subr.mxu0 0.0
    %2301 = vmatpush1.msra.mxu0 0.0
    %2302 = vmatprep.subr.mxu0 0.0
    %2303 = vmatpush1.msra.mxu0 0.0
    %2304 = vmatprep.subr.mxu0 0.0
    %2305 = vmatpush1.msra.mxu0 0.0
    %2306 = vmatprep.subr.mxu0 0.0
    %2307 = vmatpush1.msra.mxu0 0.0
    %2308 = vmatprep.subr.mxu0 0.0
    %2309 = vmatpush1.msra.mxu0 0.0
    %2310 = vmatprep.subr.mxu0 0.0
    %2311 = vmatpush1.msra.mxu0 0.0
    %2312 = vmatprep.subr.mxu0 0.0
    %2313 = vmatpush1.msra.mxu0 0.0
    %2314 = vmatprep.subr.mxu0 0.0
    %2315 = vmatpush1.msra.mxu0 0.0
    %2316 = vmatprep.subr.mxu0 0.0
    %2317 = vmatpush1.msra.mxu0 0.0
    %2318 = vmatprep.subr.mxu0 0.0
    %2319 = vmatpush1.msra.mxu0 0.0
    %2320 = vmatprep.mubr.f32.mxu0 0.0
    %2321 = vmatmul.mubr.f32.gmra.mrb[0].mxu0 %v2254
    %v2322 = vpop.f32.mrb[0].mxu0
    %v2323 = vadd.f32 0.0, %v2322
    %v2324 = vpop.f32.mrb[0].mxu0
    %2325 = vdwg.mxu0
    %v2326 = vadd.f32 %v751, %v2323
    %v2327 = vxor.u32 %v2326, 2147483648
    %v2328 = vmul.f32 %v2327, 1.442695
    %v2329 = vpow.pop %v2328
    %v2330 = vadd.f32 %v2329, 1.0
    %v2331 = vrcp.pop %v2330
    %v2332 = vmul.f32 1.0, %v2331
    %v2333 = vtanh.pop %v2326
    %v2334 = vmul.f32 %v2332, %v2244
    %2336 = vrot.lane.b32.xlu0 %v2333, 32
    %v2337 = vpop.permute.xlu0 %2336
    %v2339 = vmul.f32 %v2332, %v2337
    %2341 = vrot.lane.b32.xlu0 %v2339, 32
    %v2342 = vpop.permute.xlu0 %2341
    %v2344 = vadd.f32 %v2334, %v2342
    %v2345 = vtanh.pop %v2344
    %2347 = vrot.lane.b32.xlu0 %v2345, 32
    %v2348 = vpop.permute.xlu0 %2347
    %v2350 = vmul.f32 %v2332, %v2348
    %v2351 = vsel %vm756, %v2350, %v2150
    %2353 = vrot.lane.b32.xlu0 %v1555, 64
    %v2354 = vpop.permute.xlu0 %2353
    %2357 = vrot.lane.b32.xlu0 %v2351, 96
    %v2358 = vpop.permute.xlu0 %2357
    %v2360 = vsel %vm193, %v2354, %v2358
    %v2361 = vmul.f32 %v2360, %v2360
    %vm2362 = vcmask 523264
    %v2363 = vsel %vm2362, %v2361, 0.0
    %2364 = vadd.xlane.f32.xlu0 %v2363
    %v2365 = vpop.xlane.xlu0 %2364
    %v2366 = vrsqrt.pop %v2365
    %v2367 = vsel %vm756, 1.0, %v2366
    %v2368 = vmul.f32 %v2360, %v2367
    %v2370 = vrot.slane %v2368, 4
    %2371 = vrot.lane.b32.xlu0 %v2370, 64
    %v2372 = vpop.permute.xlu0 %2371
    %v2374 = vsel %vm2362, %v2368, %v2372
    %v2375 = vld [vmem:[%s9] sm:$0xff]
    %v2376 = vld [vmem:[%s9 + $0x8] sm:$0xff]
    %v2377 = vld [vmem:[%s9 + $0x10] sm:$0xff]
    %v2378 = vld [vmem:[%s9 + $0x18] sm:$0xff]
    %v2379 = vld [vmem:[%s9 + $0x20] sm:$0xff]
    %v2380 = vld [vmem:[%s9 + $0x28] sm:$0xff]
    %v2381 = vld [vmem:[%s9 + $0x30] sm:$0xff]
    %v2382 = vld [vmem:[%s9 + $0x38] sm:$0xff]
    %v2383 = vld [vmem:[%s9 + $0x40] sm:$0xff]
    %v2384 = vld [vmem:[%s9 + $0x48] sm:$0xff]
    %v2385 = vld [vmem:[%s9 + $0x50] sm:$0xff]
    %v2386 = vld [vmem:[%s9 + $0x58] sm:$0xff]
    %v2387 = vld [vmem:[%s9 + $0x60] sm:$0xff]
    %v2388 = vld [vmem:[%s9 + $0x68] sm:$0xff]
    %v2389 = vld [vmem:[%s9 + $0x70] sm:$0xff]
    %v2390 = vld [vmem:[%s9 + $0x78] sm:$0xff]
    %v2391 = vld [vmem:[%s10] sm:$0x1]
    %v2393 = vlaneseq
    %v2394 = vshrl.u32 %v2393, 7
    %v2395 = vsub.s32 0, %v2394
    %v2396 = vrot.slane %v2391, %v2395
    %2398 = vmatprep.subr.mxu0 0.0
    %2399 = vmatpush1.msra.mxu0 %v2375
    %2400 = vmatprep.subr.mxu0 0.0
    %2401 = vmatpush1.msra.mxu0 %v2376
    %2402 = vmatprep.subr.mxu0 0.0
    %2403 = vmatpush1.msra.mxu0 %v2377
    %2404 = vmatprep.subr.mxu0 0.0
    %2405 = vmatpush1.msra.mxu0 %v2378
    %2406 = vmatprep.subr.mxu0 0.0
    %2407 = vmatpush1.msra.mxu0 %v2379
    %2408 = vmatprep.subr.mxu0 0.0
    %2409 = vmatpush1.msra.mxu0 %v2380
    %2410 = vmatprep.subr.mxu0 0.0
    %2411 = vmatpush1.msra.mxu0 %v2381
    %2412 = vmatprep.subr.mxu0 0.0
    %2413 = vmatpush1.msra.mxu0 %v2382
    %2414 = vmatprep.subr.mxu0 0.0
    %2415 = vmatpush1.msra.mxu0 %v2383
    %2416 = vmatprep.subr.mxu0 0.0
    %2417 = vmatpush1.msra.mxu0 %v2384
    %2418 = vmatprep.subr.mxu0 0.0
    %2419 = vmatpush1.msra.mxu0 %v2385
    %2420 = vmatprep.subr.mxu0 0.0
    %2421 = vmatpush1.msra.mxu0 %v2386
    %2422 = vmatprep.subr.mxu0 0.0
    %2423 = vmatpush1.msra.mxu0 %v2387
    %2424 = vmatprep.subr.mxu0 0.0
    %2425 = vmatpush1.msra.mxu0 %v2388
    %2426 = vmatprep.subr.mxu0 0.0
    %2427 = vmatpush1.msra.mxu0 %v2389
    %2428 = vmatprep.subr.mxu0 0.0
    %2429 = vmatpush1.msra.mxu0 %v2390
    %2430 = vmatprep.subr.mxu0 0.0
    %2431 = vmatpush1.msra.mxu0 0.0
    %2432 = vmatprep.subr.mxu0 0.0
    %2433 = vmatpush1.msra.mxu0 0.0
    %2434 = vmatprep.subr.mxu0 0.0
    %2435 = vmatpush1.msra.mxu0 0.0
    %2436 = vmatprep.subr.mxu0 0.0
    %2437 = vmatpush1.msra.mxu0 0.0
    %2438 = vmatprep.subr.mxu0 0.0
    %2439 = vmatpush1.msra.mxu0 0.0
    %2440 = vmatprep.subr.mxu0 0.0
    %2441 = vmatpush1.msra.mxu0 0.0
    %2442 = vmatprep.subr.mxu0 0.0
    %2443 = vmatpush1.msra.mxu0 0.0
    %2444 = vmatprep.subr.mxu0 0.0
    %2445 = vmatpush1.msra.mxu0 0.0
    %2446 = vmatprep.subr.mxu0 0.0
    %2447 = vmatpush1.msra.mxu0 0.0
    %2448 = vmatprep.subr.mxu0 0.0
    %2449 = vmatpush1.msra.mxu0 0.0
    %2450 = vmatprep.subr.mxu0 0.0
    %2451 = vmatpush1.msra.mxu0 0.0
    %2452 = vmatprep.subr.mxu0 0.0
    %2453 = vmatpush1.msra.mxu0 0.0
    %2454 = vmatprep.subr.mxu0 0.0
    %2455 = vmatpush1.msra.mxu0 0.0
    %2456 = vmatprep.subr.mxu0 0.0
    %2457 = vmatpush1.msra.mxu0 0.0
    %2458 = vmatprep.subr.mxu0 0.0
    %2459 = vmatpush1.msra.mxu0 0.0
    %2460 = vmatprep.subr.mxu0 0.0
    %2461 = vmatpush1.msra.mxu0 0.0
    %2462 = vmatprep.mubr.f32.mxu0 0.0
    %2463 = vmatmul.mubr.f32.gmra.mrb[0].mxu0 %v2374
    %v2464 = vpop.f32.mrb[0].mxu0
    %v2465 = vadd.f32 %v2396, %v2464
    %v2466 = vpop.f32.mrb[0].mxu0
    %2467 = vdwg.mxu0
    %v2468 = vmax.f32 %v2465, 0.0
    %v2469 = vld [vmem:[%s11] sm:$0xff]
    %v2470 = vld [vmem:[%s11 + $0x8] sm:$0xff]
    %v2471 = vld [vmem:[%s11 + $0x10] sm:$0xff]
    %v2472 = vld [vmem:[%s11 + $0x18] sm:$0xff]
    %v2473 = vld [vmem:[%s11 + $0x20] sm:$0xff]
    %v2474 = vld [vmem:[%s11 + $0x28] sm:$0xff]
    %v2475 = vld [vmem:[%s11 + $0x30] sm:$0xff]
    %v2476 = vld [vmem:[%s11 + $0x38] sm:$0xff]
    %v2477 = vld [vmem:[%s12] sm:$0x1]
    %v2479 = vlaneseq
    %v2480 = vshrl.u32 %v2479, 7
    %v2481 = vsub.s32 0, %v2480
    %v2482 = vrot.slane %v2477, %v2481
    %v2485 = vsel %vm2362, %v2468, 0
    %2487 = vmatprep.subr.mxu0 0.0
    %2488 = vmatpush1.msra.mxu0 %v2469
    %2489 = vmatprep.subr.mxu0 0.0
    %2490 = vmatpush1.msra.mxu0 %v2470
    %2491 = vmatprep.subr.mxu0 0.0
    %2492 = vmatpush1.msra.mxu0 %v2471
    %2493 = vmatprep.subr.mxu0 0.0
    %2494 = vmatpush1.msra.mxu0 %v2472
    %2495 = vmatprep.subr.mxu0 0.0
    %2496 = vmatpush1.msra.mxu0 %v2473
    %2497 = vmatprep.subr.mxu0 0.0
    %2498 = vmatpush1.msra.mxu0 %v2474
    %2499 = vmatprep.subr.mxu0 0.0
    %2500 = vmatpush1.msra.mxu0 %v2475
    %2501 = vmatprep.subr.mxu0 0.0
    %2502 = vmatpush1.msra.mxu0 %v2476
    %2503 = vmatprep.subr.mxu0 0.0
    %2504 = vmatpush1.msra.mxu0 0.0
    %2505 = vmatprep.subr.mxu0 0.0
    %2506 = vmatpush1.msra.mxu0 0.0
    %2507 = vmatprep.subr.mxu0 0.0
    %2508 = vmatpush1.msra.mxu0 0.0
    %2509 = vmatprep.subr.mxu0 0.0
    %2510 = vmatpush1.msra.mxu0 0.0
    %2511 = vmatprep.subr.mxu0 0.0
    %2512 = vmatpush1.msra.mxu0 0.0
    %2513 = vmatprep.subr.mxu0 0.0
    %2514 = vmatpush1.msra.mxu0 0.0
    %2515 = vmatprep.subr.mxu0 0.0
    %2516 = vmatpush1.msra.mxu0 0.0
    %2517 = vmatprep.subr.mxu0 0.0
    %2518 = vmatpush1.msra.mxu0 0.0
    %2519 = vmatprep.subr.mxu0 0.0
    %2520 = vmatpush1.msra.mxu0 0.0
    %2521 = vmatprep.subr.mxu0 0.0
    %2522 = vmatpush1.msra.mxu0 0.0
    %2523 = vmatprep.subr.mxu0 0.0
    %2524 = vmatpush1.msra.mxu0 0.0
    %2525 = vmatprep.subr.mxu0 0.0
    %2526 = vmatpush1.msra.mxu0 0.0
    %2527 = vmatprep.subr.mxu0 0.0
    %2528 = vmatpush1.msra.mxu0 0.0
    %2529 = vmatprep.subr.mxu0 0.0
    %2530 = vmatpush1.msra.mxu0 0.0
    %2531 = vmatprep.subr.mxu0 0.0
    %2532 = vmatpush1.msra.mxu0 0.0
    %2533 = vmatprep.subr.mxu0 0.0
    %2534 = vmatpush1.msra.mxu0 0.0
    %2535 = vmatprep.subr.mxu0 0.0
    %2536 = vmatpush1.msra.mxu0 0.0
    %2537 = vmatprep.subr.mxu0 0.0
    %2538 = vmatpush1.msra.mxu0 0.0
    %2539 = vmatprep.subr.mxu0 0.0
    %2540 = vmatpush1.msra.mxu0 0.0
    %2541 = vmatprep.subr.mxu0 0.0
    %2542 = vmatpush1.msra.mxu0 0.0
    %2543 = vmatprep.subr.mxu0 0.0
    %2544 = vmatpush1.msra.mxu0 0.0
    %2545 = vmatprep.subr.mxu0 0.0
    %2546 = vmatpush1.msra.mxu0 0.0
    %2547 = vmatprep.subr.mxu0 0.0
    %2548 = vmatpush1.msra.mxu0 0.0
    %2549 = vmatprep.subr.mxu0 0.0
    %2550 = vmatpush1.msra.mxu0 0.0
    %2551 = vmatprep.mubr.f32.mxu0 0.0
    %2552 = vmatmul.mubr.f32.gmra.mrb[0].mxu0 %v2485
    %v2553 = vpop.f32.mrb[0].mxu0
    %v2554 = vadd.f32 %v2482, %v2553
    %v2555 = vpop.f32.mrb[0].mxu0
    %2556 = vdwg.mxu0
    %vm2557 = vcmask 60416
    %v2558 = vsel %vm2557, %v2554, -inf
    %2559 = vmax.xlane.f32.xlu0 %v2558
    %v2560 = vpop.xlane.xlu0 %2559
    %v2561 = vsub.f32 %v2554, %v2560
    %v2562 = vmul.f32 %v2561, 1.442695
    %v2563 = vpow.pop %v2562
    %v2564 = vsel %vm2557, %v2563, 0.0
    %2565 = vadd.xlane.f32.xlu0 %v2564
    %v2566 = vpop.xlane.xlu0 %2565
    %v2567 = vlog2.pop %v2566
    %v2568 = vmul.f32 %v2567, 0.6931472
    %v2569 = vsub.f32 %v2561, %v2568
    %2570 = vst.msk [vmem:[#allocation2] sm:$0xf] %vm2557, %v2569
    // Predicated region
    $region54: #{fused_forward.1} parent=1 // pred_check
      _
    $region55: #{fused_forward.1} parent=1 // pred_check_branch
      %2572 = sbr.rel (0) target = $region57
    $region56: #{fused_forward.1} parent=1 // pred_region
      %s2574 = ssub.s32 64, 64
      %2575 = vsyncadd [#allocation3], %s2574
      %s2577 = sshll.u32 [#allocation2], 4
      %s2578 = int_to_ptr.vmem [resolvable:$true] %s2577
      %2580 = dma.vmem_to_hbm [thread:$0]  %s2578, 64, %s13, [#allocation3]
    $region57: #{fused_forward.1} parent=1 // pred_fallthru
      _
    // Predicated region
    $region58: #{fused_forward.1} parent=1 // pred_check
      _
    $region59: #{fused_forward.1} parent=1 // pred_check_branch
      %2582 = sbr.rel (0) target = $region61
    $region60: #{fused_forward.1} parent=1 // pred_region
      %2583 = dma.done [#allocation3], 64
    $region61: #{fused_forward.1} parent=1 // pred_fallthru
      _
    %2584 = vsyncpa [#allocation3], 1

</llo_original>
